<compile_context>
chip_gen: v7x
topology: tpu7x:2x2x1
jax: 0.10.0
libtpu: 0.0.40
codegen_flags: <defaults>
</compile_context>

<pallas_src>
import functools

import jax
import jax.numpy as jnp
from jax.experimental import pallas as pl
from jax.experimental.pallas import tpu as pltpu


NEG_INF = -1e30


# ---------------------------------------------------------------------------
# Single-layer GAT compute (pure JAX, traced inside the fused kernel)
# ---------------------------------------------------------------------------
def _gat_layer_compute(x, mask_b, w, al, ar, bias, resw, *, num_heads, head_feats,
                       alpha, res_mode, agg_mode, activation):
    """x: (N, Din) f32, mask_b: (N_dst, N_src) additive mask, params in VMEM values."""
    H, F = num_heads, head_feats

    x_bf = x.astype(jnp.bfloat16)

    # ---- projection for all heads in one lane-dense MXU matmul ----
    ft = jnp.dot(x_bf, w, preferred_element_type=jnp.float32)          # (N, H*F) f32
    ft_bf = ft.astype(jnp.bfloat16)

    # ---- attention logits for all heads at once (block-diagonal matmuls) ----
    el = jnp.dot(ft_bf, al, preferred_element_type=jnp.float32)        # (N, H) src
    er = jnp.dot(ft_bf, ar, preferred_element_type=jnp.float32)        # (N, H) dst

    # ---- per-head masked edge softmax + aggregation (H small & static) ----
    head_outs = []
    for h in range(H):
        # e[v, u] = LeakyReLU(el[u] + er[v]) for edge u -> v
        e = er[:, h:h + 1] + el[:, h:h + 1].T                          # (N_dst, N_src)
        e = jnp.maximum(e, alpha * e) + mask_b                         # LeakyReLU + mask
        m = jnp.max(e, axis=-1, keepdims=True)
        p = jnp.exp(e - m)                                             # masked -> 0
        denom = jnp.sum(p, axis=-1, keepdims=True)
        o = jnp.dot(p.astype(jnp.bfloat16), ft_bf[:, h * F:(h + 1) * F],
                    preferred_element_type=jnp.float32)                # (N, F) f32
        # normalize AFTER aggregation: O(N*F) scale instead of O(N*N)
        head_outs.append(o * pl.reciprocal(denom, approx=True))
    rst = jnp.concatenate(head_outs, axis=-1)                          # (N, H*F) lane-dense

    # ---- fused epilogue: residual, bias, head aggregation, activation ----
    if res_mode == "linear":
        rst = rst + jnp.dot(x_bf, resw, preferred_element_type=jnp.float32)
    elif res_mode == "identity":
        rst = rst + x                                                  # Din == H*F guaranteed

    rst = rst + bias

    if agg_mode == "flatten":
        out = rst                                                      # (N, H*F)
    else:  # 'mean' over heads
        acc = rst[:, 0:F]
        for h in range(1, H):
            acc = acc + rst[:, h * F:(h + 1) * F]
        out = acc * (1.0 / H)                                          # (N, F)

    if activation == "elu":
        out = jnp.where(out > 0, out, jnp.exp(jnp.minimum(out, 0.0)) - 1.0)
    return out


# ---------------------------------------------------------------------------
# Fused whole-model Pallas kernel (all layers, all heads, epilogues)
# ---------------------------------------------------------------------------
def _gat_model_kernel(x_ref, maskb_ref, *rest, layer_cfgs):
    """rest = per-layer [w, a_l, a_r, bias, (res_w)] refs ..., then out_ref."""
    out_ref = rest[-1]
    param_refs = rest[:-1]

    mask_b = maskb_ref[...]                                            # shared across layers
    feats = x_ref[...]                                                 # (N, Din) f32

    idx = 0
    for cfg in layer_cfgs:
        w = param_refs[idx][...]
        al = param_refs[idx + 1][...]
        ar = param_refs[idx + 2][...]
        bias = param_refs[idx + 3][...]
        idx += 4
        resw = None
        if cfg["res_mode"] == "linear":
            resw = param_refs[idx][...]
            idx += 1
        feats = _gat_layer_compute(
            feats, mask_b, w, al, ar, bias, resw,
            num_heads=cfg["num_heads"], head_feats=cfg["out_feats"],
            alpha=cfg["alpha"], res_mode=cfg["res_mode"],
            agg_mode=cfg["agg_mode"], activation=cfg["activation"])

    out_ref[...] = feats


def gat_model_forward(x, mask_bias, layer_params, agg_modes, activations):
    """Runs the full GAT stack as a single fused pallas_call. Returns (N, Dout_last)."""
    N, Din = x.shape

    inputs = [x, mask_bias]
    in_specs = [
        pl.BlockSpec((N, Din), lambda i: (0, 0)),                      # x
        pl.BlockSpec((N, N), lambda i: (0, 0)),                        # additive edge mask
    ]

    layer_cfgs = []
    cur_in = Din
    flops = 0
    transcendentals = 0
    bytes_accessed = 4 * (N * Din + N * N)

    for p, agg, act in zip(layer_params, agg_modes, activations):
        H, F = p["num_heads"], p["out_feats"]
        HF = H * F
        layer_cfgs.append(dict(num_heads=H, out_feats=F, alpha=p["alpha"],
                               res_mode=p["res_mode"], agg_mode=agg, activation=act))

        inputs += [p["w"], p["a_l"], p["a_r"], p["bias"]]
        in_specs += [
            pl.BlockSpec((cur_in, HF), lambda i: (0, 0)),              # projection weight (bf16)
            pl.BlockSpec((HF, H), lambda i: (0, 0)),                   # attn_l block-diag (bf16)
            pl.BlockSpec((HF, H), lambda i: (0, 0)),                   # attn_r block-diag (bf16)
            pl.BlockSpec((1, HF), lambda i: (0, 0)),                   # bias (f32)
        ]
        flops += 2 * N * cur_in * HF + 2 * (2 * N * HF * H) + 2 * H * N * N * F
        bytes_accessed += 2 * (cur_in * HF + 2 * HF * H) + 4 * HF
        if p["res_mode"] == "linear":
            inputs.append(p["res_w"])
            in_specs.append(pl.BlockSpec((cur_in, HF), lambda i: (0, 0)))
            flops += 2 * N * cur_in * HF
            bytes_accessed += 2 * cur_in * HF

        Dout = HF if agg == "flatten" else F
        transcendentals += H * N * N + (N * Dout if act == "elu" else 0)
        cur_in = Dout

    bytes_accessed += 4 * N * cur_in

    kernel = functools.partial(_gat_model_kernel, layer_cfgs=tuple(layer_cfgs))

    return pl.pallas_call(
        kernel,
        out_shape=jax.ShapeDtypeStruct((N, cur_in), jnp.float32),
        grid=(1,),
        in_specs=in_specs,
        out_specs=pl.BlockSpec((N, cur_in), lambda i: (0, 0)),
        compiler_params=pltpu.CompilerParams(
            dimension_semantics=("arbitrary",),
            vmem_limit_bytes=64 * 1024 * 1024),
        cost_estimate=pl.CostEstimate(flops=flops,
                                      transcendentals=transcendentals,
                                      bytes_accessed=bytes_accessed),
    )(*inputs)


# ---------------------------------------------------------------------------
# Deterministic parameter init (xavier_normal with gain for 'relu', like reset_parameters)
# ---------------------------------------------------------------------------
def xavier_normal(key, shape, fan_in, fan_out, gain):
    std = gain * (2.0 / (fan_in + fan_out)) ** 0.5
    return std * jax.random.normal(key, shape, dtype=jnp.float32)


def make_layer_params(key, in_feats, out_feats, num_heads, alpha, residual):
    gain = 2.0 ** 0.5  # nn.init.calculate_gain('relu')
    H, F = num_heads, out_feats
    HF = H * F
    k_fc, k_al, k_ar, k_res = jax.random.split(key, 4)

    # fc: Linear(in_feats, H*F, bias=False) stored transposed (in_feats, H*F);
    # head h occupies output columns [h*F, (h+1)*F) (matches torch .view(N, H, F)).
    w = xavier_normal(k_fc, (in_feats, HF), in_feats, HF, gain).astype(jnp.bfloat16)

    # attn params (torch shape (1, H, F)): fan_in = H*F, fan_out = F.
    attn_l = xavier_normal(k_al, (H, F), HF, F, gain)
    attn_r = xavier_normal(k_ar, (H, F), HF, F, gain)
    # Block-diagonal (H*F, H) so ft(N, H*F) @ A gives all per-head logits in one matmul.
    a_l = jax.scipy.linalg.block_diag(
        *[attn_l[h].reshape(F, 1) for h in range(H)]).astype(jnp.bfloat16)
    a_r = jax.scipy.linalg.block_diag(
        *[attn_r[h].reshape(F, 1) for h in range(H)]).astype(jnp.bfloat16)

    if residual and in_feats != HF:
        res_w = xavier_normal(k_res, (in_feats, HF), in_feats, HF, gain).astype(jnp.bfloat16)
        res_mode = "linear"
    elif residual:
        assert in_feats == HF, "identity residual requires in_feats == num_heads*out_feats"
        res_w = None
        res_mode = "identity"
    else:
        res_w = None
        res_mode = "none"

    bias = jnp.zeros((1, HF), dtype=jnp.float32)  # constant_(bias, 0)
    return {"w": w, "a_l": a_l, "a_r": a_r, "res_w": res_w, "bias": bias,
            "alpha": alpha, "num_heads": H, "out_feats": F, "res_mode": res_mode}


# ---------------------------------------------------------------------------
if __name__ == "__main__":
    key = jax.random.PRNGKey(0)
    k_adj, k_x, k_l1, k_l2 = jax.random.split(key, 4)

    # small, deterministic problem (defaults of gat_model)
    N = 64
    in_feats = 16
    hidden_feats = [32, 32]
    num_heads = [4, 4]
    agg_modes = ["flatten", "mean"]
    activations = ["elu", None]
    alphas = [0.2, 0.2]
    residuals = [True, True]

    # dense random graph with self loops; adj_uv[u, v] = 1 iff edge u -> v
    adj_uv = (jax.random.uniform(k_adj, (N, N)) < 0.15).astype(jnp.float32)
    adj_uv = jnp.maximum(adj_uv, jnp.eye(N, dtype=jnp.float32))
    adj_ds = adj_uv.T                                     # (dst, src)
    # additive softmax mask precomputed ONCE and shared across heads & layers;
    # self-loops guarantee every dst row has >= 1 real edge (softmax well-defined)
    mask_bias = jnp.where(adj_ds > 0, 0.0, NEG_INF).astype(jnp.float32)

    x = jax.random.normal(k_x, (N, in_feats), dtype=jnp.float32)

    layer_params = []
    cur_in = in_feats
    for i, k in enumerate([k_l1, k_l2]):
        layer_params.append(
            make_layer_params(k, cur_in, hidden_feats[i], num_heads[i],
                              alphas[i], residuals[i]))
        cur_in = hidden_feats[i] * num_heads[i] if agg_modes[i] == "flatten" else hidden_feats[i]

    out = gat_model_forward(x, mask_bias, layer_params, agg_modes, activations)
    out = jax.block_until_ready(out)
    assert out.shape == (N, hidden_feats[-1]), out.shape
    print("KERNEL_OK")
</pallas_src>

<mosaic_0001>
module attributes {stable_mosaic.version = 11 : i64} {
  func.func @_gat_model_kernel(%arg0: i32, %arg1: memref<64x16xf32, #tpu.memory_space<vmem>>, %arg2: memref<64x64xf32, #tpu.memory_space<vmem>>, %arg3: memref<16x128xbf16, #tpu.memory_space<vmem>>, %arg4: memref<128x4xbf16, #tpu.memory_space<vmem>>, %arg5: memref<128x4xbf16, #tpu.memory_space<vmem>>, %arg6: memref<1x128xf32, #tpu.memory_space<vmem>>, %arg7: memref<16x128xbf16, #tpu.memory_space<vmem>>, %arg8: memref<128x128xbf16, #tpu.memory_space<vmem>>, %arg9: memref<128x4xbf16, #tpu.memory_space<vmem>>, %arg10: memref<128x4xbf16, #tpu.memory_space<vmem>>, %arg11: memref<1x128xf32, #tpu.memory_space<vmem>>, %arg12: memref<64x32xf32, #tpu.memory_space<vmem>>) attributes {dimension_semantics = [#tpu.dimension_semantics<arbitrary>], iteration_bounds = array<i64: 1>, scalar_prefetch = 0 : i64, scratch_operands = 0 : i64, tpu.core_type = #tpu.core_type<tc>, window_params = [{pipeline_mode = #tpu.pipeline_mode<synchronous>, transform_indices = @transform_0, window_bounds = array<i64: 64, 16>}, {pipeline_mode = #tpu.pipeline_mode<synchronous>, transform_indices = @transform_1, window_bounds = array<i64: 64, 64>}, {pipeline_mode = #tpu.pipeline_mode<synchronous>, transform_indices = @transform_2, window_bounds = array<i64: 16, 128>}, {pipeline_mode = #tpu.pipeline_mode<synchronous>, transform_indices = @transform_3, window_bounds = array<i64: 128, 4>}, {pipeline_mode = #tpu.pipeline_mode<synchronous>, transform_indices = @transform_4, window_bounds = array<i64: 128, 4>}, {pipeline_mode = #tpu.pipeline_mode<synchronous>, transform_indices = @transform_5, window_bounds = array<i64: 1, 128>}, {pipeline_mode = #tpu.pipeline_mode<synchronous>, transform_indices = @transform_6, window_bounds = array<i64: 16, 128>}, {pipeline_mode = #tpu.pipeline_mode<synchronous>, transform_indices = @transform_7, window_bounds = array<i64: 128, 128>}, {pipeline_mode = #tpu.pipeline_mode<synchronous>, transform_indices = @transform_8, window_bounds = array<i64: 128, 4>}, {pipeline_mode = #tpu.pipeline_mode<synchronous>, transform_indices = @transform_9, window_bounds = array<i64: 128, 4>}, {pipeline_mode = #tpu.pipeline_mode<synchronous>, transform_indices = @transform_10, window_bounds = array<i64: 1, 128>}, {pipeline_mode = #tpu.pipeline_mode<synchronous>, transform_indices = @transform_11, window_bounds = array<i64: 64, 32>}]} {
    %c0 = arith.constant 0 : index
    %c0_0 = arith.constant 0 : index
    %0 = vector.load %arg2[%c0, %c0_0] : memref<64x64xf32, #tpu.memory_space<vmem>>, vector<64x64xf32>
    %c0_1 = arith.constant 0 : index
    %c0_2 = arith.constant 0 : index
    %1 = vector.load %arg1[%c0_1, %c0_2] : memref<64x16xf32, #tpu.memory_space<vmem>>, vector<64x16xf32>
    %c0_3 = arith.constant 0 : index
    %c0_4 = arith.constant 0 : index
    %2 = vector.load %arg3[%c0_3, %c0_4] : memref<16x128xbf16, #tpu.memory_space<vmem>>, vector<16x128xbf16>
    %c0_5 = arith.constant 0 : index
    %c0_6 = arith.constant 0 : index
    %3 = vector.load %arg4[%c0_5, %c0_6] : memref<128x4xbf16, #tpu.memory_space<vmem>>, vector<128x4xbf16>
    %c0_7 = arith.constant 0 : index
    %c0_8 = arith.constant 0 : index
    %4 = vector.load %arg5[%c0_7, %c0_8] : memref<128x4xbf16, #tpu.memory_space<vmem>>, vector<128x4xbf16>
    %c0_9 = arith.constant 0 : index
    %c0_10 = arith.constant 0 : index
    %5 = vector.load %arg6[%c0_9, %c0_10] : memref<1x128xf32, #tpu.memory_space<vmem>>, vector<1x128xf32>
    %c0_11 = arith.constant 0 : index
    %c0_12 = arith.constant 0 : index
    %6 = vector.load %arg7[%c0_11, %c0_12] : memref<16x128xbf16, #tpu.memory_space<vmem>>, vector<16x128xbf16>
    %7 = arith.truncf %1 : vector<64x16xf32> to vector<64x16xbf16>
    %cst = arith.constant dense<0.000000e+00> : vector<64x128xf32>
    %8 = tpu.matmul %7, %2, %cst {dimension_numbers = #tpu.dot_dimension_numbers<[1], [0], [0], [1], [0, 0, 1, 1], [], []>} : vector<64x16xbf16>, vector<16x128xbf16>, vector<64x128xf32> -> vector<64x128xf32>
    %9 = arith.truncf %8 : vector<64x128xf32> to vector<64x128xbf16>
    %cst_13 = arith.constant dense<0.000000e+00> : vector<64x4xf32>
    %10 = tpu.matmul %9, %3, %cst_13 {dimension_numbers = #tpu.dot_dimension_numbers<[1], [0], [0], [1], [0, 0, 1, 1], [], []>} : vector<64x128xbf16>, vector<128x4xbf16>, vector<64x4xf32> -> vector<64x4xf32>
    %cst_14 = arith.constant dense<0.000000e+00> : vector<64x4xf32>
    %11 = tpu.matmul %9, %4, %cst_14 {dimension_numbers = #tpu.dot_dimension_numbers<[1], [0], [0], [1], [0, 0, 1, 1], [], []>} : vector<64x128xbf16>, vector<128x4xbf16>, vector<64x4xf32> -> vector<64x4xf32>
    %12 = vector.extract_strided_slice %11 {offsets = [0, 0], sizes = [64, 1], strides = [1, 1]} : vector<64x4xf32> to vector<64x1xf32>
    %13 = vector.extract_strided_slice %10 {offsets = [0, 0], sizes = [64, 1], strides = [1, 1]} : vector<64x4xf32> to vector<64x1xf32>
    %14 = tpu.transpose %13, [1, 0] : vector<64x1xf32> -> vector<1x64xf32>
    %15 = vector.broadcast %12 : vector<64x1xf32> to vector<64x64xf32>
    %16 = vector.broadcast %14 : vector<1x64xf32> to vector<64x64xf32>
    %17 = arith.addf %15, %16 : vector<64x64xf32>
    %cst_15 = arith.constant 2.000000e-01 : f32
    %18 = vector.broadcast %cst_15 : f32 to vector<64x64xf32>
    %19 = arith.mulf %18, %17 : vector<64x64xf32>
    %20 = arith.maximumf %17, %19 : vector<64x64xf32>
    %21 = arith.addf %20, %0 : vector<64x64xf32>
    %cst_16 = arith.constant dense<0xFF800000> : vector<64xf32>
    %22 = vector.multi_reduction <maximumf>, %21, %cst_16 [1] : vector<64x64xf32> to vector<64xf32>
    %23 = vector.shape_cast %22 : vector<64xf32> to vector<64x1xf32>
    %24 = vector.broadcast %23 : vector<64x1xf32> to vector<64x64xf32>
    %25 = arith.subf %21, %24 : vector<64x64xf32>
    %26 = math.exp %25 : vector<64x64xf32>
    %cst_17 = arith.constant dense<0.000000e+00> : vector<64xf32>
    %27 = vector.multi_reduction <add>, %26, %cst_17 [1] : vector<64x64xf32> to vector<64xf32>
    %28 = vector.shape_cast %27 : vector<64xf32> to vector<64x1xf32>
    %29 = arith.truncf %26 : vector<64x64xf32> to vector<64x64xbf16>
    %30 = vector.extract_strided_slice %9 {offsets = [0, 0], sizes = [64, 32], strides = [1, 1]} : vector<64x128xbf16> to vector<64x32xbf16>
    %cst_18 = arith.constant dense<0.000000e+00> : vector<64x32xf32>
    %31 = tpu.matmul %29, %30, %cst_18 {dimension_numbers = #tpu.dot_dimension_numbers<[1], [0], [0], [1], [0, 0, 1, 1], [], []>} : vector<64x64xbf16>, vector<64x32xbf16>, vector<64x32xf32> -> vector<64x32xf32>
    %32 = tpu.reciprocal %28 {approx = true} : vector<64x1xf32> -> vector<64x1xf32>
    %33 = vector.broadcast %32 : vector<64x1xf32> to vector<64x32xf32>
    %34 = arith.mulf %31, %33 : vector<64x32xf32>
    %35 = vector.extract_strided_slice %11 {offsets = [0, 1], sizes = [64, 1], strides = [1, 1]} : vector<64x4xf32> to vector<64x1xf32>
    %36 = vector.extract_strided_slice %10 {offsets = [0, 1], sizes = [64, 1], strides = [1, 1]} : vector<64x4xf32> to vector<64x1xf32>
    %37 = tpu.transpose %36, [1, 0] : vector<64x1xf32> -> vector<1x64xf32>
    %38 = vector.broadcast %35 : vector<64x1xf32> to vector<64x64xf32>
    %39 = vector.broadcast %37 : vector<1x64xf32> to vector<64x64xf32>
    %40 = arith.addf %38, %39 : vector<64x64xf32>
    %cst_19 = arith.constant 2.000000e-01 : f32
    %41 = vector.broadcast %cst_19 : f32 to vector<64x64xf32>
    %42 = arith.mulf %41, %40 : vector<64x64xf32>
    %43 = arith.maximumf %40, %42 : vector<64x64xf32>
    %44 = arith.addf %43, %0 : vector<64x64xf32>
    %cst_20 = arith.constant dense<0xFF800000> : vector<64xf32>
    %45 = vector.multi_reduction <maximumf>, %44, %cst_20 [1] : vector<64x64xf32> to vector<64xf32>
    %46 = vector.shape_cast %45 : vector<64xf32> to vector<64x1xf32>
    %47 = vector.broadcast %46 : vector<64x1xf32> to vector<64x64xf32>
    %48 = arith.subf %44, %47 : vector<64x64xf32>
    %49 = math.exp %48 : vector<64x64xf32>
    %cst_21 = arith.constant dense<0.000000e+00> : vector<64xf32>
    %50 = vector.multi_reduction <add>, %49, %cst_21 [1] : vector<64x64xf32> to vector<64xf32>
    %51 = vector.shape_cast %50 : vector<64xf32> to vector<64x1xf32>
    %52 = arith.truncf %49 : vector<64x64xf32> to vector<64x64xbf16>
    %53 = vector.extract_strided_slice %9 {offsets = [0, 32], sizes = [64, 32], strides = [1, 1]} : vector<64x128xbf16> to vector<64x32xbf16>
    %cst_22 = arith.constant dense<0.000000e+00> : vector<64x32xf32>
    %54 = tpu.matmul %52, %53, %cst_22 {dimension_numbers = #tpu.dot_dimension_numbers<[1], [0], [0], [1], [0, 0, 1, 1], [], []>} : vector<64x64xbf16>, vector<64x32xbf16>, vector<64x32xf32> -> vector<64x32xf32>
    %55 = tpu.reciprocal %51 {approx = true} : vector<64x1xf32> -> vector<64x1xf32>
    %56 = vector.broadcast %55 : vector<64x1xf32> to vector<64x32xf32>
    %57 = arith.mulf %54, %56 : vector<64x32xf32>
    %58 = vector.extract_strided_slice %11 {offsets = [0, 2], sizes = [64, 1], strides = [1, 1]} : vector<64x4xf32> to vector<64x1xf32>
    %59 = vector.extract_strided_slice %10 {offsets = [0, 2], sizes = [64, 1], strides = [1, 1]} : vector<64x4xf32> to vector<64x1xf32>
    %60 = tpu.transpose %59, [1, 0] : vector<64x1xf32> -> vector<1x64xf32>
    %61 = vector.broadcast %58 : vector<64x1xf32> to vector<64x64xf32>
    %62 = vector.broadcast %60 : vector<1x64xf32> to vector<64x64xf32>
    %63 = arith.addf %61, %62 : vector<64x64xf32>
    %cst_23 = arith.constant 2.000000e-01 : f32
    %64 = vector.broadcast %cst_23 : f32 to vector<64x64xf32>
    %65 = arith.mulf %64, %63 : vector<64x64xf32>
    %66 = arith.maximumf %63, %65 : vector<64x64xf32>
    %67 = arith.addf %66, %0 : vector<64x64xf32>
    %cst_24 = arith.constant dense<0xFF800000> : vector<64xf32>
    %68 = vector.multi_reduction <maximumf>, %67, %cst_24 [1] : vector<64x64xf32> to vector<64xf32>
    %69 = vector.shape_cast %68 : vector<64xf32> to vector<64x1xf32>
    %70 = vector.broadcast %69 : vector<64x1xf32> to vector<64x64xf32>
    %71 = arith.subf %67, %70 : vector<64x64xf32>
    %72 = math.exp %71 : vector<64x64xf32>
    %cst_25 = arith.constant dense<0.000000e+00> : vector<64xf32>
    %73 = vector.multi_reduction <add>, %72, %cst_25 [1] : vector<64x64xf32> to vector<64xf32>
    %74 = vector.shape_cast %73 : vector<64xf32> to vector<64x1xf32>
    %75 = arith.truncf %72 : vector<64x64xf32> to vector<64x64xbf16>
    %76 = vector.extract_strided_slice %9 {offsets = [0, 64], sizes = [64, 32], strides = [1, 1]} : vector<64x128xbf16> to vector<64x32xbf16>
    %cst_26 = arith.constant dense<0.000000e+00> : vector<64x32xf32>
    %77 = tpu.matmul %75, %76, %cst_26 {dimension_numbers = #tpu.dot_dimension_numbers<[1], [0], [0], [1], [0, 0, 1, 1], [], []>} : vector<64x64xbf16>, vector<64x32xbf16>, vector<64x32xf32> -> vector<64x32xf32>
    %78 = tpu.reciprocal %74 {approx = true} : vector<64x1xf32> -> vector<64x1xf32>
    %79 = vector.broadcast %78 : vector<64x1xf32> to vector<64x32xf32>
    %80 = arith.mulf %77, %79 : vector<64x32xf32>
    %81 = vector.extract_strided_slice %11 {offsets = [0, 3], sizes = [64, 1], strides = [1, 1]} : vector<64x4xf32> to vector<64x1xf32>
    %82 = vector.extract_strided_slice %10 {offsets = [0, 3], sizes = [64, 1], strides = [1, 1]} : vector<64x4xf32> to vector<64x1xf32>
    %83 = tpu.transpose %82, [1, 0] : vector<64x1xf32> -> vector<1x64xf32>
    %84 = vector.broadcast %81 : vector<64x1xf32> to vector<64x64xf32>
    %85 = vector.broadcast %83 : vector<1x64xf32> to vector<64x64xf32>
    %86 = arith.addf %84, %85 : vector<64x64xf32>
    %cst_27 = arith.constant 2.000000e-01 : f32
    %87 = vector.broadcast %cst_27 : f32 to vector<64x64xf32>
    %88 = arith.mulf %87, %86 : vector<64x64xf32>
    %89 = arith.maximumf %86, %88 : vector<64x64xf32>
    %90 = arith.addf %89, %0 : vector<64x64xf32>
    %cst_28 = arith.constant dense<0xFF800000> : vector<64xf32>
    %91 = vector.multi_reduction <maximumf>, %90, %cst_28 [1] : vector<64x64xf32> to vector<64xf32>
    %92 = vector.shape_cast %91 : vector<64xf32> to vector<64x1xf32>
    %93 = vector.broadcast %92 : vector<64x1xf32> to vector<64x64xf32>
    %94 = arith.subf %90, %93 : vector<64x64xf32>
    %95 = math.exp %94 : vector<64x64xf32>
    %cst_29 = arith.constant dense<0.000000e+00> : vector<64xf32>
    %96 = vector.multi_reduction <add>, %95, %cst_29 [1] : vector<64x64xf32> to vector<64xf32>
    %97 = vector.shape_cast %96 : vector<64xf32> to vector<64x1xf32>
    %98 = arith.truncf %95 : vector<64x64xf32> to vector<64x64xbf16>
    %99 = vector.extract_strided_slice %9 {offsets = [0, 96], sizes = [64, 32], strides = [1, 1]} : vector<64x128xbf16> to vector<64x32xbf16>
    %cst_30 = arith.constant dense<0.000000e+00> : vector<64x32xf32>
    %100 = tpu.matmul %98, %99, %cst_30 {dimension_numbers = #tpu.dot_dimension_numbers<[1], [0], [0], [1], [0, 0, 1, 1], [], []>} : vector<64x64xbf16>, vector<64x32xbf16>, vector<64x32xf32> -> vector<64x32xf32>
    %101 = tpu.reciprocal %97 {approx = true} : vector<64x1xf32> -> vector<64x1xf32>
    %102 = vector.broadcast %101 : vector<64x1xf32> to vector<64x32xf32>
    %103 = arith.mulf %100, %102 : vector<64x32xf32>
    %104 = tpu.concatenate %34, %57, %80, %103 in 1 : vector<64x32xf32>, vector<64x32xf32>, vector<64x32xf32>, vector<64x32xf32> -> vector<64x128xf32>
    %cst_31 = arith.constant dense<0.000000e+00> : vector<64x128xf32>
    %105 = tpu.matmul %7, %6, %cst_31 {dimension_numbers = #tpu.dot_dimension_numbers<[1], [0], [0], [1], [0, 0, 1, 1], [], []>} : vector<64x16xbf16>, vector<16x128xbf16>, vector<64x128xf32> -> vector<64x128xf32>
    %106 = arith.addf %104, %105 : vector<64x128xf32>
    %107 = vector.broadcast %5 : vector<1x128xf32> to vector<64x128xf32>
    %108 = arith.addf %106, %107 : vector<64x128xf32>
    %cst_32 = arith.constant 0.000000e+00 : f32
    %109 = vector.broadcast %cst_32 : f32 to vector<64x128xf32>
    %110 = arith.cmpf ogt, %108, %109 : vector<64x128xf32>
    %cst_33 = arith.constant 0.000000e+00 : f32
    %111 = vector.broadcast %cst_33 : f32 to vector<64x128xf32>
    %112 = arith.minimumf %108, %111 : vector<64x128xf32>
    %113 = math.exp %112 : vector<64x128xf32>
    %cst_34 = arith.constant 1.000000e+00 : f32
    %114 = vector.broadcast %cst_34 : f32 to vector<64x128xf32>
    %115 = arith.subf %113, %114 : vector<64x128xf32>
    %116 = arith.select %110, %108, %115 : vector<64x128xi1>, vector<64x128xf32>
    %c0_35 = arith.constant 0 : index
    %c0_36 = arith.constant 0 : index
    %117 = vector.load %arg8[%c0_35, %c0_36] : memref<128x128xbf16, #tpu.memory_space<vmem>>, vector<128x128xbf16>
    %c0_37 = arith.constant 0 : index
    %c0_38 = arith.constant 0 : index
    %118 = vector.load %arg9[%c0_37, %c0_38] : memref<128x4xbf16, #tpu.memory_space<vmem>>, vector<128x4xbf16>
    %c0_39 = arith.constant 0 : index
    %c0_40 = arith.constant 0 : index
    %119 = vector.load %arg10[%c0_39, %c0_40] : memref<128x4xbf16, #tpu.memory_space<vmem>>, vector<128x4xbf16>
    %c0_41 = arith.constant 0 : index
    %c0_42 = arith.constant 0 : index
    %120 = vector.load %arg11[%c0_41, %c0_42] : memref<1x128xf32, #tpu.memory_space<vmem>>, vector<1x128xf32>
    %121 = arith.truncf %116 : vector<64x128xf32> to vector<64x128xbf16>
    %cst_43 = arith.constant dense<0.000000e+00> : vector<64x128xf32>
    %122 = tpu.matmul %121, %117, %cst_43 {dimension_numbers = #tpu.dot_dimension_numbers<[1], [0], [0], [1], [0, 0, 1, 1], [], []>} : vector<64x128xbf16>, vector<128x128xbf16>, vector<64x128xf32> -> vector<64x128xf32>
    %123 = arith.truncf %122 : vector<64x128xf32> to vector<64x128xbf16>
    %cst_44 = arith.constant dense<0.000000e+00> : vector<64x4xf32>
    %124 = tpu.matmul %123, %118, %cst_44 {dimension_numbers = #tpu.dot_dimension_numbers<[1], [0], [0], [1], [0, 0, 1, 1], [], []>} : vector<64x128xbf16>, vector<128x4xbf16>, vector<64x4xf32> -> vector<64x4xf32>
    %cst_45 = arith.constant dense<0.000000e+00> : vector<64x4xf32>
    %125 = tpu.matmul %123, %119, %cst_45 {dimension_numbers = #tpu.dot_dimension_numbers<[1], [0], [0], [1], [0, 0, 1, 1], [], []>} : vector<64x128xbf16>, vector<128x4xbf16>, vector<64x4xf32> -> vector<64x4xf32>
    %126 = vector.extract_strided_slice %125 {offsets = [0, 0], sizes = [64, 1], strides = [1, 1]} : vector<64x4xf32> to vector<64x1xf32>
    %127 = vector.extract_strided_slice %124 {offsets = [0, 0], sizes = [64, 1], strides = [1, 1]} : vector<64x4xf32> to vector<64x1xf32>
    %128 = tpu.transpose %127, [1, 0] : vector<64x1xf32> -> vector<1x64xf32>
    %129 = vector.broadcast %126 : vector<64x1xf32> to vector<64x64xf32>
    %130 = vector.broadcast %128 : vector<1x64xf32> to vector<64x64xf32>
    %131 = arith.addf %129, %130 : vector<64x64xf32>
    %cst_46 = arith.constant 2.000000e-01 : f32
    %132 = vector.broadcast %cst_46 : f32 to vector<64x64xf32>
    %133 = arith.mulf %132, %131 : vector<64x64xf32>
    %134 = arith.maximumf %131, %133 : vector<64x64xf32>
    %135 = arith.addf %134, %0 : vector<64x64xf32>
    %cst_47 = arith.constant dense<0xFF800000> : vector<64xf32>
    %136 = vector.multi_reduction <maximumf>, %135, %cst_47 [1] : vector<64x64xf32> to vector<64xf32>
    %137 = vector.shape_cast %136 : vector<64xf32> to vector<64x1xf32>
    %138 = vector.broadcast %137 : vector<64x1xf32> to vector<64x64xf32>
    %139 = arith.subf %135, %138 : vector<64x64xf32>
    %140 = math.exp %139 : vector<64x64xf32>
    %cst_48 = arith.constant dense<0.000000e+00> : vector<64xf32>
    %141 = vector.multi_reduction <add>, %140, %cst_48 [1] : vector<64x64xf32> to vector<64xf32>
    %142 = vector.shape_cast %141 : vector<64xf32> to vector<64x1xf32>
    %143 = arith.truncf %140 : vector<64x64xf32> to vector<64x64xbf16>
    %144 = vector.extract_strided_slice %123 {offsets = [0, 0], sizes = [64, 32], strides = [1, 1]} : vector<64x128xbf16> to vector<64x32xbf16>
    %cst_49 = arith.constant dense<0.000000e+00> : vector<64x32xf32>
    %145 = tpu.matmul %143, %144, %cst_49 {dimension_numbers = #tpu.dot_dimension_numbers<[1], [0], [0], [1], [0, 0, 1, 1], [], []>} : vector<64x64xbf16>, vector<64x32xbf16>, vector<64x32xf32> -> vector<64x32xf32>
    %146 = tpu.reciprocal %142 {approx = true} : vector<64x1xf32> -> vector<64x1xf32>
    %147 = vector.broadcast %146 : vector<64x1xf32> to vector<64x32xf32>
    %148 = arith.mulf %145, %147 : vector<64x32xf32>
    %149 = vector.extract_strided_slice %125 {offsets = [0, 1], sizes = [64, 1], strides = [1, 1]} : vector<64x4xf32> to vector<64x1xf32>
    %150 = vector.extract_strided_slice %124 {offsets = [0, 1], sizes = [64, 1], strides = [1, 1]} : vector<64x4xf32> to vector<64x1xf32>
    %151 = tpu.transpose %150, [1, 0] : vector<64x1xf32> -> vector<1x64xf32>
    %152 = vector.broadcast %149 : vector<64x1xf32> to vector<64x64xf32>
    %153 = vector.broadcast %151 : vector<1x64xf32> to vector<64x64xf32>
    %154 = arith.addf %152, %153 : vector<64x64xf32>
    %cst_50 = arith.constant 2.000000e-01 : f32
    %155 = vector.broadcast %cst_50 : f32 to vector<64x64xf32>
    %156 = arith.mulf %155, %154 : vector<64x64xf32>
    %157 = arith.maximumf %154, %156 : vector<64x64xf32>
    %158 = arith.addf %157, %0 : vector<64x64xf32>
    %cst_51 = arith.constant dense<0xFF800000> : vector<64xf32>
    %159 = vector.multi_reduction <maximumf>, %158, %cst_51 [1] : vector<64x64xf32> to vector<64xf32>
    %160 = vector.shape_cast %159 : vector<64xf32> to vector<64x1xf32>
    %161 = vector.broadcast %160 : vector<64x1xf32> to vector<64x64xf32>
    %162 = arith.subf %158, %161 : vector<64x64xf32>
    %163 = math.exp %162 : vector<64x64xf32>
    %cst_52 = arith.constant dense<0.000000e+00> : vector<64xf32>
    %164 = vector.multi_reduction <add>, %163, %cst_52 [1] : vector<64x64xf32> to vector<64xf32>
    %165 = vector.shape_cast %164 : vector<64xf32> to vector<64x1xf32>
    %166 = arith.truncf %163 : vector<64x64xf32> to vector<64x64xbf16>
    %167 = vector.extract_strided_slice %123 {offsets = [0, 32], sizes = [64, 32], strides = [1, 1]} : vector<64x128xbf16> to vector<64x32xbf16>
    %cst_53 = arith.constant dense<0.000000e+00> : vector<64x32xf32>
    %168 = tpu.matmul %166, %167, %cst_53 {dimension_numbers = #tpu.dot_dimension_numbers<[1], [0], [0], [1], [0, 0, 1, 1], [], []>} : vector<64x64xbf16>, vector<64x32xbf16>, vector<64x32xf32> -> vector<64x32xf32>
    %169 = tpu.reciprocal %165 {approx = true} : vector<64x1xf32> -> vector<64x1xf32>
    %170 = vector.broadcast %169 : vector<64x1xf32> to vector<64x32xf32>
    %171 = arith.mulf %168, %170 : vector<64x32xf32>
    %172 = vector.extract_strided_slice %125 {offsets = [0, 2], sizes = [64, 1], strides = [1, 1]} : vector<64x4xf32> to vector<64x1xf32>
    %173 = vector.extract_strided_slice %124 {offsets = [0, 2], sizes = [64, 1], strides = [1, 1]} : vector<64x4xf32> to vector<64x1xf32>
    %174 = tpu.transpose %173, [1, 0] : vector<64x1xf32> -> vector<1x64xf32>
    %175 = vector.broadcast %172 : vector<64x1xf32> to vector<64x64xf32>
    %176 = vector.broadcast %174 : vector<1x64xf32> to vector<64x64xf32>
    %177 = arith.addf %175, %176 : vector<64x64xf32>
    %cst_54 = arith.constant 2.000000e-01 : f32
    %178 = vector.broadcast %cst_54 : f32 to vector<64x64xf32>
    %179 = arith.mulf %178, %177 : vector<64x64xf32>
    %180 = arith.maximumf %177, %179 : vector<64x64xf32>
    %181 = arith.addf %180, %0 : vector<64x64xf32>
    %cst_55 = arith.constant dense<0xFF800000> : vector<64xf32>
    %182 = vector.multi_reduction <maximumf>, %181, %cst_55 [1] : vector<64x64xf32> to vector<64xf32>
    %183 = vector.shape_cast %182 : vector<64xf32> to vector<64x1xf32>
    %184 = vector.broadcast %183 : vector<64x1xf32> to vector<64x64xf32>
    %185 = arith.subf %181, %184 : vector<64x64xf32>
    %186 = math.exp %185 : vector<64x64xf32>
    %cst_56 = arith.constant dense<0.000000e+00> : vector<64xf32>
    %187 = vector.multi_reduction <add>, %186, %cst_56 [1] : vector<64x64xf32> to vector<64xf32>
    %188 = vector.shape_cast %187 : vector<64xf32> to vector<64x1xf32>
    %189 = arith.truncf %186 : vector<64x64xf32> to vector<64x64xbf16>
    %190 = vector.extract_strided_slice %123 {offsets = [0, 64], sizes = [64, 32], strides = [1, 1]} : vector<64x128xbf16> to vector<64x32xbf16>
    %cst_57 = arith.constant dense<0.000000e+00> : vector<64x32xf32>
    %191 = tpu.matmul %189, %190, %cst_57 {dimension_numbers = #tpu.dot_dimension_numbers<[1], [0], [0], [1], [0, 0, 1, 1], [], []>} : vector<64x64xbf16>, vector<64x32xbf16>, vector<64x32xf32> -> vector<64x32xf32>
    %192 = tpu.reciprocal %188 {approx = true} : vector<64x1xf32> -> vector<64x1xf32>
    %193 = vector.broadcast %192 : vector<64x1xf32> to vector<64x32xf32>
    %194 = arith.mulf %191, %193 : vector<64x32xf32>
    %195 = vector.extract_strided_slice %125 {offsets = [0, 3], sizes = [64, 1], strides = [1, 1]} : vector<64x4xf32> to vector<64x1xf32>
    %196 = vector.extract_strided_slice %124 {offsets = [0, 3], sizes = [64, 1], strides = [1, 1]} : vector<64x4xf32> to vector<64x1xf32>
    %197 = tpu.transpose %196, [1, 0] : vector<64x1xf32> -> vector<1x64xf32>
    %198 = vector.broadcast %195 : vector<64x1xf32> to vector<64x64xf32>
    %199 = vector.broadcast %197 : vector<1x64xf32> to vector<64x64xf32>
    %200 = arith.addf %198, %199 : vector<64x64xf32>
    %cst_58 = arith.constant 2.000000e-01 : f32
    %201 = vector.broadcast %cst_58 : f32 to vector<64x64xf32>
    %202 = arith.mulf %201, %200 : vector<64x64xf32>
    %203 = arith.maximumf %200, %202 : vector<64x64xf32>
    %204 = arith.addf %203, %0 : vector<64x64xf32>
    %cst_59 = arith.constant dense<0xFF800000> : vector<64xf32>
    %205 = vector.multi_reduction <maximumf>, %204, %cst_59 [1] : vector<64x64xf32> to vector<64xf32>
    %206 = vector.shape_cast %205 : vector<64xf32> to vector<64x1xf32>
    %207 = vector.broadcast %206 : vector<64x1xf32> to vector<64x64xf32>
    %208 = arith.subf %204, %207 : vector<64x64xf32>
    %209 = math.exp %208 : vector<64x64xf32>
    %cst_60 = arith.constant dense<0.000000e+00> : vector<64xf32>
    %210 = vector.multi_reduction <add>, %209, %cst_60 [1] : vector<64x64xf32> to vector<64xf32>
    %211 = vector.shape_cast %210 : vector<64xf32> to vector<64x1xf32>
    %212 = arith.truncf %209 : vector<64x64xf32> to vector<64x64xbf16>
    %213 = vector.extract_strided_slice %123 {offsets = [0, 96], sizes = [64, 32], strides = [1, 1]} : vector<64x128xbf16> to vector<64x32xbf16>
    %cst_61 = arith.constant dense<0.000000e+00> : vector<64x32xf32>
    %214 = tpu.matmul %212, %213, %cst_61 {dimension_numbers = #tpu.dot_dimension_numbers<[1], [0], [0], [1], [0, 0, 1, 1], [], []>} : vector<64x64xbf16>, vector<64x32xbf16>, vector<64x32xf32> -> vector<64x32xf32>
    %215 = tpu.reciprocal %211 {approx = true} : vector<64x1xf32> -> vector<64x1xf32>
    %216 = vector.broadcast %215 : vector<64x1xf32> to vector<64x32xf32>
    %217 = arith.mulf %214, %216 : vector<64x32xf32>
    %218 = tpu.concatenate %148, %171, %194, %217 in 1 : vector<64x32xf32>, vector<64x32xf32>, vector<64x32xf32>, vector<64x32xf32> -> vector<64x128xf32>
    %219 = arith.addf %218, %116 : vector<64x128xf32>
    %220 = vector.broadcast %120 : vector<1x128xf32> to vector<64x128xf32>
    %221 = arith.addf %219, %220 : vector<64x128xf32>
    %222 = vector.extract_strided_slice %221 {offsets = [0, 0], sizes = [64, 32], strides = [1, 1]} : vector<64x128xf32> to vector<64x32xf32>
    %223 = vector.extract_strided_slice %221 {offsets = [0, 32], sizes = [64, 32], strides = [1, 1]} : vector<64x128xf32> to vector<64x32xf32>
    %224 = arith.addf %222, %223 : vector<64x32xf32>
    %225 = vector.extract_strided_slice %221 {offsets = [0, 64], sizes = [64, 32], strides = [1, 1]} : vector<64x128xf32> to vector<64x32xf32>
    %226 = arith.addf %224, %225 : vector<64x32xf32>
    %227 = vector.extract_strided_slice %221 {offsets = [0, 96], sizes = [64, 32], strides = [1, 1]} : vector<64x128xf32> to vector<64x32xf32>
    %228 = arith.addf %226, %227 : vector<64x32xf32>
    %cst_62 = arith.constant 2.500000e-01 : f32
    %229 = vector.broadcast %cst_62 : f32 to vector<64x32xf32>
    %230 = arith.mulf %228, %229 : vector<64x32xf32>
    %c0_63 = arith.constant 0 : index
    %c0_64 = arith.constant 0 : index
    %231 = vector.load %arg12[%c0_63, %c0_64] : memref<64x32xf32, #tpu.memory_space<vmem>>, vector<64x32xf32>
    tpu.vector_store %arg12[%c0_63, %c0_64], %230 {strides = array<i32>} : memref<64x32xf32, #tpu.memory_space<vmem>>, vector<64x32xf32>,
    return
  }
  func.func @transform_0(%arg0: i32) -> (i32, i32) {
    %c0_i32 = arith.constant 0 : i32
    %c0_i32_0 = arith.constant 0 : i32
    %c0_i32_1 = arith.constant 0 : i32
    return %c0_i32, %c0_i32_0 : i32, i32
  }
  func.func @transform_1(%arg0: i32) -> (i32, i32) {
    %c0_i32 = arith.constant 0 : i32
    %c0_i32_0 = arith.constant 0 : i32
    %c0_i32_1 = arith.constant 0 : i32
    return %c0_i32, %c0_i32_0 : i32, i32
  }
  func.func @transform_2(%arg0: i32) -> (i32, i32) {
    %c0_i32 = arith.constant 0 : i32
    %c0_i32_0 = arith.constant 0 : i32
    %c0_i32_1 = arith.constant 0 : i32
    return %c0_i32, %c0_i32_0 : i32, i32
  }
  func.func @transform_3(%arg0: i32) -> (i32, i32) {
    %c0_i32 = arith.constant 0 : i32
    %c0_i32_0 = arith.constant 0 : i32
    %c0_i32_1 = arith.constant 0 : i32
    return %c0_i32, %c0_i32_0 : i32, i32
  }
  func.func @transform_4(%arg0: i32) -> (i32, i32) {
    %c0_i32 = arith.constant 0 : i32
    %c0_i32_0 = arith.constant 0 : i32
    %c0_i32_1 = arith.constant 0 : i32
    return %c0_i32, %c0_i32_0 : i32, i32
  }
  func.func @transform_5(%arg0: i32) -> (i32, i32) {
    %c0_i32 = arith.constant 0 : i32
    %c0_i32_0 = arith.constant 0 : i32
    %c0_i32_1 = arith.constant 0 : i32
    return %c0_i32, %c0_i32_0 : i32, i32
  }
  func.func @transform_6(%arg0: i32) -> (i32, i32) {
    %c0_i32 = arith.constant 0 : i32
    %c0_i32_0 = arith.constant 0 : i32
    %c0_i32_1 = arith.constant 0 : i32
    return %c0_i32, %c0_i32_0 : i32, i32
  }
  func.func @transform_7(%arg0: i32) -> (i32, i32) {
    %c0_i32 = arith.constant 0 : i32
    %c0_i32_0 = arith.constant 0 : i32
    %c0_i32_1 = arith.constant 0 : i32
    return %c0_i32, %c0_i32_0 : i32, i32
  }
  func.func @transform_8(%arg0: i32) -> (i32, i32) {
    %c0_i32 = arith.constant 0 : i32
    %c0_i32_0 = arith.constant 0 : i32
    %c0_i32_1 = arith.constant 0 : i32
    return %c0_i32, %c0_i32_0 : i32, i32
  }
  func.func @transform_9(%arg0: i32) -> (i32, i32) {
    %c0_i32 = arith.constant 0 : i32
    %c0_i32_0 = arith.constant 0 : i32
    %c0_i32_1 = arith.constant 0 : i32
    return %c0_i32, %c0_i32_0 : i32, i32
  }
  func.func @transform_10(%arg0: i32) -> (i32, i32) {
    %c0_i32 = arith.constant 0 : i32
    %c0_i32_0 = arith.constant 0 : i32
    %c0_i32_1 = arith.constant 0 : i32
    return %c0_i32, %c0_i32_0 : i32, i32
  }
  func.func @transform_11(%arg0: i32) -> (i32, i32) {
    %c0_i32 = arith.constant 0 : i32
    %c0_i32_0 = arith.constant 0 : i32
    %c0_i32_1 = arith.constant 0 : i32
    return %c0_i32, %c0_i32_0 : i32, i32
  }
}

</mosaic_0001>

<llo_original>
// kernel: tpu_custom_call.1
$region0: #{tpu_custom_call.1}
  #allocation0 [shape = 'u32[]', space=smem, size = 0x4, offset = 0x4, fixed_abs, tag = 'smem constant byte address 0x4 - core index']
  #allocation1 [shape = 'u32[144,128]{1,0:T(1,128)}', space=vmem, size = 0x12000, scoped, tag = 'internal scratch']
  %s0 = inlined_call_operand.hbm [shape: f32[64,16], index: 0, kind: input, shape index: {}]
  %s1 = inlined_call_operand.hbm [shape: f32[64,64], index: 1, kind: input, shape index: {}]
  %s2 = inlined_call_operand.hbm [shape: bf16[16,128], index: 2, kind: input, shape index: {}]
  %s3 = inlined_call_operand.hbm [shape: bf16[128,4], index: 3, kind: input, shape index: {}]
  %s4 = inlined_call_operand.hbm [shape: bf16[128,4], index: 4, kind: input, shape index: {}]
  %s5 = inlined_call_operand.hbm [shape: f32[1,128], index: 5, kind: input, shape index: {}]
  %s6 = inlined_call_operand.hbm [shape: bf16[16,128], index: 6, kind: input, shape index: {}]
  %s7 = inlined_call_operand.hbm [shape: bf16[128,128], index: 7, kind: input, shape index: {}]
  %s8 = inlined_call_operand.hbm [shape: bf16[128,4], index: 8, kind: input, shape index: {}]
  %s9 = inlined_call_operand.hbm [shape: bf16[128,4], index: 9, kind: input, shape index: {}]
  %s10 = inlined_call_operand.hbm [shape: f32[1,128], index: 10, kind: input, shape index: {}]
  %s11 = inlined_call_operand.hbm [shape: f32[64,32], index: 11, kind: output, shape index: {}]
  %s12 = sld [smem:[#allocation0]]
  $region98: #{tpu_custom_call.1} parent=0
    _
  %s14 = ssub.s32 1, %s12
  %s15 = scalar_select 0, %s14, %s12
  $region1: #{tpu_custom_call.1} parent=0
    #allocation2 [shape = 'u8[32768]{0}', space=vmem, size = 0x8000, scoped, tag = 'input window, operand 0, single buffered']
    #allocation3 [shape = 's32[1]{0}', space=sflag, size = 0x4, scoped, tag = 'scoped memory for tpu_custom_call.1']
    #allocation4 [shape = 's32[1]{0}', space=sflag, size = 0x4, scoped, tag = 'scoped memory for tpu_custom_call.1']
    #allocation5 [shape = 'u8[32768]{0}', space=vmem, size = 0x8000, scoped, tag = 'input window, operand 1, single buffered']
    #allocation6 [shape = 's32[1]{0}', space=sflag, size = 0x4, scoped, tag = 'scoped memory for tpu_custom_call.1']
    #allocation7 [shape = 'u8[4096]{0}', space=vmem, size = 0x1000, scoped, tag = 'input window, operand 2, single buffered']
    #allocation8 [shape = 'u8[32768]{0}', space=vmem, size = 0x8000, scoped, tag = 'input window, operand 3, single buffered']
    #allocation9 [shape = 's32[1]{0}', space=sflag, size = 0x4, scoped, tag = 'scoped memory for tpu_custom_call.1']
    #allocation10 [shape = 'u8[32768]{0}', space=vmem, size = 0x8000, scoped, tag = 'input window, operand 4, single buffered']
    #allocation11 [shape = 'u8[512]{0}', space=vmem, size = 0x400, scoped, tag = 'input window, operand 5, single buffered']
    #allocation12 [shape = 's32[1]{0}', space=sflag, size = 0x4, scoped, tag = 'scoped memory for tpu_custom_call.1']
    #allocation13 [shape = 'u8[4096]{0}', space=vmem, size = 0x1000, scoped, tag = 'input window, operand 6, single buffered']
    #allocation14 [shape = 'u8[32768]{0}', space=vmem, size = 0x8000, scoped, tag = 'input window, operand 7, single buffered']
    #allocation15 [shape = 's32[1]{0}', space=sflag, size = 0x4, scoped, tag = 'scoped memory for tpu_custom_call.1']
    #allocation16 [shape = 'u8[32768]{0}', space=vmem, size = 0x8000, scoped, tag = 'input window, operand 8, single buffered']
    #allocation17 [shape = 'u8[32768]{0}', space=vmem, size = 0x8000, scoped, tag = 'input window, operand 9, single buffered']
    #allocation18 [shape = 's32[1]{0}', space=sflag, size = 0x4, scoped, tag = 'scoped memory for tpu_custom_call.1']
    #allocation19 [shape = 'u8[512]{0}', space=vmem, size = 0x400, scoped, tag = 'input window, operand 10, single buffered']
    #allocation20 [shape = 'u8[32768]{0}', space=vmem, size = 0x8000, scoped, tag = 'output window, operand 0, single buffered']
    %16 = vsyncpa [#allocation3], 0
    %17 = vsyncpa [#allocation6], 0
    %18 = vsyncpa [#allocation9], 0
    %19 = vsyncpa [#allocation12], 0
    %20 = vsyncpa [#allocation15], 0
    %21 = vsyncpa [#allocation18], 0
    %22 = vsyncpa [#allocation4], 0
    // Predicated region
    $region2: #{tpu_custom_call.1} parent=1 // pred_check
      _
    $region3: #{tpu_custom_call.1} parent=1 // pred_check_branch
      %24 = sbr.rel (0) target = $region5
    $region4: #{tpu_custom_call.1} parent=1 // pred_region
      %s26 = ssub.s32 1024, 1024
      %27 = vsyncadd [#allocation3], %s26
      %s28 = sshll.u32 [#allocation2], 4
      %s29 = int_to_ptr.vmem [resolvable:$true] %s28
      %34 = dma.hbm_to_vmem [thread:$0]  %s0, 1024, %s29, [#allocation3], 128, 128, 8
    $region5: #{tpu_custom_call.1} parent=1 // pred_fallthru
      _
    // Predicated region
    $region6: #{tpu_custom_call.1} parent=1 // pred_check
      _
    $region7: #{tpu_custom_call.1} parent=1 // pred_check_branch
      %36 = sbr.rel (0) target = $region9
    $region8: #{tpu_custom_call.1} parent=1 // pred_region
      %s38 = ssub.s32 1024, 1024
      %39 = vsyncadd [#allocation6], %s38
      %s40 = sshll.u32 [#allocation5], 4
      %s41 = int_to_ptr.vmem [resolvable:$true] %s40
      %46 = dma.hbm_to_vmem [thread:$0]  %s1, 1024, %s41, [#allocation6], 128, 128, 8
    $region9: #{tpu_custom_call.1} parent=1 // pred_fallthru
      _
    // Predicated region
    $region10: #{tpu_custom_call.1} parent=1 // pred_check
      _
    $region11: #{tpu_custom_call.1} parent=1 // pred_check_branch
      %48 = sbr.rel (0) target = $region13
    $region12: #{tpu_custom_call.1} parent=1 // pred_region
      %s50 = ssub.s32 128, 128
      %51 = vsyncadd [#allocation6], %s50
      %s52 = sshll.u32 [#allocation7], 4
      %s53 = int_to_ptr.vmem [resolvable:$true] %s52
      %58 = dma.hbm_to_vmem [thread:$0]  %s2, 128, %s53, [#allocation6], 64, 64, 4
    $region13: #{tpu_custom_call.1} parent=1 // pred_fallthru
      _
    // Predicated region
    $region14: #{tpu_custom_call.1} parent=1 // pred_check
      _
    $region15: #{tpu_custom_call.1} parent=1 // pred_check_branch
      %60 = sbr.rel (0) target = $region17
    $region16: #{tpu_custom_call.1} parent=1 // pred_region
      %s62 = ssub.s32 1024, 1024
      %63 = vsyncadd [#allocation9], %s62
      %s64 = sshll.u32 [#allocation8], 4
      %s65 = int_to_ptr.vmem [resolvable:$true] %s64
      %70 = dma.hbm_to_vmem [thread:$0]  %s3, 1024, %s65, [#allocation9], 64, 64, 4
    $region17: #{tpu_custom_call.1} parent=1 // pred_fallthru
      _
    // Predicated region
    $region18: #{tpu_custom_call.1} parent=1 // pred_check
      _
    $region19: #{tpu_custom_call.1} parent=1 // pred_check_branch
      %72 = sbr.rel (0) target = $region21
    $region20: #{tpu_custom_call.1} parent=1 // pred_region
      %s74 = ssub.s32 1024, 1024
      %75 = vsyncadd [#allocation9], %s74
      %s76 = sshll.u32 [#allocation10], 4
      %s77 = int_to_ptr.vmem [resolvable:$true] %s76
      %82 = dma.hbm_to_vmem [thread:$0]  %s4, 1024, %s77, [#allocation9], 64, 64, 4
    $region21: #{tpu_custom_call.1} parent=1 // pred_fallthru
      _
    // Predicated region
    $region22: #{tpu_custom_call.1} parent=1 // pred_check
      _
    $region23: #{tpu_custom_call.1} parent=1 // pred_check_branch
      %84 = sbr.rel (0) target = $region25
    $region24: #{tpu_custom_call.1} parent=1 // pred_region
      %s86 = ssub.s32 16, 16
      %87 = vsyncadd [#allocation12], %s86
      %s89 = sshll.u32 [#allocation11], 4
      %s90 = int_to_ptr.vmem [resolvable:$true] %s89
      %92 = dma.hbm_to_vmem [thread:$0]  %s5, 16, %s90, [#allocation12]
    $region25: #{tpu_custom_call.1} parent=1 // pred_fallthru
      _
    // Predicated region
    $region26: #{tpu_custom_call.1} parent=1 // pred_check
      _
    $region27: #{tpu_custom_call.1} parent=1 // pred_check_branch
      %94 = sbr.rel (0) target = $region29
    $region28: #{tpu_custom_call.1} parent=1 // pred_region
      %s96 = ssub.s32 128, 128
      %97 = vsyncadd [#allocation12], %s96
      %s98 = sshll.u32 [#allocation13], 4
      %s99 = int_to_ptr.vmem [resolvable:$true] %s98
      %104 = dma.hbm_to_vmem [thread:$0]  %s6, 128, %s99, [#allocation12], 64, 64, 4
    $region29: #{tpu_custom_call.1} parent=1 // pred_fallthru
      _
    // Predicated region
    $region30: #{tpu_custom_call.1} parent=1 // pred_check
      _
    $region31: #{tpu_custom_call.1} parent=1 // pred_check_branch
      %106 = sbr.rel (0) target = $region33
    $region32: #{tpu_custom_call.1} parent=1 // pred_region
      %s108 = ssub.s32 1024, 1024
      %109 = vsyncadd [#allocation15], %s108
      %s110 = sshll.u32 [#allocation14], 4
      %s111 = int_to_ptr.vmem [resolvable:$true] %s110
      %116 = dma.hbm_to_vmem [thread:$0]  %s7, 1024, %s111, [#allocation15], 64, 64, 4
    $region33: #{tpu_custom_call.1} parent=1 // pred_fallthru
      _
    // Predicated region
    $region34: #{tpu_custom_call.1} parent=1 // pred_check
      _
    $region35: #{tpu_custom_call.1} parent=1 // pred_check_branch
      %118 = sbr.rel (0) target = $region37
    $region36: #{tpu_custom_call.1} parent=1 // pred_region
      %s120 = ssub.s32 1024, 1024
      %121 = vsyncadd [#allocation15], %s120
      %s122 = sshll.u32 [#allocation16], 4
      %s123 = int_to_ptr.vmem [resolvable:$true] %s122
      %128 = dma.hbm_to_vmem [thread:$0]  %s8, 1024, %s123, [#allocation15], 64, 64, 4
    $region37: #{tpu_custom_call.1} parent=1 // pred_fallthru
      _
    // Predicated region
    $region38: #{tpu_custom_call.1} parent=1 // pred_check
      _
    $region39: #{tpu_custom_call.1} parent=1 // pred_check_branch
      %130 = sbr.rel (0) target = $region41
    $region40: #{tpu_custom_call.1} parent=1 // pred_region
      %s132 = ssub.s32 1024, 1024
      %133 = vsyncadd [#allocation18], %s132
      %s134 = sshll.u32 [#allocation17], 4
      %s135 = int_to_ptr.vmem [resolvable:$true] %s134
      %140 = dma.hbm_to_vmem [thread:$0]  %s9, 1024, %s135, [#allocation18], 64, 64, 4
    $region41: #{tpu_custom_call.1} parent=1 // pred_fallthru
      _
    // Predicated region
    $region42: #{tpu_custom_call.1} parent=1 // pred_check
      _
    $region43: #{tpu_custom_call.1} parent=1 // pred_check_branch
      %142 = sbr.rel (0) target = $region45
    $region44: #{tpu_custom_call.1} parent=1 // pred_region
      %s144 = ssub.s32 16, 16
      %145 = vsyncadd [#allocation18], %s144
      %s147 = sshll.u32 [#allocation19], 4
      %s148 = int_to_ptr.vmem [resolvable:$true] %s147
      %150 = dma.hbm_to_vmem [thread:$0]  %s10, 16, %s148, [#allocation18]
    $region45: #{tpu_custom_call.1} parent=1 // pred_fallthru
      _
    // Predicated region
    $region46: #{tpu_custom_call.1} parent=1 // pred_check
      _
    $region47: #{tpu_custom_call.1} parent=1 // pred_check_branch
      %152 = sbr.rel (0) target = $region49
    $region48: #{tpu_custom_call.1} parent=1 // pred_region
      %153 = dma.done [#allocation3], 1024
    $region49: #{tpu_custom_call.1} parent=1 // pred_fallthru
      _
    // Predicated region
    $region50: #{tpu_custom_call.1} parent=1 // pred_check
      _
    $region51: #{tpu_custom_call.1} parent=1 // pred_check_branch
      %155 = sbr.rel (0) target = $region53
    $region52: #{tpu_custom_call.1} parent=1 // pred_region
      %156 = dma.done [#allocation6], 1024
    $region53: #{tpu_custom_call.1} parent=1 // pred_fallthru
      _
    // Predicated region
    $region54: #{tpu_custom_call.1} parent=1 // pred_check
      _
    $region55: #{tpu_custom_call.1} parent=1 // pred_check_branch
      %158 = sbr.rel (0) target = $region57
    $region56: #{tpu_custom_call.1} parent=1 // pred_region
      %159 = dma.done [#allocation6], 128
    $region57: #{tpu_custom_call.1} parent=1 // pred_fallthru
      _
    // Predicated region
    $region58: #{tpu_custom_call.1} parent=1 // pred_check
      _
    $region59: #{tpu_custom_call.1} parent=1 // pred_check_branch
      %161 = sbr.rel (0) target = $region61
    $region60: #{tpu_custom_call.1} parent=1 // pred_region
      %162 = dma.done [#allocation9], 1024
    $region61: #{tpu_custom_call.1} parent=1 // pred_fallthru
      _
    // Predicated region
    $region62: #{tpu_custom_call.1} parent=1 // pred_check
      _
    $region63: #{tpu_custom_call.1} parent=1 // pred_check_branch
      %164 = sbr.rel (0) target = $region65
    $region64: #{tpu_custom_call.1} parent=1 // pred_region
      %165 = dma.done [#allocation9], 1024
    $region65: #{tpu_custom_call.1} parent=1 // pred_fallthru
      _
    // Predicated region
    $region66: #{tpu_custom_call.1} parent=1 // pred_check
      _
    $region67: #{tpu_custom_call.1} parent=1 // pred_check_branch
      %167 = sbr.rel (0) target = $region69
    $region68: #{tpu_custom_call.1} parent=1 // pred_region
      %168 = dma.done [#allocation12], 16
    $region69: #{tpu_custom_call.1} parent=1 // pred_fallthru
      _
    // Predicated region
    $region70: #{tpu_custom_call.1} parent=1 // pred_check
      _
    $region71: #{tpu_custom_call.1} parent=1 // pred_check_branch
      %170 = sbr.rel (0) target = $region73
    $region72: #{tpu_custom_call.1} parent=1 // pred_region
      %171 = dma.done [#allocation12], 128
    $region73: #{tpu_custom_call.1} parent=1 // pred_fallthru
      _
    // Predicated region
    $region74: #{tpu_custom_call.1} parent=1 // pred_check
      _
    $region75: #{tpu_custom_call.1} parent=1 // pred_check_branch
      %173 = sbr.rel (0) target = $region77
    $region76: #{tpu_custom_call.1} parent=1 // pred_region
      %174 = dma.done [#allocation15], 1024
    $region77: #{tpu_custom_call.1} parent=1 // pred_fallthru
      _
    // Predicated region
    $region78: #{tpu_custom_call.1} parent=1 // pred_check
      _
    $region79: #{tpu_custom_call.1} parent=1 // pred_check_branch
      %176 = sbr.rel (0) target = $region81
    $region80: #{tpu_custom_call.1} parent=1 // pred_region
      %177 = dma.done [#allocation15], 1024
    $region81: #{tpu_custom_call.1} parent=1 // pred_fallthru
      _
    // Predicated region
    $region82: #{tpu_custom_call.1} parent=1 // pred_check
      _
    $region83: #{tpu_custom_call.1} parent=1 // pred_check_branch
      %179 = sbr.rel (0) target = $region85
    $region84: #{tpu_custom_call.1} parent=1 // pred_region
      %180 = dma.done [#allocation18], 1024
    $region85: #{tpu_custom_call.1} parent=1 // pred_fallthru
      _
    // Predicated region
    $region86: #{tpu_custom_call.1} parent=1 // pred_check
      _
    $region87: #{tpu_custom_call.1} parent=1 // pred_check_branch
      %182 = sbr.rel (0) target = $region89
    $region88: #{tpu_custom_call.1} parent=1 // pred_region
      %183 = dma.done [#allocation18], 16
    $region89: #{tpu_custom_call.1} parent=1 // pred_fallthru
      _
    %v185 = vld [vmem:[#allocation5] sm:$0xff]
    %v186 = vld [vmem:[#allocation5 + $0x8] sm:$0xff]
    %v187 = vld [vmem:[#allocation5 + $0x10] sm:$0xff]
    %v188 = vld [vmem:[#allocation5 + $0x18] sm:$0xff]
    %v189 = vld [vmem:[#allocation5 + $0x20] sm:$0xff]
    %v190 = vld [vmem:[#allocation5 + $0x28] sm:$0xff]
    %v191 = vld [vmem:[#allocation5 + $0x30] sm:$0xff]
    %v192 = vld [vmem:[#allocation5 + $0x38] sm:$0xff]
    %v193 = vld [vmem:[#allocation2] sm:$0xff]
    %v194 = vld [vmem:[#allocation2 + $0x8] sm:$0xff]
    %v195 = vld [vmem:[#allocation2 + $0x10] sm:$0xff]
    %v196 = vld [vmem:[#allocation2 + $0x18] sm:$0xff]
    %v197 = vld [vmem:[#allocation2 + $0x20] sm:$0xff]
    %v198 = vld [vmem:[#allocation2 + $0x28] sm:$0xff]
    %v199 = vld [vmem:[#allocation2 + $0x30] sm:$0xff]
    %v200 = vld [vmem:[#allocation2 + $0x38] sm:$0xff]
    %v201 = vld [vmem:[#allocation7] sm:$0xf]
    %v202 = vld [vmem:[#allocation7 + $0x4] sm:$0xf]
    %v203 = vld [vmem:[#allocation8] sm:$0xf]
    %v204 = vld [vmem:[#allocation8 + $0x4] sm:$0xf]
    %v205 = vld [vmem:[#allocation8 + $0x8] sm:$0xf]
    %v206 = vld [vmem:[#allocation8 + $0xc] sm:$0xf]
    %v207 = vld [vmem:[#allocation8 + $0x10] sm:$0xf]
    %v208 = vld [vmem:[#allocation8 + $0x14] sm:$0xf]
    %v209 = vld [vmem:[#allocation8 + $0x18] sm:$0xf]
    %v210 = vld [vmem:[#allocation8 + $0x1c] sm:$0xf]
    %v211 = vld [vmem:[#allocation8 + $0x20] sm:$0xf]
    %v212 = vld [vmem:[#allocation8 + $0x24] sm:$0xf]
    %v213 = vld [vmem:[#allocation8 + $0x28] sm:$0xf]
    %v214 = vld [vmem:[#allocation8 + $0x2c] sm:$0xf]
    %v215 = vld [vmem:[#allocation8 + $0x30] sm:$0xf]
    %v216 = vld [vmem:[#allocation8 + $0x34] sm:$0xf]
    %v217 = vld [vmem:[#allocation8 + $0x38] sm:$0xf]
    %v218 = vld [vmem:[#allocation8 + $0x3c] sm:$0xf]
    %v219 = vld [vmem:[#allocation10] sm:$0xf]
    %v220 = vld [vmem:[#allocation10 + $0x4] sm:$0xf]
    %v221 = vld [vmem:[#allocation10 + $0x8] sm:$0xf]
    %v222 = vld [vmem:[#allocation10 + $0xc] sm:$0xf]
    %v223 = vld [vmem:[#allocation10 + $0x10] sm:$0xf]
    %v224 = vld [vmem:[#allocation10 + $0x14] sm:$0xf]
    %v225 = vld [vmem:[#allocation10 + $0x18] sm:$0xf]
    %v226 = vld [vmem:[#allocation10 + $0x1c] sm:$0xf]
    %v227 = vld [vmem:[#allocation10 + $0x20] sm:$0xf]
    %v228 = vld [vmem:[#allocation10 + $0x24] sm:$0xf]
    %v229 = vld [vmem:[#allocation10 + $0x28] sm:$0xf]
    %v230 = vld [vmem:[#allocation10 + $0x2c] sm:$0xf]
    %v231 = vld [vmem:[#allocation10 + $0x30] sm:$0xf]
    %v232 = vld [vmem:[#allocation10 + $0x34] sm:$0xf]
    %v233 = vld [vmem:[#allocation10 + $0x38] sm:$0xf]
    %v234 = vld [vmem:[#allocation10 + $0x3c] sm:$0xf]
    %v235 = vld [vmem:[#allocation11] sm:$0x1]
    %v236 = vld [vmem:[#allocation13] sm:$0xf]
    %v237 = vld [vmem:[#allocation13 + $0x4] sm:$0xf]
    %v238 = vpack.c.bf16 %v194, %v193
    %v239 = vpack.c.bf16 %v196, %v195
    %v240 = vpack.c.bf16 %v198, %v197
    %v241 = vpack.c.bf16 %v200, %v199
    %v244 = vunpack.c.l.b16 %v201
    %v245 = vunpack.c.l.b16 %v202
    %v246 = vpack.c.b16 %v245, %v244
    %vm248 = vcmask 130048
    %v250 = vsel %vm248, %v238, 0
    %v253 = vsel %vm248, %v239, 0
    %v256 = vsel %vm248, %v240, 0
    %v259 = vsel %vm248, %v241, 0
    %261 = vmatprep.subr.bf16.mxu0 0
    %262 = vmatpush1.bf16.msra.mxu0 %v246
    %263 = vmatprep.subr.bf16.mxu0 0
    %264 = vmatpush1.bf16.msra.mxu0 0
    %265 = vmatprep.subr.bf16.mxu0 0
    %266 = vmatpush1.bf16.msra.mxu0 0
    %267 = vmatprep.subr.bf16.mxu0 0
    %268 = vmatpush1.bf16.msra.mxu0 0
    %269 = vmatprep.subr.bf16.mxu0 0
    %270 = vmatpush1.bf16.msra.mxu0 0
    %271 = vmatprep.subr.bf16.mxu0 0
    %272 = vmatpush1.bf16.msra.mxu0 0
    %273 = vmatprep.subr.bf16.mxu0 0
    %274 = vmatpush1.bf16.msra.mxu0 0
    %275 = vmatprep.subr.bf16.mxu0 0
    %276 = vmatpush1.bf16.msra.mxu0 0
    %277 = vmatprep.subr.bf16.mxu0 0
    %278 = vmatpush1.bf16.msra.mxu0 0
    %279 = vmatprep.subr.bf16.mxu0 0
    %280 = vmatpush1.bf16.msra.mxu0 0
    %281 = vmatprep.subr.bf16.mxu0 0
    %282 = vmatpush1.bf16.msra.mxu0 0
    %283 = vmatprep.subr.bf16.mxu0 0
    %284 = vmatpush1.bf16.msra.mxu0 0
    %285 = vmatprep.subr.bf16.mxu0 0
    %286 = vmatpush1.bf16.msra.mxu0 0
    %287 = vmatprep.subr.bf16.mxu0 0
    %288 = vmatpush1.bf16.msra.mxu0 0
    %289 = vmatprep.subr.bf16.mxu0 0
    %290 = vmatpush1.bf16.msra.mxu0 0
    %291 = vmatprep.subr.bf16.mxu0 0
    %292 = vmatpush1.bf16.msra.mxu0 0
    %293 = vmatprep.mubr.bf16.mxu0 0
    %294 = vmatmul.mubr.bf16.gmra.mrb[0].mxu0 %v250
    %v295 = vpop.f32.mrb[0].mxu0
    %v296 = vadd.f32 0.0, %v295
    %v297 = vpop.f32.mrb[0].mxu0
    %v298 = vpop.f32.mrb[0].mxu0
    %v299 = vadd.f32 0.0, %v298
    %v300 = vpop.f32.mrb[0].mxu0
    %301 = vmatprep.mubr.bf16.mxu0 0
    %302 = vmatmul.mubr.bf16.gmra.mrb[0].mxu0 %v253
    %v303 = vpop.f32.mrb[0].mxu0
    %v304 = vadd.f32 0.0, %v303
    %v305 = vpop.f32.mrb[0].mxu0
    %v306 = vpop.f32.mrb[0].mxu0
    %v307 = vadd.f32 0.0, %v306
    %v308 = vpop.f32.mrb[0].mxu0
    %309 = vmatprep.mubr.bf16.mxu0 0
    %310 = vmatmul.mubr.bf16.gmra.mrb[0].mxu0 %v256
    %v311 = vpop.f32.mrb[0].mxu0
    %v312 = vadd.f32 0.0, %v311
    %v313 = vpop.f32.mrb[0].mxu0
    %v314 = vpop.f32.mrb[0].mxu0
    %v315 = vadd.f32 0.0, %v314
    %v316 = vpop.f32.mrb[0].mxu0
    %317 = vmatprep.mubr.bf16.mxu0 0
    %318 = vmatmul.mubr.bf16.gmra.mrb[0].mxu0 %v259
    %v319 = vpop.f32.mrb[0].mxu0
    %v320 = vadd.f32 0.0, %v319
    %v321 = vpop.f32.mrb[0].mxu0
    %v322 = vpop.f32.mrb[0].mxu0
    %v323 = vadd.f32 0.0, %v322
    %v324 = vpop.f32.mrb[0].mxu0
    %325 = vdwg.mxu0
    %v326 = vpack.c.bf16 %v299, %v296
    %v327 = vpack.c.bf16 %v307, %v304
    %v328 = vpack.c.bf16 %v315, %v312
    %v329 = vpack.c.bf16 %v323, %v320
    %v346 = vunpack.c.l.b16 %v203
    %v347 = vunpack.c.l.b16 %v204
    %v348 = vunpack.c.l.b16 %v205
    %v349 = vunpack.c.l.b16 %v206
    %v350 = vunpack.c.l.b16 %v207
    %v351 = vunpack.c.l.b16 %v208
    %v352 = vunpack.c.l.b16 %v209
    %v353 = vunpack.c.l.b16 %v210
    %v354 = vunpack.c.l.b16 %v211
    %v355 = vunpack.c.l.b16 %v212
    %v356 = vunpack.c.l.b16 %v213
    %v357 = vunpack.c.l.b16 %v214
    %v358 = vunpack.c.l.b16 %v215
    %v359 = vunpack.c.l.b16 %v216
    %v360 = vunpack.c.l.b16 %v217
    %v361 = vunpack.c.l.b16 %v218
    %v362 = vpack.c.b16 %v347, %v346
    %v363 = vpack.c.b16 %v349, %v348
    %v364 = vpack.c.b16 %v351, %v350
    %v365 = vpack.c.b16 %v353, %v352
    %v366 = vpack.c.b16 %v355, %v354
    %v367 = vpack.c.b16 %v357, %v356
    %v368 = vpack.c.b16 %v359, %v358
    %v369 = vpack.c.b16 %v361, %v360
    %378 = vmatprep.subr.bf16.mxu0 0
    %379 = vmatpush1.bf16.msra.mxu0 %v362
    %380 = vmatprep.subr.bf16.mxu0 0
    %381 = vmatpush1.bf16.msra.mxu0 %v363
    %382 = vmatprep.subr.bf16.mxu0 0
    %383 = vmatpush1.bf16.msra.mxu0 %v364
    %384 = vmatprep.subr.bf16.mxu0 0
    %385 = vmatpush1.bf16.msra.mxu0 %v365
    %386 = vmatprep.subr.bf16.mxu0 0
    %387 = vmatpush1.bf16.msra.mxu0 %v366
    %388 = vmatprep.subr.bf16.mxu0 0
    %389 = vmatpush1.bf16.msra.mxu0 %v367
    %390 = vmatprep.subr.bf16.mxu0 0
    %391 = vmatpush1.bf16.msra.mxu0 %v368
    %392 = vmatprep.subr.bf16.mxu0 0
    %393 = vmatpush1.bf16.msra.mxu0 %v369
    %394 = vmatprep.subr.bf16.mxu0 0
    %395 = vmatpush1.bf16.msra.mxu0 0
    %396 = vmatprep.subr.bf16.mxu0 0
    %397 = vmatpush1.bf16.msra.mxu0 0
    %398 = vmatprep.subr.bf16.mxu0 0
    %399 = vmatpush1.bf16.msra.mxu0 0
    %400 = vmatprep.subr.bf16.mxu0 0
    %401 = vmatpush1.bf16.msra.mxu0 0
    %402 = vmatprep.subr.bf16.mxu0 0
    %403 = vmatpush1.bf16.msra.mxu0 0
    %404 = vmatprep.subr.bf16.mxu0 0
    %405 = vmatpush1.bf16.msra.mxu0 0
    %406 = vmatprep.subr.bf16.mxu0 0
    %407 = vmatpush1.bf16.msra.mxu0 0
    %408 = vmatprep.subr.bf16.mxu0 0
    %409 = vmatpush1.bf16.msra.mxu0 0
    %410 = vmatprep.mubr.bf16.mxu0 0
    %411 = vmatmul.mubr.bf16.gmra.mrb[0].mxu0 %v326
    %v412 = vpop.f32.mrb[0].mxu0
    %v413 = vadd.f32 0.0, %v412
    %v414 = vpop.f32.mrb[0].mxu0
    %v415 = vpop.f32.mrb[0].mxu0
    %v416 = vadd.f32 0.0, %v415
    %v417 = vpop.f32.mrb[0].mxu0
    %418 = vmatprep.mubr.bf16.mxu0 0
    %419 = vmatmul.mubr.bf16.gmra.mrb[0].mxu0 %v327
    %v420 = vpop.f32.mrb[0].mxu0
    %v421 = vadd.f32 0.0, %v420
    %v422 = vpop.f32.mrb[0].mxu0
    %v423 = vpop.f32.mrb[0].mxu0
    %v424 = vadd.f32 0.0, %v423
    %v425 = vpop.f32.mrb[0].mxu0
    %426 = vmatprep.mubr.bf16.mxu0 0
    %427 = vmatmul.mubr.bf16.gmra.mrb[0].mxu0 %v328
    %v428 = vpop.f32.mrb[0].mxu0
    %v429 = vadd.f32 0.0, %v428
    %v430 = vpop.f32.mrb[0].mxu0
    %v431 = vpop.f32.mrb[0].mxu0
    %v432 = vadd.f32 0.0, %v431
    %v433 = vpop.f32.mrb[0].mxu0
    %434 = vmatprep.mubr.bf16.mxu0 0
    %435 = vmatmul.mubr.bf16.gmra.mrb[0].mxu0 %v329
    %v436 = vpop.f32.mrb[0].mxu0
    %v437 = vadd.f32 0.0, %v436
    %v438 = vpop.f32.mrb[0].mxu0
    %v439 = vpop.f32.mrb[0].mxu0
    %v440 = vadd.f32 0.0, %v439
    %v441 = vpop.f32.mrb[0].mxu0
    %442 = vdwg.mxu0
    %v459 = vunpack.c.l.b16 %v219
    %v460 = vunpack.c.l.b16 %v220
    %v461 = vunpack.c.l.b16 %v221
    %v462 = vunpack.c.l.b16 %v222
    %v463 = vunpack.c.l.b16 %v223
    %v464 = vunpack.c.l.b16 %v224
    %v465 = vunpack.c.l.b16 %v225
    %v466 = vunpack.c.l.b16 %v226
    %v467 = vunpack.c.l.b16 %v227
    %v468 = vunpack.c.l.b16 %v228
    %v469 = vunpack.c.l.b16 %v229
    %v470 = vunpack.c.l.b16 %v230
    %v471 = vunpack.c.l.b16 %v231
    %v472 = vunpack.c.l.b16 %v232
    %v473 = vunpack.c.l.b16 %v233
    %v474 = vunpack.c.l.b16 %v234
    %v475 = vpack.c.b16 %v460, %v459
    %v476 = vpack.c.b16 %v462, %v461
    %v477 = vpack.c.b16 %v464, %v463
    %v478 = vpack.c.b16 %v466, %v465
    %v479 = vpack.c.b16 %v468, %v467
    %v480 = vpack.c.b16 %v470, %v469
    %v481 = vpack.c.b16 %v472, %v471
    %v482 = vpack.c.b16 %v474, %v473
    %491 = vmatprep.subr.bf16.mxu0 0
    %492 = vmatpush1.bf16.msra.mxu0 %v475
    %493 = vmatprep.subr.bf16.mxu0 0
    %494 = vmatpush1.bf16.msra.mxu0 %v476
    %495 = vmatprep.subr.bf16.mxu0 0
    %496 = vmatpush1.bf16.msra.mxu0 %v477
    %497 = vmatprep.subr.bf16.mxu0 0
    %498 = vmatpush1.bf16.msra.mxu0 %v478
    %499 = vmatprep.subr.bf16.mxu0 0
    %500 = vmatpush1.bf16.msra.mxu0 %v479
    %501 = vmatprep.subr.bf16.mxu0 0
    %502 = vmatpush1.bf16.msra.mxu0 %v480
    %503 = vmatprep.subr.bf16.mxu0 0
    %504 = vmatpush1.bf16.msra.mxu0 %v481
    %505 = vmatprep.subr.bf16.mxu0 0
    %506 = vmatpush1.bf16.msra.mxu0 %v482
    %507 = vmatprep.subr.bf16.mxu0 0
    %508 = vmatpush1.bf16.msra.mxu0 0
    %509 = vmatprep.subr.bf16.mxu0 0
    %510 = vmatpush1.bf16.msra.mxu0 0
    %511 = vmatprep.subr.bf16.mxu0 0
    %512 = vmatpush1.bf16.msra.mxu0 0
    %513 = vmatprep.subr.bf16.mxu0 0
    %514 = vmatpush1.bf16.msra.mxu0 0
    %515 = vmatprep.subr.bf16.mxu0 0
    %516 = vmatpush1.bf16.msra.mxu0 0
    %517 = vmatprep.subr.bf16.mxu0 0
    %518 = vmatpush1.bf16.msra.mxu0 0
    %519 = vmatprep.subr.bf16.mxu0 0
    %520 = vmatpush1.bf16.msra.mxu0 0
    %521 = vmatprep.subr.bf16.mxu0 0
    %522 = vmatpush1.bf16.msra.mxu0 0
    %523 = vmatprep.mubr.bf16.mxu0 0
    %524 = vmatmul.mubr.bf16.gmra.mrb[0].mxu0 %v326
    %v525 = vpop.f32.mrb[0].mxu0
    %v526 = vadd.f32 0.0, %v525
    %v527 = vpop.f32.mrb[0].mxu0
    %v528 = vpop.f32.mrb[0].mxu0
    %v529 = vadd.f32 0.0, %v528
    %v530 = vpop.f32.mrb[0].mxu0
    %531 = vmatprep.mubr.bf16.mxu0 0
    %532 = vmatmul.mubr.bf16.gmra.mrb[0].mxu0 %v327
    %v533 = vpop.f32.mrb[0].mxu0
    %v534 = vadd.f32 0.0, %v533
    %v535 = vpop.f32.mrb[0].mxu0
    %v536 = vpop.f32.mrb[0].mxu0
    %v537 = vadd.f32 0.0, %v536
    %v538 = vpop.f32.mrb[0].mxu0
    %539 = vmatprep.mubr.bf16.mxu0 0
    %540 = vmatmul.mubr.bf16.gmra.mrb[0].mxu0 %v328
    %v541 = vpop.f32.mrb[0].mxu0
    %v542 = vadd.f32 0.0, %v541
    %v543 = vpop.f32.mrb[0].mxu0
    %v544 = vpop.f32.mrb[0].mxu0
    %v545 = vadd.f32 0.0, %v544
    %v546 = vpop.f32.mrb[0].mxu0
    %547 = vmatprep.mubr.bf16.mxu0 0
    %548 = vmatmul.mubr.bf16.gmra.mrb[0].mxu0 %v329
    %v549 = vpop.f32.mrb[0].mxu0
    %v550 = vadd.f32 0.0, %v549
    %v551 = vpop.f32.mrb[0].mxu0
    %v552 = vpop.f32.mrb[0].mxu0
    %v553 = vadd.f32 0.0, %v552
    %v554 = vpop.f32.mrb[0].mxu0
    %555 = vdwg.mxu0
    %556 = vxpose.xlu0.b32.start [1/16] %v413, 128
    %557 = vxpose.xlu0.b32.cont [2/16] %v416, 128
    %558 = vxpose.xlu0.b32.cont [3/16] %v421, 128
    %559 = vxpose.xlu0.b32.cont [4/16] %v424, 128
    %560 = vxpose.xlu0.b32.cont [5/16] %v429, 128
    %561 = vxpose.xlu0.b32.cont [6/16] %v432, 128
    %562 = vxpose.xlu0.b32.cont [7/16] %v437, 128
    %563 = vxpose.xlu0.b32.cont [8/16] %v440, 128
    %564 = vxpose.xlu0.b32.cont [9/16] 0.0, 128
    %565 = vxpose.xlu0.b32.cont [10/16] 0.0, 128
    %566 = vxpose.xlu0.b32.cont [11/16] 0.0, 128
    %567 = vxpose.xlu0.b32.cont [12/16] 0.0, 128
    %568 = vxpose.xlu0.b32.cont [13/16] 0.0, 128
    %569 = vxpose.xlu0.b32.cont [14/16] 0.0, 128
    %570 = vxpose.xlu0.b32.cont [15/16] 0.0, 128
    %571 = vxpose.xlu0.b32.end [16/16] 0.0, 128
    %v572 = vpop.trf.xlu0
    %v573 = vpop.trf.xlu0
    %v574 = vpop.trf.xlu0
    %v575 = vpop.trf.xlu0
    %v576 = vpop.trf.xlu0
    %v577 = vpop.trf.xlu0
    %v578 = vpop.trf.xlu0
    %v579 = vpop.trf.xlu0
    %v580 = vpop.trf.xlu0
    %v581 = vpop.trf.xlu0
    %v582 = vpop.trf.xlu0
    %v583 = vpop.trf.xlu0
    %v584 = vpop.trf.xlu0
    %v585 = vpop.trf.xlu0
    %v586 = vpop.trf.xlu0
    %v587 = vpop.trf.xlu0
    %589 = vset.pattern.permute.xlu0 0
    %590 = vperm.xlu0 %589, %v526
    %v591 = vpop.permute.xlu0 %590
    %594 = vset.pattern.permute.xlu0 0
    %595 = vperm.xlu0 %594, %v529
    %v596 = vpop.permute.xlu0 %595
    %599 = vset.pattern.permute.xlu0 0
    %600 = vperm.xlu0 %599, %v534
    %v601 = vpop.permute.xlu0 %600
    %604 = vset.pattern.permute.xlu0 0
    %605 = vperm.xlu0 %604, %v537
    %v606 = vpop.permute.xlu0 %605
    %609 = vset.pattern.permute.xlu0 0
    %610 = vperm.xlu0 %609, %v542
    %v611 = vpop.permute.xlu0 %610
    %614 = vset.pattern.permute.xlu0 0
    %615 = vperm.xlu0 %614, %v545
    %v616 = vpop.permute.xlu0 %615
    %619 = vset.pattern.permute.xlu0 0
    %620 = vperm.xlu0 %619, %v550
    %v621 = vpop.permute.xlu0 %620
    %624 = vset.pattern.permute.xlu0 0
    %625 = vperm.xlu0 %624, %v553
    %v626 = vpop.permute.xlu0 %625
    %v628 = vlaneseq
    %v629 = vshrl.u32 %v628, 7
    %v630 = vsub.s32 0, %v629
    %v631 = vrot.slane %v572, %v630
    %v632 = vadd.f32 %v591, %v631
    %v633 = vadd.f32 %v596, %v631
    %v634 = vadd.f32 %v601, %v631
    %v635 = vadd.f32 %v606, %v631
    %v636 = vadd.f32 %v611, %v631
    %v637 = vadd.f32 %v616, %v631
    %v638 = vadd.f32 %v621, %v631
    %v639 = vadd.f32 %v626, %v631
    %v640 = vmul.f32 %v632, 0.2
    %v641 = vmul.f32 %v633, 0.2
    %v642 = vmul.f32 %v634, 0.2
    %v643 = vmul.f32 %v635, 0.2
    %v644 = vmul.f32 %v636, 0.2
    %v645 = vmul.f32 %v637, 0.2
    %v646 = vmul.f32 %v638, 0.2
    %v647 = vmul.f32 %v639, 0.2
    %v648 = vmax.f32 %v632, %v640
    %v649 = vmax.f32 %v633, %v641
    %v650 = vmax.f32 %v634, %v642
    %v651 = vmax.f32 %v635, %v643
    %v652 = vmax.f32 %v636, %v644
    %v653 = vmax.f32 %v637, %v645
    %v654 = vmax.f32 %v638, %v646
    %v655 = vmax.f32 %v639, %v647
    %v656 = vadd.f32 %v648, %v185
    %v657 = vadd.f32 %v649, %v186
    %v658 = vadd.f32 %v650, %v187
    %v659 = vadd.f32 %v651, %v188
    %v660 = vadd.f32 %v652, %v189
    %v661 = vadd.f32 %v653, %v190
    %v662 = vadd.f32 %v654, %v191
    %v663 = vadd.f32 %v655, %v192
    %vm664 = vcmask 523264
    %v665 = vsel %vm664, %v656, -inf
    %666 = vmax.xlane.f32.xlu0 %v665
    %v667 = vpop.xlane.xlu0 %666
    %v668 = vsel %vm664, %v657, -inf
    %669 = vmax.xlane.f32.xlu0 %v668
    %v670 = vpop.xlane.xlu0 %669
    %v671 = vsel %vm664, %v658, -inf
    %672 = vmax.xlane.f32.xlu0 %v671
    %v673 = vpop.xlane.xlu0 %672
    %v674 = vsel %vm664, %v659, -inf
    %675 = vmax.xlane.f32.xlu0 %v674
    %v676 = vpop.xlane.xlu0 %675
    %v677 = vsel %vm664, %v660, -inf
    %678 = vmax.xlane.f32.xlu0 %v677
    %v679 = vpop.xlane.xlu0 %678
    %v680 = vsel %vm664, %v661, -inf
    %681 = vmax.xlane.f32.xlu0 %v680
    %v682 = vpop.xlane.xlu0 %681
    %v683 = vsel %vm664, %v662, -inf
    %684 = vmax.xlane.f32.xlu0 %v683
    %v685 = vpop.xlane.xlu0 %684
    %v686 = vsel %vm664, %v663, -inf
    %687 = vmax.xlane.f32.xlu0 %v686
    %v688 = vpop.xlane.xlu0 %687
    %v689 = vsub.f32 %v656, %v667
    %v690 = vsub.f32 %v657, %v670
    %v691 = vsub.f32 %v658, %v673
    %v692 = vsub.f32 %v659, %v676
    %v693 = vsub.f32 %v660, %v679
    %v694 = vsub.f32 %v661, %v682
    %v695 = vsub.f32 %v662, %v685
    %v696 = vsub.f32 %v663, %v688
    %v697 = vmul.f32 %v689, 1.442695
    %v698 = vpow.pop %v697
    %v699 = vmul.f32 %v690, 1.442695
    %v700 = vpow.pop %v699
    %v701 = vmul.f32 %v691, 1.442695
    %v702 = vpow.pop %v701
    %v703 = vmul.f32 %v692, 1.442695
    %v704 = vpow.pop %v703
    %v705 = vmul.f32 %v693, 1.442695
    %v706 = vpow.pop %v705
    %v707 = vmul.f32 %v694, 1.442695
    %v708 = vpow.pop %v707
    %v709 = vmul.f32 %v695, 1.442695
    %v710 = vpow.pop %v709
    %v711 = vmul.f32 %v696, 1.442695
    %v712 = vpow.pop %v711
    %v713 = vsel %vm664, %v698, 0.0
    %714 = vadd.xlane.f32.xlu0 %v713
    %v715 = vpop.xlane.xlu0 %714
    %v716 = vsel %vm664, %v700, 0.0
    %717 = vadd.xlane.f32.xlu0 %v716
    %v718 = vpop.xlane.xlu0 %717
    %v719 = vsel %vm664, %v702, 0.0
    %720 = vadd.xlane.f32.xlu0 %v719
    %v721 = vpop.xlane.xlu0 %720
    %v722 = vsel %vm664, %v704, 0.0
    %723 = vadd.xlane.f32.xlu0 %v722
    %v724 = vpop.xlane.xlu0 %723
    %v725 = vsel %vm664, %v706, 0.0
    %726 = vadd.xlane.f32.xlu0 %v725
    %v727 = vpop.xlane.xlu0 %726
    %v728 = vsel %vm664, %v708, 0.0
    %729 = vadd.xlane.f32.xlu0 %v728
    %v730 = vpop.xlane.xlu0 %729
    %v731 = vsel %vm664, %v710, 0.0
    %732 = vadd.xlane.f32.xlu0 %v731
    %v733 = vpop.xlane.xlu0 %732
    %v734 = vsel %vm664, %v712, 0.0
    %735 = vadd.xlane.f32.xlu0 %v734
    %v736 = vpop.xlane.xlu0 %735
    %v737 = vpack.c.bf16 %v700, %v698
    %v738 = vpack.c.bf16 %v704, %v702
    %v739 = vpack.c.bf16 %v708, %v706
    %v740 = vpack.c.bf16 %v712, %v710
    %v742 = vsel %vm664, %v737, 0
    %v745 = vsel %vm664, %v738, 0
    %v748 = vsel %vm664, %v739, 0
    %v751 = vsel %vm664, %v740, 0
    %753 = vmatprep.subr.bf16.mxu0 0
    %754 = vmatpush1.bf16.msra.mxu0 %v326
    %755 = vmatprep.subr.bf16.mxu0 0
    %756 = vmatpush1.bf16.msra.mxu0 %v327
    %757 = vmatprep.subr.bf16.mxu0 0
    %758 = vmatpush1.bf16.msra.mxu0 %v328
    %759 = vmatprep.subr.bf16.mxu0 0
    %760 = vmatpush1.bf16.msra.mxu0 %v329
    %761 = vmatprep.subr.bf16.mxu0 0
    %762 = vmatpush1.bf16.msra.mxu0 0
    %763 = vmatprep.subr.bf16.mxu0 0
    %764 = vmatpush1.bf16.msra.mxu0 0
    %765 = vmatprep.subr.bf16.mxu0 0
    %766 = vmatpush1.bf16.msra.mxu0 0
    %767 = vmatprep.subr.bf16.mxu0 0
    %768 = vmatpush1.bf16.msra.mxu0 0
    %769 = vmatprep.subr.bf16.mxu0 0
    %770 = vmatpush1.bf16.msra.mxu0 0
    %771 = vmatprep.subr.bf16.mxu0 0
    %772 = vmatpush1.bf16.msra.mxu0 0
    %773 = vmatprep.subr.bf16.mxu0 0
    %774 = vmatpush1.bf16.msra.mxu0 0
    %775 = vmatprep.subr.bf16.mxu0 0
    %776 = vmatpush1.bf16.msra.mxu0 0
    %777 = vmatprep.subr.bf16.mxu0 0
    %778 = vmatpush1.bf16.msra.mxu0 0
    %779 = vmatprep.subr.bf16.mxu0 0
    %780 = vmatpush1.bf16.msra.mxu0 0
    %781 = vmatprep.subr.bf16.mxu0 0
    %782 = vmatpush1.bf16.msra.mxu0 0
    %783 = vmatprep.subr.bf16.mxu0 0
    %784 = vmatpush1.bf16.msra.mxu0 0
    %785 = vmatprep.mubr.bf16.mxu0 0
    %786 = vmatmul.mubr.bf16.gmra.mrb[0].mxu0 %v742
    %v787 = vpop.f32.mrb[0].mxu0
    %v788 = vadd.f32 0.0, %v787
    %v789 = vpop.f32.mrb[0].mxu0
    %v790 = vpop.f32.mrb[0].mxu0
    %v791 = vadd.f32 0.0, %v790
    %v792 = vpop.f32.mrb[0].mxu0
    %793 = vmatprep.mubr.bf16.mxu0 0
    %794 = vmatmul.mubr.bf16.gmra.mrb[0].mxu0 %v745
    %v795 = vpop.f32.mrb[0].mxu0
    %v796 = vadd.f32 0.0, %v795
    %v797 = vpop.f32.mrb[0].mxu0
    %v798 = vpop.f32.mrb[0].mxu0
    %v799 = vadd.f32 0.0, %v798
    %v800 = vpop.f32.mrb[0].mxu0
    %801 = vmatprep.mubr.bf16.mxu0 0
    %802 = vmatmul.mubr.bf16.gmra.mrb[0].mxu0 %v748
    %v803 = vpop.f32.mrb[0].mxu0
    %v804 = vadd.f32 0.0, %v803
    %v805 = vpop.f32.mrb[0].mxu0
    %v806 = vpop.f32.mrb[0].mxu0
    %v807 = vadd.f32 0.0, %v806
    %v808 = vpop.f32.mrb[0].mxu0
    %809 = vmatprep.mubr.bf16.mxu0 0
    %810 = vmatmul.mubr.bf16.gmra.mrb[0].mxu0 %v751
    %v811 = vpop.f32.mrb[0].mxu0
    %v812 = vadd.f32 0.0, %v811
    %v813 = vpop.f32.mrb[0].mxu0
    %v814 = vpop.f32.mrb[0].mxu0
    %v815 = vadd.f32 0.0, %v814
    %v816 = vpop.f32.mrb[0].mxu0
    %817 = vdwg.mxu0
    %v818 = vrcp.pop %v715
    %v819 = vrcp.pop %v718
    %v820 = vrcp.pop %v721
    %v821 = vrcp.pop %v724
    %v822 = vrcp.pop %v727
    %v823 = vrcp.pop %v730
    %v824 = vrcp.pop %v733
    %v825 = vrcp.pop %v736
    %v826 = vmul.f32 %v788, %v818
    %v827 = vmul.f32 %v791, %v819
    %v828 = vmul.f32 %v796, %v820
    %v829 = vmul.f32 %v799, %v821
    %v830 = vmul.f32 %v804, %v822
    %v831 = vmul.f32 %v807, %v823
    %v832 = vmul.f32 %v812, %v824
    %v833 = vmul.f32 %v815, %v825
    %842 = vrot.lane.b32.xlu0 %v413, 127
    %v843 = vpop.permute.xlu0 %842
    %844 = vrot.lane.b32.xlu0 %v416, 127
    %v845 = vpop.permute.xlu0 %844
    %846 = vrot.lane.b32.xlu0 %v421, 127
    %v847 = vpop.permute.xlu0 %846
    %848 = vrot.lane.b32.xlu0 %v424, 127
    %v849 = vpop.permute.xlu0 %848
    %850 = vrot.lane.b32.xlu0 %v429, 127
    %v851 = vpop.permute.xlu0 %850
    %852 = vrot.lane.b32.xlu0 %v432, 127
    %v853 = vpop.permute.xlu0 %852
    %854 = vrot.lane.b32.xlu0 %v437, 127
    %v855 = vpop.permute.xlu0 %854
    %856 = vrot.lane.b32.xlu0 %v440, 127
    %v857 = vpop.permute.xlu0 %856
    %866 = vxpose.xlu0.b32.start [1/16] %v843, 128
    %867 = vxpose.xlu0.b32.cont [2/16] %v845, 128
    %868 = vxpose.xlu0.b32.cont [3/16] %v847, 128
    %869 = vxpose.xlu0.b32.cont [4/16] %v849, 128
    %870 = vxpose.xlu0.b32.cont [5/16] %v851, 128
    %871 = vxpose.xlu0.b32.cont [6/16] %v853, 128
    %872 = vxpose.xlu0.b32.cont [7/16] %v855, 128
    %873 = vxpose.xlu0.b32.cont [8/16] %v857, 128
    %874 = vxpose.xlu0.b32.cont [9/16] 0.0, 128
    %875 = vxpose.xlu0.b32.cont [10/16] 0.0, 128
    %876 = vxpose.xlu0.b32.cont [11/16] 0.0, 128
    %877 = vxpose.xlu0.b32.cont [12/16] 0.0, 128
    %878 = vxpose.xlu0.b32.cont [13/16] 0.0, 128
    %879 = vxpose.xlu0.b32.cont [14/16] 0.0, 128
    %880 = vxpose.xlu0.b32.cont [15/16] 0.0, 128
    %881 = vxpose.xlu0.b32.end [16/16] 0.0, 128
    %v882 = vpop.trf.xlu0
    %v883 = vpop.trf.xlu0
    %v884 = vpop.trf.xlu0
    %v885 = vpop.trf.xlu0
    %v886 = vpop.trf.xlu0
    %v887 = vpop.trf.xlu0
    %v888 = vpop.trf.xlu0
    %v889 = vpop.trf.xlu0
    %v890 = vpop.trf.xlu0
    %v891 = vpop.trf.xlu0
    %v892 = vpop.trf.xlu0
    %v893 = vpop.trf.xlu0
    %v894 = vpop.trf.xlu0
    %v895 = vpop.trf.xlu0
    %v896 = vpop.trf.xlu0
    %v897 = vpop.trf.xlu0
    %898 = vset.pattern.permute.xlu0 1
    %899 = vperm.xlu0 %898, %v526
    %v900 = vpop.permute.xlu0 %899
    %902 = vset.pattern.permute.xlu0 1
    %903 = vperm.xlu0 %902, %v529
    %v904 = vpop.permute.xlu0 %903
    %906 = vset.pattern.permute.xlu0 1
    %907 = vperm.xlu0 %906, %v534
    %v908 = vpop.permute.xlu0 %907
    %910 = vset.pattern.permute.xlu0 1
    %911 = vperm.xlu0 %910, %v537
    %v912 = vpop.permute.xlu0 %911
    %914 = vset.pattern.permute.xlu0 1
    %915 = vperm.xlu0 %914, %v542
    %v916 = vpop.permute.xlu0 %915
    %918 = vset.pattern.permute.xlu0 1
    %919 = vperm.xlu0 %918, %v545
    %v920 = vpop.permute.xlu0 %919
    %922 = vset.pattern.permute.xlu0 1
    %923 = vperm.xlu0 %922, %v550
    %v924 = vpop.permute.xlu0 %923
    %926 = vset.pattern.permute.xlu0 1
    %927 = vperm.xlu0 %926, %v553
    %v928 = vpop.permute.xlu0 %927
    %v930 = vlaneseq
    %v931 = vshrl.u32 %v930, 7
    %v932 = vsub.s32 0, %v931
    %v933 = vrot.slane %v882, %v932
    %v934 = vadd.f32 %v900, %v933
    %v935 = vadd.f32 %v904, %v933
    %v936 = vadd.f32 %v908, %v933
    %v937 = vadd.f32 %v912, %v933
    %v938 = vadd.f32 %v916, %v933
    %v939 = vadd.f32 %v920, %v933
    %v940 = vadd.f32 %v924, %v933
    %v941 = vadd.f32 %v928, %v933
    %v942 = vmul.f32 %v934, 0.2
    %v943 = vmul.f32 %v935, 0.2
    %v944 = vmul.f32 %v936, 0.2
    %v945 = vmul.f32 %v937, 0.2
    %v946 = vmul.f32 %v938, 0.2
    %v947 = vmul.f32 %v939, 0.2
    %v948 = vmul.f32 %v940, 0.2
    %v949 = vmul.f32 %v941, 0.2
    %v950 = vmax.f32 %v934, %v942
    %v951 = vmax.f32 %v935, %v943
    %v952 = vmax.f32 %v936, %v944
    %v953 = vmax.f32 %v937, %v945
    %v954 = vmax.f32 %v938, %v946
    %v955 = vmax.f32 %v939, %v947
    %v956 = vmax.f32 %v940, %v948
    %v957 = vmax.f32 %v941, %v949
    %v958 = vadd.f32 %v950, %v185
    %v959 = vadd.f32 %v951, %v186
    %v960 = vadd.f32 %v952, %v187
    %v961 = vadd.f32 %v953, %v188
    %v962 = vadd.f32 %v954, %v189
    %v963 = vadd.f32 %v955, %v190
    %v964 = vadd.f32 %v956, %v191
    %v965 = vadd.f32 %v957, %v192
    %v966 = vsel %vm664, %v958, -inf
    %967 = vmax.xlane.f32.xlu0 %v966
    %v968 = vpop.xlane.xlu0 %967
    %v969 = vsel %vm664, %v959, -inf
    %970 = vmax.xlane.f32.xlu0 %v969
    %v971 = vpop.xlane.xlu0 %970
    %v972 = vsel %vm664, %v960, -inf
    %973 = vmax.xlane.f32.xlu0 %v972
    %v974 = vpop.xlane.xlu0 %973
    %v975 = vsel %vm664, %v961, -inf
    %976 = vmax.xlane.f32.xlu0 %v975
    %v977 = vpop.xlane.xlu0 %976
    %v978 = vsel %vm664, %v962, -inf
    %979 = vmax.xlane.f32.xlu0 %v978
    %v980 = vpop.xlane.xlu0 %979
    %v981 = vsel %vm664, %v963, -inf
    %982 = vmax.xlane.f32.xlu0 %v981
    %v983 = vpop.xlane.xlu0 %982
    %v984 = vsel %vm664, %v964, -inf
    %985 = vmax.xlane.f32.xlu0 %v984
    %v986 = vpop.xlane.xlu0 %985
    %v987 = vsel %vm664, %v965, -inf
    %988 = vmax.xlane.f32.xlu0 %v987
    %v989 = vpop.xlane.xlu0 %988
    %v990 = vsub.f32 %v958, %v968
    %v991 = vsub.f32 %v959, %v971
    %v992 = vsub.f32 %v960, %v974
    %v993 = vsub.f32 %v961, %v977
    %v994 = vsub.f32 %v962, %v980
    %v995 = vsub.f32 %v963, %v983
    %v996 = vsub.f32 %v964, %v986
    %v997 = vsub.f32 %v965, %v989
    %v998 = vmul.f32 %v990, 1.442695
    %v999 = vpow.pop %v998
    %v1000 = vmul.f32 %v991, 1.442695
    %v1001 = vpow.pop %v1000
    %v1002 = vmul.f32 %v992, 1.442695
    %v1003 = vpow.pop %v1002
    %v1004 = vmul.f32 %v993, 1.442695
    %v1005 = vpow.pop %v1004
    %v1006 = vmul.f32 %v994, 1.442695
    %v1007 = vpow.pop %v1006
    %v1008 = vmul.f32 %v995, 1.442695
    %v1009 = vpow.pop %v1008
    %v1010 = vmul.f32 %v996, 1.442695
    %v1011 = vpow.pop %v1010
    %v1012 = vmul.f32 %v997, 1.442695
    %v1013 = vpow.pop %v1012
    %v1014 = vsel %vm664, %v999, 0.0
    %1015 = vadd.xlane.f32.xlu0 %v1014
    %v1016 = vpop.xlane.xlu0 %1015
    %v1017 = vsel %vm664, %v1001, 0.0
    %1018 = vadd.xlane.f32.xlu0 %v1017
    %v1019 = vpop.xlane.xlu0 %1018
    %v1020 = vsel %vm664, %v1003, 0.0
    %1021 = vadd.xlane.f32.xlu0 %v1020
    %v1022 = vpop.xlane.xlu0 %1021
    %v1023 = vsel %vm664, %v1005, 0.0
    %1024 = vadd.xlane.f32.xlu0 %v1023
    %v1025 = vpop.xlane.xlu0 %1024
    %v1026 = vsel %vm664, %v1007, 0.0
    %1027 = vadd.xlane.f32.xlu0 %v1026
    %v1028 = vpop.xlane.xlu0 %1027
    %v1029 = vsel %vm664, %v1009, 0.0
    %1030 = vadd.xlane.f32.xlu0 %v1029
    %v1031 = vpop.xlane.xlu0 %1030
    %v1032 = vsel %vm664, %v1011, 0.0
    %1033 = vadd.xlane.f32.xlu0 %v1032
    %v1034 = vpop.xlane.xlu0 %1033
    %v1035 = vsel %vm664, %v1013, 0.0
    %1036 = vadd.xlane.f32.xlu0 %v1035
    %v1037 = vpop.xlane.xlu0 %1036
    %v1038 = vpack.c.bf16 %v1001, %v999
    %v1039 = vpack.c.bf16 %v1005, %v1003
    %v1040 = vpack.c.bf16 %v1009, %v1007
    %v1041 = vpack.c.bf16 %v1013, %v1011
    %1046 = vrot.lane.b32.xlu0 %v326, 96
    %v1047 = vpop.permute.xlu0 %1046
    %1048 = vrot.lane.b32.xlu0 %v327, 96
    %v1049 = vpop.permute.xlu0 %1048
    %1050 = vrot.lane.b32.xlu0 %v328, 96
    %v1051 = vpop.permute.xlu0 %1050
    %1052 = vrot.lane.b32.xlu0 %v329, 96
    %v1053 = vpop.permute.xlu0 %1052
    %v1059 = vsel %vm664, %v1038, 0
    %v1062 = vsel %vm664, %v1039, 0
    %v1065 = vsel %vm664, %v1040, 0
    %v1068 = vsel %vm664, %v1041, 0
    %1070 = vmatprep.subr.bf16.mxu0 0
    %1071 = vmatpush1.bf16.msra.mxu0 %v1047
    %1072 = vmatprep.subr.bf16.mxu0 0
    %1073 = vmatpush1.bf16.msra.mxu0 %v1049
    %1074 = vmatprep.subr.bf16.mxu0 0
    %1075 = vmatpush1.bf16.msra.mxu0 %v1051
    %1076 = vmatprep.subr.bf16.mxu0 0
    %1077 = vmatpush1.bf16.msra.mxu0 %v1053
    %1078 = vmatprep.subr.bf16.mxu0 0
    %1079 = vmatpush1.bf16.msra.mxu0 0
    %1080 = vmatprep.subr.bf16.mxu0 0
    %1081 = vmatpush1.bf16.msra.mxu0 0
    %1082 = vmatprep.subr.bf16.mxu0 0
    %1083 = vmatpush1.bf16.msra.mxu0 0
    %1084 = vmatprep.subr.bf16.mxu0 0
    %1085 = vmatpush1.bf16.msra.mxu0 0
    %1086 = vmatprep.subr.bf16.mxu0 0
    %1087 = vmatpush1.bf16.msra.mxu0 0
    %1088 = vmatprep.subr.bf16.mxu0 0
    %1089 = vmatpush1.bf16.msra.mxu0 0
    %1090 = vmatprep.subr.bf16.mxu0 0
    %1091 = vmatpush1.bf16.msra.mxu0 0
    %1092 = vmatprep.subr.bf16.mxu0 0
    %1093 = vmatpush1.bf16.msra.mxu0 0
    %1094 = vmatprep.subr.bf16.mxu0 0
    %1095 = vmatpush1.bf16.msra.mxu0 0
    %1096 = vmatprep.subr.bf16.mxu0 0
    %1097 = vmatpush1.bf16.msra.mxu0 0
    %1098 = vmatprep.subr.bf16.mxu0 0
    %1099 = vmatpush1.bf16.msra.mxu0 0
    %1100 = vmatprep.subr.bf16.mxu0 0
    %1101 = vmatpush1.bf16.msra.mxu0 0
    %1102 = vmatprep.mubr.bf16.mxu0 0
    %1103 = vmatmul.mubr.bf16.gmra.mrb[0].mxu0 %v1059
    %v1104 = vpop.f32.mrb[0].mxu0
    %v1105 = vadd.f32 0.0, %v1104
    %v1106 = vpop.f32.mrb[0].mxu0
    %v1107 = vpop.f32.mrb[0].mxu0
    %v1108 = vadd.f32 0.0, %v1107
    %v1109 = vpop.f32.mrb[0].mxu0
    %1110 = vmatprep.mubr.bf16.mxu0 0
    %1111 = vmatmul.mubr.bf16.gmra.mrb[0].mxu0 %v1062
    %v1112 = vpop.f32.mrb[0].mxu0
    %v1113 = vadd.f32 0.0, %v1112
    %v1114 = vpop.f32.mrb[0].mxu0
    %v1115 = vpop.f32.mrb[0].mxu0
    %v1116 = vadd.f32 0.0, %v1115
    %v1117 = vpop.f32.mrb[0].mxu0
    %1118 = vmatprep.mubr.bf16.mxu0 0
    %1119 = vmatmul.mubr.bf16.gmra.mrb[0].mxu0 %v1065
    %v1120 = vpop.f32.mrb[0].mxu0
    %v1121 = vadd.f32 0.0, %v1120
    %v1122 = vpop.f32.mrb[0].mxu0
    %v1123 = vpop.f32.mrb[0].mxu0
    %v1124 = vadd.f32 0.0, %v1123
    %v1125 = vpop.f32.mrb[0].mxu0
    %1126 = vmatprep.mubr.bf16.mxu0 0
    %1127 = vmatmul.mubr.bf16.gmra.mrb[0].mxu0 %v1068
    %v1128 = vpop.f32.mrb[0].mxu0
    %v1129 = vadd.f32 0.0, %v1128
    %v1130 = vpop.f32.mrb[0].mxu0
    %v1131 = vpop.f32.mrb[0].mxu0
    %v1132 = vadd.f32 0.0, %v1131
    %v1133 = vpop.f32.mrb[0].mxu0
    %1134 = vdwg.mxu0
    %v1135 = vrcp.pop %v1016
    %v1136 = vrcp.pop %v1019
    %v1137 = vrcp.pop %v1022
    %v1138 = vrcp.pop %v1025
    %v1139 = vrcp.pop %v1028
    %v1140 = vrcp.pop %v1031
    %v1141 = vrcp.pop %v1034
    %v1142 = vrcp.pop %v1037
    %v1143 = vmul.f32 %v1105, %v1135
    %v1144 = vmul.f32 %v1108, %v1136
    %v1145 = vmul.f32 %v1113, %v1137
    %v1146 = vmul.f32 %v1116, %v1138
    %v1147 = vmul.f32 %v1121, %v1139
    %v1148 = vmul.f32 %v1124, %v1140
    %v1149 = vmul.f32 %v1129, %v1141
    %v1150 = vmul.f32 %v1132, %v1142
    %1151 = vrot.lane.b32.xlu0 %v413, 126
    %v1152 = vpop.permute.xlu0 %1151
    %1153 = vrot.lane.b32.xlu0 %v416, 126
    %v1154 = vpop.permute.xlu0 %1153
    %1155 = vrot.lane.b32.xlu0 %v421, 126
    %v1156 = vpop.permute.xlu0 %1155
    %1157 = vrot.lane.b32.xlu0 %v424, 126
    %v1158 = vpop.permute.xlu0 %1157
    %1159 = vrot.lane.b32.xlu0 %v429, 126
    %v1160 = vpop.permute.xlu0 %1159
    %1161 = vrot.lane.b32.xlu0 %v432, 126
    %v1162 = vpop.permute.xlu0 %1161
    %1163 = vrot.lane.b32.xlu0 %v437, 126
    %v1164 = vpop.permute.xlu0 %1163
    %1165 = vrot.lane.b32.xlu0 %v440, 126
    %v1166 = vpop.permute.xlu0 %1165
    %1175 = vxpose.xlu0.b32.start [1/16] %v1152, 128
    %1176 = vxpose.xlu0.b32.cont [2/16] %v1154, 128
    %1177 = vxpose.xlu0.b32.cont [3/16] %v1156, 128
    %1178 = vxpose.xlu0.b32.cont [4/16] %v1158, 128
    %1179 = vxpose.xlu0.b32.cont [5/16] %v1160, 128
    %1180 = vxpose.xlu0.b32.cont [6/16] %v1162, 128
    %1181 = vxpose.xlu0.b32.cont [7/16] %v1164, 128
    %1182 = vxpose.xlu0.b32.cont [8/16] %v1166, 128
    %1183 = vxpose.xlu0.b32.cont [9/16] 0.0, 128
    %1184 = vxpose.xlu0.b32.cont [10/16] 0.0, 128
    %1185 = vxpose.xlu0.b32.cont [11/16] 0.0, 128
    %1186 = vxpose.xlu0.b32.cont [12/16] 0.0, 128
    %1187 = vxpose.xlu0.b32.cont [13/16] 0.0, 128
    %1188 = vxpose.xlu0.b32.cont [14/16] 0.0, 128
    %1189 = vxpose.xlu0.b32.cont [15/16] 0.0, 128
    %1190 = vxpose.xlu0.b32.end [16/16] 0.0, 128
    %v1191 = vpop.trf.xlu0
    %v1192 = vpop.trf.xlu0
    %v1193 = vpop.trf.xlu0
    %v1194 = vpop.trf.xlu0
    %v1195 = vpop.trf.xlu0
    %v1196 = vpop.trf.xlu0
    %v1197 = vpop.trf.xlu0
    %v1198 = vpop.trf.xlu0
    %v1199 = vpop.trf.xlu0
    %v1200 = vpop.trf.xlu0
    %v1201 = vpop.trf.xlu0
    %v1202 = vpop.trf.xlu0
    %v1203 = vpop.trf.xlu0
    %v1204 = vpop.trf.xlu0
    %v1205 = vpop.trf.xlu0
    %v1206 = vpop.trf.xlu0
    %1207 = vset.pattern.permute.xlu0 2
    %1208 = vperm.xlu0 %1207, %v526
    %v1209 = vpop.permute.xlu0 %1208
    %1211 = vset.pattern.permute.xlu0 2
    %1212 = vperm.xlu0 %1211, %v529
    %v1213 = vpop.permute.xlu0 %1212
    %1215 = vset.pattern.permute.xlu0 2
    %1216 = vperm.xlu0 %1215, %v534
    %v1217 = vpop.permute.xlu0 %1216
    %1219 = vset.pattern.permute.xlu0 2
    %1220 = vperm.xlu0 %1219, %v537
    %v1221 = vpop.permute.xlu0 %1220
    %1223 = vset.pattern.permute.xlu0 2
    %1224 = vperm.xlu0 %1223, %v542
    %v1225 = vpop.permute.xlu0 %1224
    %1227 = vset.pattern.permute.xlu0 2
    %1228 = vperm.xlu0 %1227, %v545
    %v1229 = vpop.permute.xlu0 %1228
    %1231 = vset.pattern.permute.xlu0 2
    %1232 = vperm.xlu0 %1231, %v550
    %v1233 = vpop.permute.xlu0 %1232
    %1235 = vset.pattern.permute.xlu0 2
    %1236 = vperm.xlu0 %1235, %v553
    %v1237 = vpop.permute.xlu0 %1236
    %v1239 = vlaneseq
    %v1240 = vshrl.u32 %v1239, 7
    %v1241 = vsub.s32 0, %v1240
    %v1242 = vrot.slane %v1191, %v1241
    %v1243 = vadd.f32 %v1209, %v1242
    %v1244 = vadd.f32 %v1213, %v1242
    %v1245 = vadd.f32 %v1217, %v1242
    %v1246 = vadd.f32 %v1221, %v1242
    %v1247 = vadd.f32 %v1225, %v1242
    %v1248 = vadd.f32 %v1229, %v1242
    %v1249 = vadd.f32 %v1233, %v1242
    %v1250 = vadd.f32 %v1237, %v1242
    %v1251 = vmul.f32 %v1243, 0.2
    %v1252 = vmul.f32 %v1244, 0.2
    %v1253 = vmul.f32 %v1245, 0.2
    %v1254 = vmul.f32 %v1246, 0.2
    %v1255 = vmul.f32 %v1247, 0.2
    %v1256 = vmul.f32 %v1248, 0.2
    %v1257 = vmul.f32 %v1249, 0.2
    %v1258 = vmul.f32 %v1250, 0.2
    %v1259 = vmax.f32 %v1243, %v1251
    %v1260 = vmax.f32 %v1244, %v1252
    %v1261 = vmax.f32 %v1245, %v1253
    %v1262 = vmax.f32 %v1246, %v1254
    %v1263 = vmax.f32 %v1247, %v1255
    %v1264 = vmax.f32 %v1248, %v1256
    %v1265 = vmax.f32 %v1249, %v1257
    %v1266 = vmax.f32 %v1250, %v1258
    %v1267 = vadd.f32 %v1259, %v185
    %v1268 = vadd.f32 %v1260, %v186
    %v1269 = vadd.f32 %v1261, %v187
    %v1270 = vadd.f32 %v1262, %v188
    %v1271 = vadd.f32 %v1263, %v189
    %v1272 = vadd.f32 %v1264, %v190
    %v1273 = vadd.f32 %v1265, %v191
    %v1274 = vadd.f32 %v1266, %v192
    %v1275 = vsel %vm664, %v1267, -inf
    %1276 = vmax.xlane.f32.xlu0 %v1275
    %v1277 = vpop.xlane.xlu0 %1276
    %v1278 = vsel %vm664, %v1268, -inf
    %1279 = vmax.xlane.f32.xlu0 %v1278
    %v1280 = vpop.xlane.xlu0 %1279
    %v1281 = vsel %vm664, %v1269, -inf
    %1282 = vmax.xlane.f32.xlu0 %v1281
    %v1283 = vpop.xlane.xlu0 %1282
    %v1284 = vsel %vm664, %v1270, -inf
    %1285 = vmax.xlane.f32.xlu0 %v1284
    %v1286 = vpop.xlane.xlu0 %1285
    %v1287 = vsel %vm664, %v1271, -inf
    %1288 = vmax.xlane.f32.xlu0 %v1287
    %v1289 = vpop.xlane.xlu0 %1288
    %v1290 = vsel %vm664, %v1272, -inf
    %1291 = vmax.xlane.f32.xlu0 %v1290
    %v1292 = vpop.xlane.xlu0 %1291
    %v1293 = vsel %vm664, %v1273, -inf
    %1294 = vmax.xlane.f32.xlu0 %v1293
    %v1295 = vpop.xlane.xlu0 %1294
    %v1296 = vsel %vm664, %v1274, -inf
    %1297 = vmax.xlane.f32.xlu0 %v1296
    %v1298 = vpop.xlane.xlu0 %1297
    %v1299 = vsub.f32 %v1267, %v1277
    %v1300 = vsub.f32 %v1268, %v1280
    %v1301 = vsub.f32 %v1269, %v1283
    %v1302 = vsub.f32 %v1270, %v1286
    %v1303 = vsub.f32 %v1271, %v1289
    %v1304 = vsub.f32 %v1272, %v1292
    %v1305 = vsub.f32 %v1273, %v1295
    %v1306 = vsub.f32 %v1274, %v1298
    %v1307 = vmul.f32 %v1299, 1.442695
    %v1308 = vpow.pop %v1307
    %v1309 = vmul.f32 %v1300, 1.442695
    %v1310 = vpow.pop %v1309
    %v1311 = vmul.f32 %v1301, 1.442695
    %v1312 = vpow.pop %v1311
    %v1313 = vmul.f32 %v1302, 1.442695
    %v1314 = vpow.pop %v1313
    %v1315 = vmul.f32 %v1303, 1.442695
    %v1316 = vpow.pop %v1315
    %v1317 = vmul.f32 %v1304, 1.442695
    %v1318 = vpow.pop %v1317
    %v1319 = vmul.f32 %v1305, 1.442695
    %v1320 = vpow.pop %v1319
    %v1321 = vmul.f32 %v1306, 1.442695
    %v1322 = vpow.pop %v1321
    %v1323 = vsel %vm664, %v1308, 0.0
    %1324 = vadd.xlane.f32.xlu0 %v1323
    %v1325 = vpop.xlane.xlu0 %1324
    %v1326 = vsel %vm664, %v1310, 0.0
    %1327 = vadd.xlane.f32.xlu0 %v1326
    %v1328 = vpop.xlane.xlu0 %1327
    %v1329 = vsel %vm664, %v1312, 0.0
    %1330 = vadd.xlane.f32.xlu0 %v1329
    %v1331 = vpop.xlane.xlu0 %1330
    %v1332 = vsel %vm664, %v1314, 0.0
    %1333 = vadd.xlane.f32.xlu0 %v1332
    %v1334 = vpop.xlane.xlu0 %1333
    %v1335 = vsel %vm664, %v1316, 0.0
    %1336 = vadd.xlane.f32.xlu0 %v1335
    %v1337 = vpop.xlane.xlu0 %1336
    %v1338 = vsel %vm664, %v1318, 0.0
    %1339 = vadd.xlane.f32.xlu0 %v1338
    %v1340 = vpop.xlane.xlu0 %1339
    %v1341 = vsel %vm664, %v1320, 0.0
    %1342 = vadd.xlane.f32.xlu0 %v1341
    %v1343 = vpop.xlane.xlu0 %1342
    %v1344 = vsel %vm664, %v1322, 0.0
    %1345 = vadd.xlane.f32.xlu0 %v1344
    %v1346 = vpop.xlane.xlu0 %1345
    %v1347 = vpack.c.bf16 %v1310, %v1308
    %v1348 = vpack.c.bf16 %v1314, %v1312
    %v1349 = vpack.c.bf16 %v1318, %v1316
    %v1350 = vpack.c.bf16 %v1322, %v1320
    %1351 = vrot.lane.b32.xlu0 %v326, 64
    %v1352 = vpop.permute.xlu0 %1351
    %1353 = vrot.lane.b32.xlu0 %v327, 64
    %v1354 = vpop.permute.xlu0 %1353
    %1355 = vrot.lane.b32.xlu0 %v328, 64
    %v1356 = vpop.permute.xlu0 %1355
    %1357 = vrot.lane.b32.xlu0 %v329, 64
    %v1358 = vpop.permute.xlu0 %1357
    %v1364 = vsel %vm664, %v1347, 0
    %v1367 = vsel %vm664, %v1348, 0
    %v1370 = vsel %vm664, %v1349, 0
    %v1373 = vsel %vm664, %v1350, 0
    %1375 = vmatprep.subr.bf16.mxu0 0
    %1376 = vmatpush1.bf16.msra.mxu0 %v1352
    %1377 = vmatprep.subr.bf16.mxu0 0
    %1378 = vmatpush1.bf16.msra.mxu0 %v1354
    %1379 = vmatprep.subr.bf16.mxu0 0
    %1380 = vmatpush1.bf16.msra.mxu0 %v1356
    %1381 = vmatprep.subr.bf16.mxu0 0
    %1382 = vmatpush1.bf16.msra.mxu0 %v1358
    %1383 = vmatprep.subr.bf16.mxu0 0
    %1384 = vmatpush1.bf16.msra.mxu0 0
    %1385 = vmatprep.subr.bf16.mxu0 0
    %1386 = vmatpush1.bf16.msra.mxu0 0
    %1387 = vmatprep.subr.bf16.mxu0 0
    %1388 = vmatpush1.bf16.msra.mxu0 0
    %1389 = vmatprep.subr.bf16.mxu0 0
    %1390 = vmatpush1.bf16.msra.mxu0 0
    %1391 = vmatprep.subr.bf16.mxu0 0
    %1392 = vmatpush1.bf16.msra.mxu0 0
    %1393 = vmatprep.subr.bf16.mxu0 0
    %1394 = vmatpush1.bf16.msra.mxu0 0
    %1395 = vmatprep.subr.bf16.mxu0 0
    %1396 = vmatpush1.bf16.msra.mxu0 0
    %1397 = vmatprep.subr.bf16.mxu0 0
    %1398 = vmatpush1.bf16.msra.mxu0 0
    %1399 = vmatprep.subr.bf16.mxu0 0
    %1400 = vmatpush1.bf16.msra.mxu0 0
    %1401 = vmatprep.subr.bf16.mxu0 0
    %1402 = vmatpush1.bf16.msra.mxu0 0
    %1403 = vmatprep.subr.bf16.mxu0 0
    %1404 = vmatpush1.bf16.msra.mxu0 0
    %1405 = vmatprep.subr.bf16.mxu0 0
    %1406 = vmatpush1.bf16.msra.mxu0 0
    %1407 = vmatprep.mubr.bf16.mxu0 0
    %1408 = vmatmul.mubr.bf16.gmra.mrb[0].mxu0 %v1364
    %v1409 = vpop.f32.mrb[0].mxu0
    %v1410 = vadd.f32 0.0, %v1409
    %v1411 = vpop.f32.mrb[0].mxu0
    %v1412 = vpop.f32.mrb[0].mxu0
    %v1413 = vadd.f32 0.0, %v1412
    %v1414 = vpop.f32.mrb[0].mxu0
    %1415 = vmatprep.mubr.bf16.mxu0 0
    %1416 = vmatmul.mubr.bf16.gmra.mrb[0].mxu0 %v1367
    %v1417 = vpop.f32.mrb[0].mxu0
    %v1418 = vadd.f32 0.0, %v1417
    %v1419 = vpop.f32.mrb[0].mxu0
    %v1420 = vpop.f32.mrb[0].mxu0
    %v1421 = vadd.f32 0.0, %v1420
    %v1422 = vpop.f32.mrb[0].mxu0
    %1423 = vmatprep.mubr.bf16.mxu0 0
    %1424 = vmatmul.mubr.bf16.gmra.mrb[0].mxu0 %v1370
    %v1425 = vpop.f32.mrb[0].mxu0
    %v1426 = vadd.f32 0.0, %v1425
    %v1427 = vpop.f32.mrb[0].mxu0
    %v1428 = vpop.f32.mrb[0].mxu0
    %v1429 = vadd.f32 0.0, %v1428
    %v1430 = vpop.f32.mrb[0].mxu0
    %1431 = vmatprep.mubr.bf16.mxu0 0
    %1432 = vmatmul.mubr.bf16.gmra.mrb[0].mxu0 %v1373
    %v1433 = vpop.f32.mrb[0].mxu0
    %v1434 = vadd.f32 0.0, %v1433
    %v1435 = vpop.f32.mrb[0].mxu0
    %v1436 = vpop.f32.mrb[0].mxu0
    %v1437 = vadd.f32 0.0, %v1436
    %v1438 = vpop.f32.mrb[0].mxu0
    %1439 = vdwg.mxu0
    %v1440 = vrcp.pop %v1325
    %v1441 = vrcp.pop %v1328
    %v1442 = vrcp.pop %v1331
    %v1443 = vrcp.pop %v1334
    %v1444 = vrcp.pop %v1337
    %v1445 = vrcp.pop %v1340
    %v1446 = vrcp.pop %v1343
    %v1447 = vrcp.pop %v1346
    %v1448 = vmul.f32 %v1410, %v1440
    %v1449 = vmul.f32 %v1413, %v1441
    %v1450 = vmul.f32 %v1418, %v1442
    %v1451 = vmul.f32 %v1421, %v1443
    %v1452 = vmul.f32 %v1426, %v1444
    %v1453 = vmul.f32 %v1429, %v1445
    %v1454 = vmul.f32 %v1434, %v1446
    %v1455 = vmul.f32 %v1437, %v1447
    %1456 = vrot.lane.b32.xlu0 %v413, 125
    %v1457 = vpop.permute.xlu0 %1456
    %1458 = vrot.lane.b32.xlu0 %v416, 125
    %v1459 = vpop.permute.xlu0 %1458
    %1460 = vrot.lane.b32.xlu0 %v421, 125
    %v1461 = vpop.permute.xlu0 %1460
    %1462 = vrot.lane.b32.xlu0 %v424, 125
    %v1463 = vpop.permute.xlu0 %1462
    %1464 = vrot.lane.b32.xlu0 %v429, 125
    %v1465 = vpop.permute.xlu0 %1464
    %1466 = vrot.lane.b32.xlu0 %v432, 125
    %v1467 = vpop.permute.xlu0 %1466
    %1468 = vrot.lane.b32.xlu0 %v437, 125
    %v1469 = vpop.permute.xlu0 %1468
    %1470 = vrot.lane.b32.xlu0 %v440, 125
    %v1471 = vpop.permute.xlu0 %1470
    %1480 = vxpose.xlu0.b32.start [1/16] %v1457, 128
    %1481 = vxpose.xlu0.b32.cont [2/16] %v1459, 128
    %1482 = vxpose.xlu0.b32.cont [3/16] %v1461, 128
    %1483 = vxpose.xlu0.b32.cont [4/16] %v1463, 128
    %1484 = vxpose.xlu0.b32.cont [5/16] %v1465, 128
    %1485 = vxpose.xlu0.b32.cont [6/16] %v1467, 128
    %1486 = vxpose.xlu0.b32.cont [7/16] %v1469, 128
    %1487 = vxpose.xlu0.b32.cont [8/16] %v1471, 128
    %1488 = vxpose.xlu0.b32.cont [9/16] 0.0, 128
    %1489 = vxpose.xlu0.b32.cont [10/16] 0.0, 128
    %1490 = vxpose.xlu0.b32.cont [11/16] 0.0, 128
    %1491 = vxpose.xlu0.b32.cont [12/16] 0.0, 128
    %1492 = vxpose.xlu0.b32.cont [13/16] 0.0, 128
    %1493 = vxpose.xlu0.b32.cont [14/16] 0.0, 128
    %1494 = vxpose.xlu0.b32.cont [15/16] 0.0, 128
    %1495 = vxpose.xlu0.b32.end [16/16] 0.0, 128
    %v1496 = vpop.trf.xlu0
    %v1497 = vpop.trf.xlu0
    %v1498 = vpop.trf.xlu0
    %v1499 = vpop.trf.xlu0
    %v1500 = vpop.trf.xlu0
    %v1501 = vpop.trf.xlu0
    %v1502 = vpop.trf.xlu0
    %v1503 = vpop.trf.xlu0
    %v1504 = vpop.trf.xlu0
    %v1505 = vpop.trf.xlu0
    %v1506 = vpop.trf.xlu0
    %v1507 = vpop.trf.xlu0
    %v1508 = vpop.trf.xlu0
    %v1509 = vpop.trf.xlu0
    %v1510 = vpop.trf.xlu0
    %v1511 = vpop.trf.xlu0
    %1512 = vset.pattern.permute.xlu0 3
    %1513 = vperm.xlu0 %1512, %v526
    %v1514 = vpop.permute.xlu0 %1513
    %1516 = vset.pattern.permute.xlu0 3
    %1517 = vperm.xlu0 %1516, %v529
    %v1518 = vpop.permute.xlu0 %1517
    %1520 = vset.pattern.permute.xlu0 3
    %1521 = vperm.xlu0 %1520, %v534
    %v1522 = vpop.permute.xlu0 %1521
    %1524 = vset.pattern.permute.xlu0 3
    %1525 = vperm.xlu0 %1524, %v537
    %v1526 = vpop.permute.xlu0 %1525
    %1528 = vset.pattern.permute.xlu0 3
    %1529 = vperm.xlu0 %1528, %v542
    %v1530 = vpop.permute.xlu0 %1529
    %1532 = vset.pattern.permute.xlu0 3
    %1533 = vperm.xlu0 %1532, %v545
    %v1534 = vpop.permute.xlu0 %1533
    %1536 = vset.pattern.permute.xlu0 3
    %1537 = vperm.xlu0 %1536, %v550
    %v1538 = vpop.permute.xlu0 %1537
    %1540 = vset.pattern.permute.xlu0 3
    %1541 = vperm.xlu0 %1540, %v553
    %v1542 = vpop.permute.xlu0 %1541
    %v1544 = vlaneseq
    %v1545 = vshrl.u32 %v1544, 7
    %v1546 = vsub.s32 0, %v1545
    %v1547 = vrot.slane %v1496, %v1546
    %v1548 = vadd.f32 %v1514, %v1547
    %v1549 = vadd.f32 %v1518, %v1547
    %v1550 = vadd.f32 %v1522, %v1547
    %v1551 = vadd.f32 %v1526, %v1547
    %v1552 = vadd.f32 %v1530, %v1547
    %v1553 = vadd.f32 %v1534, %v1547
    %v1554 = vadd.f32 %v1538, %v1547
    %v1555 = vadd.f32 %v1542, %v1547
    %v1556 = vmul.f32 %v1548, 0.2
    %v1557 = vmul.f32 %v1549, 0.2
    %v1558 = vmul.f32 %v1550, 0.2
    %v1559 = vmul.f32 %v1551, 0.2
    %v1560 = vmul.f32 %v1552, 0.2
    %v1561 = vmul.f32 %v1553, 0.2
    %v1562 = vmul.f32 %v1554, 0.2
    %v1563 = vmul.f32 %v1555, 0.2
    %v1564 = vmax.f32 %v1548, %v1556
    %v1565 = vmax.f32 %v1549, %v1557
    %v1566 = vmax.f32 %v1550, %v1558
    %v1567 = vmax.f32 %v1551, %v1559
    %v1568 = vmax.f32 %v1552, %v1560
    %v1569 = vmax.f32 %v1553, %v1561
    %v1570 = vmax.f32 %v1554, %v1562
    %v1571 = vmax.f32 %v1555, %v1563
    %v1572 = vadd.f32 %v1564, %v185
    %v1573 = vadd.f32 %v1565, %v186
    %v1574 = vadd.f32 %v1566, %v187
    %v1575 = vadd.f32 %v1567, %v188
    %v1576 = vadd.f32 %v1568, %v189
    %v1577 = vadd.f32 %v1569, %v190
    %v1578 = vadd.f32 %v1570, %v191
    %v1579 = vadd.f32 %v1571, %v192
    %v1580 = vsel %vm664, %v1572, -inf
    %1581 = vmax.xlane.f32.xlu0 %v1580
    %v1582 = vpop.xlane.xlu0 %1581
    %v1583 = vsel %vm664, %v1573, -inf
    %1584 = vmax.xlane.f32.xlu0 %v1583
    %v1585 = vpop.xlane.xlu0 %1584
    %v1586 = vsel %vm664, %v1574, -inf
    %1587 = vmax.xlane.f32.xlu0 %v1586
    %v1588 = vpop.xlane.xlu0 %1587
    %v1589 = vsel %vm664, %v1575, -inf
    %1590 = vmax.xlane.f32.xlu0 %v1589
    %v1591 = vpop.xlane.xlu0 %1590
    %v1592 = vsel %vm664, %v1576, -inf
    %1593 = vmax.xlane.f32.xlu0 %v1592
    %v1594 = vpop.xlane.xlu0 %1593
    %v1595 = vsel %vm664, %v1577, -inf
    %1596 = vmax.xlane.f32.xlu0 %v1595
    %v1597 = vpop.xlane.xlu0 %1596
    %v1598 = vsel %vm664, %v1578, -inf
    %1599 = vmax.xlane.f32.xlu0 %v1598
    %v1600 = vpop.xlane.xlu0 %1599
    %v1601 = vsel %vm664, %v1579, -inf
    %1602 = vmax.xlane.f32.xlu0 %v1601
    %v1603 = vpop.xlane.xlu0 %1602
    %v1604 = vsub.f32 %v1572, %v1582
    %v1605 = vsub.f32 %v1573, %v1585
    %v1606 = vsub.f32 %v1574, %v1588
    %v1607 = vsub.f32 %v1575, %v1591
    %v1608 = vsub.f32 %v1576, %v1594
    %v1609 = vsub.f32 %v1577, %v1597
    %v1610 = vsub.f32 %v1578, %v1600
    %v1611 = vsub.f32 %v1579, %v1603
    %v1612 = vmul.f32 %v1604, 1.442695
    %v1613 = vpow.pop %v1612
    %v1614 = vmul.f32 %v1605, 1.442695
    %v1615 = vpow.pop %v1614
    %v1616 = vmul.f32 %v1606, 1.442695
    %v1617 = vpow.pop %v1616
    %v1618 = vmul.f32 %v1607, 1.442695
    %v1619 = vpow.pop %v1618
    %v1620 = vmul.f32 %v1608, 1.442695
    %v1621 = vpow.pop %v1620
    %v1622 = vmul.f32 %v1609, 1.442695
    %v1623 = vpow.pop %v1622
    %v1624 = vmul.f32 %v1610, 1.442695
    %v1625 = vpow.pop %v1624
    %v1626 = vmul.f32 %v1611, 1.442695
    %v1627 = vpow.pop %v1626
    %v1628 = vsel %vm664, %v1613, 0.0
    %1629 = vadd.xlane.f32.xlu0 %v1628
    %v1630 = vpop.xlane.xlu0 %1629
    %v1631 = vsel %vm664, %v1615, 0.0
    %1632 = vadd.xlane.f32.xlu0 %v1631
    %v1633 = vpop.xlane.xlu0 %1632
    %v1634 = vsel %vm664, %v1617, 0.0
    %1635 = vadd.xlane.f32.xlu0 %v1634
    %v1636 = vpop.xlane.xlu0 %1635
    %v1637 = vsel %vm664, %v1619, 0.0
    %1638 = vadd.xlane.f32.xlu0 %v1637
    %v1639 = vpop.xlane.xlu0 %1638
    %v1640 = vsel %vm664, %v1621, 0.0
    %1641 = vadd.xlane.f32.xlu0 %v1640
    %v1642 = vpop.xlane.xlu0 %1641
    %v1643 = vsel %vm664, %v1623, 0.0
    %1644 = vadd.xlane.f32.xlu0 %v1643
    %v1645 = vpop.xlane.xlu0 %1644
    %v1646 = vsel %vm664, %v1625, 0.0
    %1647 = vadd.xlane.f32.xlu0 %v1646
    %v1648 = vpop.xlane.xlu0 %1647
    %v1649 = vsel %vm664, %v1627, 0.0
    %1650 = vadd.xlane.f32.xlu0 %v1649
    %v1651 = vpop.xlane.xlu0 %1650
    %v1652 = vpack.c.bf16 %v1615, %v1613
    %v1653 = vpack.c.bf16 %v1619, %v1617
    %v1654 = vpack.c.bf16 %v1623, %v1621
    %v1655 = vpack.c.bf16 %v1627, %v1625
    %1656 = vrot.lane.b32.xlu0 %v326, 32
    %v1657 = vpop.permute.xlu0 %1656
    %1658 = vrot.lane.b32.xlu0 %v327, 32
    %v1659 = vpop.permute.xlu0 %1658
    %1660 = vrot.lane.b32.xlu0 %v328, 32
    %v1661 = vpop.permute.xlu0 %1660
    %1662 = vrot.lane.b32.xlu0 %v329, 32
    %v1663 = vpop.permute.xlu0 %1662
    %v1669 = vsel %vm664, %v1652, 0
    %v1672 = vsel %vm664, %v1653, 0
    %v1675 = vsel %vm664, %v1654, 0
    %v1678 = vsel %vm664, %v1655, 0
    %1680 = vmatprep.subr.bf16.mxu0 0
    %1681 = vmatpush1.bf16.msra.mxu0 %v1657
    %1682 = vmatprep.subr.bf16.mxu0 0
    %1683 = vmatpush1.bf16.msra.mxu0 %v1659
    %1684 = vmatprep.subr.bf16.mxu0 0
    %1685 = vmatpush1.bf16.msra.mxu0 %v1661
    %1686 = vmatprep.subr.bf16.mxu0 0
    %1687 = vmatpush1.bf16.msra.mxu0 %v1663
    %1688 = vmatprep.subr.bf16.mxu0 0
    %1689 = vmatpush1.bf16.msra.mxu0 0
    %1690 = vmatprep.subr.bf16.mxu0 0
    %1691 = vmatpush1.bf16.msra.mxu0 0
    %1692 = vmatprep.subr.bf16.mxu0 0
    %1693 = vmatpush1.bf16.msra.mxu0 0
    %1694 = vmatprep.subr.bf16.mxu0 0
    %1695 = vmatpush1.bf16.msra.mxu0 0
    %1696 = vmatprep.subr.bf16.mxu0 0
    %1697 = vmatpush1.bf16.msra.mxu0 0
    %1698 = vmatprep.subr.bf16.mxu0 0
    %1699 = vmatpush1.bf16.msra.mxu0 0
    %1700 = vmatprep.subr.bf16.mxu0 0
    %1701 = vmatpush1.bf16.msra.mxu0 0
    %1702 = vmatprep.subr.bf16.mxu0 0
    %1703 = vmatpush1.bf16.msra.mxu0 0
    %1704 = vmatprep.subr.bf16.mxu0 0
    %1705 = vmatpush1.bf16.msra.mxu0 0
    %1706 = vmatprep.subr.bf16.mxu0 0
    %1707 = vmatpush1.bf16.msra.mxu0 0
    %1708 = vmatprep.subr.bf16.mxu0 0
    %1709 = vmatpush1.bf16.msra.mxu0 0
    %1710 = vmatprep.subr.bf16.mxu0 0
    %1711 = vmatpush1.bf16.msra.mxu0 0
    %1712 = vmatprep.mubr.bf16.mxu0 0
    %1713 = vmatmul.mubr.bf16.gmra.mrb[0].mxu0 %v1669
    %v1714 = vpop.f32.mrb[0].mxu0
    %v1715 = vadd.f32 0.0, %v1714
    %v1716 = vpop.f32.mrb[0].mxu0
    %v1717 = vpop.f32.mrb[0].mxu0
    %v1718 = vadd.f32 0.0, %v1717
    %v1719 = vpop.f32.mrb[0].mxu0
    %1720 = vmatprep.mubr.bf16.mxu0 0
    %1721 = vmatmul.mubr.bf16.gmra.mrb[0].mxu0 %v1672
    %v1722 = vpop.f32.mrb[0].mxu0
    %v1723 = vadd.f32 0.0, %v1722
    %v1724 = vpop.f32.mrb[0].mxu0
    %v1725 = vpop.f32.mrb[0].mxu0
    %v1726 = vadd.f32 0.0, %v1725
    %v1727 = vpop.f32.mrb[0].mxu0
    %1728 = vmatprep.mubr.bf16.mxu0 0
    %1729 = vmatmul.mubr.bf16.gmra.mrb[0].mxu0 %v1675
    %v1730 = vpop.f32.mrb[0].mxu0
    %v1731 = vadd.f32 0.0, %v1730
    %v1732 = vpop.f32.mrb[0].mxu0
    %v1733 = vpop.f32.mrb[0].mxu0
    %v1734 = vadd.f32 0.0, %v1733
    %v1735 = vpop.f32.mrb[0].mxu0
    %1736 = vmatprep.mubr.bf16.mxu0 0
    %1737 = vmatmul.mubr.bf16.gmra.mrb[0].mxu0 %v1678
    %v1738 = vpop.f32.mrb[0].mxu0
    %v1739 = vadd.f32 0.0, %v1738
    %v1740 = vpop.f32.mrb[0].mxu0
    %v1741 = vpop.f32.mrb[0].mxu0
    %v1742 = vadd.f32 0.0, %v1741
    %v1743 = vpop.f32.mrb[0].mxu0
    %1744 = vdwg.mxu0
    %v1745 = vrcp.pop %v1630
    %v1746 = vrcp.pop %v1633
    %v1747 = vrcp.pop %v1636
    %v1748 = vrcp.pop %v1639
    %v1749 = vrcp.pop %v1642
    %v1750 = vrcp.pop %v1645
    %v1751 = vrcp.pop %v1648
    %v1752 = vrcp.pop %v1651
    %v1753 = vmul.f32 %v1715, %v1745
    %v1754 = vmul.f32 %v1718, %v1746
    %v1755 = vmul.f32 %v1723, %v1747
    %v1756 = vmul.f32 %v1726, %v1748
    %v1757 = vmul.f32 %v1731, %v1749
    %v1758 = vmul.f32 %v1734, %v1750
    %v1759 = vmul.f32 %v1739, %v1751
    %v1760 = vmul.f32 %v1742, %v1752
    %1769 = vrot.lane.b32.xlu0 %v1143, 32
    %v1770 = vpop.permute.xlu0 %1769
    %1771 = vrot.lane.b32.xlu0 %v1144, 32
    %v1772 = vpop.permute.xlu0 %1771
    %1773 = vrot.lane.b32.xlu0 %v1145, 32
    %v1774 = vpop.permute.xlu0 %1773
    %1775 = vrot.lane.b32.xlu0 %v1146, 32
    %v1776 = vpop.permute.xlu0 %1775
    %1777 = vrot.lane.b32.xlu0 %v1147, 32
    %v1778 = vpop.permute.xlu0 %1777
    %1779 = vrot.lane.b32.xlu0 %v1148, 32
    %v1780 = vpop.permute.xlu0 %1779
    %1781 = vrot.lane.b32.xlu0 %v1149, 32
    %v1782 = vpop.permute.xlu0 %1781
    %1783 = vrot.lane.b32.xlu0 %v1150, 32
    %v1784 = vpop.permute.xlu0 %1783
    %1801 = vrot.lane.b32.xlu0 %v1448, 64
    %v1802 = vpop.permute.xlu0 %1801
    %1803 = vrot.lane.b32.xlu0 %v1449, 64
    %v1804 = vpop.permute.xlu0 %1803
    %1805 = vrot.lane.b32.xlu0 %v1450, 64
    %v1806 = vpop.permute.xlu0 %1805
    %1807 = vrot.lane.b32.xlu0 %v1451, 64
    %v1808 = vpop.permute.xlu0 %1807
    %1809 = vrot.lane.b32.xlu0 %v1452, 64
    %v1810 = vpop.permute.xlu0 %1809
    %1811 = vrot.lane.b32.xlu0 %v1453, 64
    %v1812 = vpop.permute.xlu0 %1811
    %1813 = vrot.lane.b32.xlu0 %v1454, 64
    %v1814 = vpop.permute.xlu0 %1813
    %1815 = vrot.lane.b32.xlu0 %v1455, 64
    %v1816 = vpop.permute.xlu0 %1815
    %1833 = vrot.lane.b32.xlu0 %v1753, 96
    %v1834 = vpop.permute.xlu0 %1833
    %1835 = vrot.lane.b32.xlu0 %v1754, 96
    %v1836 = vpop.permute.xlu0 %1835
    %1837 = vrot.lane.b32.xlu0 %v1755, 96
    %v1838 = vpop.permute.xlu0 %1837
    %1839 = vrot.lane.b32.xlu0 %v1756, 96
    %v1840 = vpop.permute.xlu0 %1839
    %1841 = vrot.lane.b32.xlu0 %v1757, 96
    %v1842 = vpop.permute.xlu0 %1841
    %1843 = vrot.lane.b32.xlu0 %v1758, 96
    %v1844 = vpop.permute.xlu0 %1843
    %1845 = vrot.lane.b32.xlu0 %v1759, 96
    %v1846 = vpop.permute.xlu0 %1845
    %1847 = vrot.lane.b32.xlu0 %v1760, 96
    %v1848 = vpop.permute.xlu0 %1847
    %vm1857 = vcmask 261120
    %v1858 = vsel %vm1857, %v826, %v1770
    %v1859 = vsel %vm1857, %v827, %v1772
    %v1860 = vsel %vm1857, %v828, %v1774
    %v1861 = vsel %vm1857, %v829, %v1776
    %v1862 = vsel %vm1857, %v830, %v1778
    %v1863 = vsel %vm1857, %v831, %v1780
    %v1864 = vsel %vm1857, %v832, %v1782
    %v1865 = vsel %vm1857, %v833, %v1784
    %v1866 = vsel %vm664, %v1858, %v1802
    %v1867 = vsel %vm664, %v1859, %v1804
    %v1868 = vsel %vm664, %v1860, %v1806
    %v1869 = vsel %vm664, %v1861, %v1808
    %v1870 = vsel %vm664, %v1862, %v1810
    %v1871 = vsel %vm664, %v1863, %v1812
    %v1872 = vsel %vm664, %v1864, %v1814
    %v1873 = vsel %vm664, %v1865, %v1816
    %vm1874 = vcmask 785408
    %v1875 = vsel %vm1874, %v1866, %v1834
    %v1876 = vsel %vm1874, %v1867, %v1836
    %v1877 = vsel %vm1874, %v1868, %v1838
    %v1878 = vsel %vm1874, %v1869, %v1840
    %v1879 = vsel %vm1874, %v1870, %v1842
    %v1880 = vsel %vm1874, %v1871, %v1844
    %v1881 = vsel %vm1874, %v1872, %v1846
    %v1882 = vsel %vm1874, %v1873, %v1848
    %v1885 = vunpack.c.l.b16 %v236
    %v1886 = vunpack.c.l.b16 %v237
    %v1887 = vpack.c.b16 %v1886, %v1885
    %1889 = vmatprep.subr.bf16.mxu0 0
    %1890 = vmatpush1.bf16.msra.mxu0 %v1887
    %1891 = vmatprep.subr.bf16.mxu0 0
    %1892 = vmatpush1.bf16.msra.mxu0 0
    %1893 = vmatprep.subr.bf16.mxu0 0
    %1894 = vmatpush1.bf16.msra.mxu0 0
    %1895 = vmatprep.subr.bf16.mxu0 0
    %1896 = vmatpush1.bf16.msra.mxu0 0
    %1897 = vmatprep.subr.bf16.mxu0 0
    %1898 = vmatpush1.bf16.msra.mxu0 0
    %1899 = vmatprep.subr.bf16.mxu0 0
    %1900 = vmatpush1.bf16.msra.mxu0 0
    %1901 = vmatprep.subr.bf16.mxu0 0
    %1902 = vmatpush1.bf16.msra.mxu0 0
    %1903 = vmatprep.subr.bf16.mxu0 0
    %1904 = vmatpush1.bf16.msra.mxu0 0
    %1905 = vmatprep.subr.bf16.mxu0 0
    %1906 = vmatpush1.bf16.msra.mxu0 0
    %1907 = vmatprep.subr.bf16.mxu0 0
    %1908 = vmatpush1.bf16.msra.mxu0 0
    %1909 = vmatprep.subr.bf16.mxu0 0
    %1910 = vmatpush1.bf16.msra.mxu0 0
    %1911 = vmatprep.subr.bf16.mxu0 0
    %1912 = vmatpush1.bf16.msra.mxu0 0
    %1913 = vmatprep.subr.bf16.mxu0 0
    %1914 = vmatpush1.bf16.msra.mxu0 0
    %1915 = vmatprep.subr.bf16.mxu0 0
    %1916 = vmatpush1.bf16.msra.mxu0 0
    %1917 = vmatprep.subr.bf16.mxu0 0
    %1918 = vmatpush1.bf16.msra.mxu0 0
    %1919 = vmatprep.subr.bf16.mxu0 0
    %1920 = vmatpush1.bf16.msra.mxu0 0
    %1921 = vmatprep.mubr.bf16.mxu0 0
    %1922 = vmatmul.mubr.bf16.gmra.mrb[0].mxu0 %v250
    %v1923 = vpop.f32.mrb[0].mxu0
    %v1924 = vadd.f32 0.0, %v1923
    %v1925 = vpop.f32.mrb[0].mxu0
    %v1926 = vpop.f32.mrb[0].mxu0
    %v1927 = vadd.f32 0.0, %v1926
    %v1928 = vpop.f32.mrb[0].mxu0
    %1929 = vmatprep.mubr.bf16.mxu0 0
    %1930 = vmatmul.mubr.bf16.gmra.mrb[0].mxu0 %v253
    %v1931 = vpop.f32.mrb[0].mxu0
    %v1932 = vadd.f32 0.0, %v1931
    %v1933 = vpop.f32.mrb[0].mxu0
    %v1934 = vpop.f32.mrb[0].mxu0
    %v1935 = vadd.f32 0.0, %v1934
    %v1936 = vpop.f32.mrb[0].mxu0
    %1937 = vmatprep.mubr.bf16.mxu0 0
    %1938 = vmatmul.mubr.bf16.gmra.mrb[0].mxu0 %v256
    %v1939 = vpop.f32.mrb[0].mxu0
    %v1940 = vadd.f32 0.0, %v1939
    %v1941 = vpop.f32.mrb[0].mxu0
    %v1942 = vpop.f32.mrb[0].mxu0
    %v1943 = vadd.f32 0.0, %v1942
    %v1944 = vpop.f32.mrb[0].mxu0
    %1945 = vmatprep.mubr.bf16.mxu0 0
    %1946 = vmatmul.mubr.bf16.gmra.mrb[0].mxu0 %v259
    %v1947 = vpop.f32.mrb[0].mxu0
    %v1948 = vadd.f32 0.0, %v1947
    %v1949 = vpop.f32.mrb[0].mxu0
    %v1950 = vpop.f32.mrb[0].mxu0
    %v1951 = vadd.f32 0.0, %v1950
    %v1952 = vpop.f32.mrb[0].mxu0
    %1953 = vdwg.mxu0
    %v1954 = vadd.f32 %v1875, %v1924
    %v1955 = vadd.f32 %v1876, %v1927
    %v1956 = vadd.f32 %v1877, %v1932
    %v1957 = vadd.f32 %v1878, %v1935
    %v1958 = vadd.f32 %v1879, %v1940
    %v1959 = vadd.f32 %v1880, %v1943
    %v1960 = vadd.f32 %v1881, %v1948
    %v1961 = vadd.f32 %v1882, %v1951
    %v1963 = vlaneseq
    %v1964 = vshrl.u32 %v1963, 7
    %v1965 = vsub.s32 0, %v1964
    %v1966 = vrot.slane %v235, %v1965
    %v1968 = vadd.f32 %v1954, %v1966
    %v1969 = vadd.f32 %v1955, %v1966
    %v1970 = vadd.f32 %v1956, %v1966
    %v1971 = vadd.f32 %v1957, %v1966
    %v1972 = vadd.f32 %v1958, %v1966
    %v1973 = vadd.f32 %v1959, %v1966
    %v1974 = vadd.f32 %v1960, %v1966
    %v1975 = vadd.f32 %v1961, %v1966
    %vm1976 = vcmp.gt.f32.partialorder %v1968, 0.0
    %vm1977 = vcmp.gt.f32.partialorder %v1969, 0.0
    %vm1978 = vcmp.gt.f32.partialorder %v1970, 0.0
    %vm1979 = vcmp.gt.f32.partialorder %v1971, 0.0
    %vm1980 = vcmp.gt.f32.partialorder %v1972, 0.0
    %vm1981 = vcmp.gt.f32.partialorder %v1973, 0.0
    %vm1982 = vcmp.gt.f32.partialorder %v1974, 0.0
    %vm1983 = vcmp.gt.f32.partialorder %v1975, 0.0
    %v1984 = vmin.f32 %v1968, 0.0
    %v1985 = vmin.f32 %v1969, 0.0
    %v1986 = vmin.f32 %v1970, 0.0
    %v1987 = vmin.f32 %v1971, 0.0
    %v1988 = vmin.f32 %v1972, 0.0
    %v1989 = vmin.f32 %v1973, 0.0
    %v1990 = vmin.f32 %v1974, 0.0
    %v1991 = vmin.f32 %v1975, 0.0
    %v1992 = vmul.f32 %v1984, 1.442695
    %v1993 = vpow.pop %v1992
    %v1994 = vmul.f32 %v1985, 1.442695
    %v1995 = vpow.pop %v1994
    %v1996 = vmul.f32 %v1986, 1.442695
    %v1997 = vpow.pop %v1996
    %v1998 = vmul.f32 %v1987, 1.442695
    %v1999 = vpow.pop %v1998
    %v2000 = vmul.f32 %v1988, 1.442695
    %v2001 = vpow.pop %v2000
    %v2002 = vmul.f32 %v1989, 1.442695
    %v2003 = vpow.pop %v2002
    %v2004 = vmul.f32 %v1990, 1.442695
    %v2005 = vpow.pop %v2004
    %v2006 = vmul.f32 %v1991, 1.442695
    %v2007 = vpow.pop %v2006
    %v2008 = vsub.f32 %v1993, 1.0
    %v2009 = vsub.f32 %v1995, 1.0
    %v2010 = vsub.f32 %v1997, 1.0
    %v2011 = vsub.f32 %v1999, 1.0
    %v2012 = vsub.f32 %v2001, 1.0
    %v2013 = vsub.f32 %v2003, 1.0
    %v2014 = vsub.f32 %v2005, 1.0
    %v2015 = vsub.f32 %v2007, 1.0
    %v2016 = vsel %vm1976, %v1968, %v2008
    %v2017 = vsel %vm1977, %v1969, %v2009
    %v2018 = vsel %vm1978, %v1970, %v2010
    %v2019 = vsel %vm1979, %v1971, %v2011
    %v2020 = vsel %vm1980, %v1972, %v2012
    %v2021 = vsel %vm1981, %v1973, %v2013
    %v2022 = vsel %vm1982, %v1974, %v2014
    %v2023 = vsel %vm1983, %v1975, %v2015
    %v2024 = vld [vmem:[#allocation14] sm:$0xf]
    %v2025 = vld [vmem:[#allocation14 + $0x4] sm:$0xf]
    %v2026 = vld [vmem:[#allocation14 + $0x8] sm:$0xf]
    %v2027 = vld [vmem:[#allocation14 + $0xc] sm:$0xf]
    %v2028 = vld [vmem:[#allocation14 + $0x10] sm:$0xf]
    %v2029 = vld [vmem:[#allocation14 + $0x14] sm:$0xf]
    %v2030 = vld [vmem:[#allocation14 + $0x18] sm:$0xf]
    %v2031 = vld [vmem:[#allocation14 + $0x1c] sm:$0xf]
    %v2032 = vld [vmem:[#allocation14 + $0x20] sm:$0xf]
    %v2033 = vld [vmem:[#allocation14 + $0x24] sm:$0xf]
    %v2034 = vld [vmem:[#allocation14 + $0x28] sm:$0xf]
    %v2035 = vld [vmem:[#allocation14 + $0x2c] sm:$0xf]
    %v2036 = vld [vmem:[#allocation14 + $0x30] sm:$0xf]
    %v2037 = vld [vmem:[#allocation14 + $0x34] sm:$0xf]
    %v2038 = vld [vmem:[#allocation14 + $0x38] sm:$0xf]
    %v2039 = vld [vmem:[#allocation14 + $0x3c] sm:$0xf]
    %v2040 = vld [vmem:[#allocation16] sm:$0xf]
    %v2041 = vld [vmem:[#allocation16 + $0x4] sm:$0xf]
    %v2042 = vld [vmem:[#allocation16 + $0x8] sm:$0xf]
    %v2043 = vld [vmem:[#allocation16 + $0xc] sm:$0xf]
    %v2044 = vld [vmem:[#allocation16 + $0x10] sm:$0xf]
    %v2045 = vld [vmem:[#allocation16 + $0x14] sm:$0xf]
    %v2046 = vld [vmem:[#allocation16 + $0x18] sm:$0xf]
    %v2047 = vld [vmem:[#allocation16 + $0x1c] sm:$0xf]
    %v2048 = vld [vmem:[#allocation16 + $0x20] sm:$0xf]
    %v2049 = vld [vmem:[#allocation16 + $0x24] sm:$0xf]
    %v2050 = vld [vmem:[#allocation16 + $0x28] sm:$0xf]
    %v2051 = vld [vmem:[#allocation16 + $0x2c] sm:$0xf]
    %v2052 = vld [vmem:[#allocation16 + $0x30] sm:$0xf]
    %v2053 = vld [vmem:[#allocation16 + $0x34] sm:$0xf]
    %v2054 = vld [vmem:[#allocation16 + $0x38] sm:$0xf]
    %v2055 = vld [vmem:[#allocation16 + $0x3c] sm:$0xf]
    %v2056 = vld [vmem:[#allocation17] sm:$0xf]
    %v2057 = vld [vmem:[#allocation17 + $0x4] sm:$0xf]
    %v2058 = vld [vmem:[#allocation17 + $0x8] sm:$0xf]
    %v2059 = vld [vmem:[#allocation17 + $0xc] sm:$0xf]
    %v2060 = vld [vmem:[#allocation17 + $0x10] sm:$0xf]
    %v2061 = vld [vmem:[#allocation17 + $0x14] sm:$0xf]
    %v2062 = vld [vmem:[#allocation17 + $0x18] sm:$0xf]
    %v2063 = vld [vmem:[#allocation17 + $0x1c] sm:$0xf]
    %v2064 = vld [vmem:[#allocation17 + $0x20] sm:$0xf]
    %v2065 = vld [vmem:[#allocation17 + $0x24] sm:$0xf]
    %v2066 = vld [vmem:[#allocation17 + $0x28] sm:$0xf]
    %v2067 = vld [vmem:[#allocation17 + $0x2c] sm:$0xf]
    %v2068 = vld [vmem:[#allocation17 + $0x30] sm:$0xf]
    %v2069 = vld [vmem:[#allocation17 + $0x34] sm:$0xf]
    %v2070 = vld [vmem:[#allocation17 + $0x38] sm:$0xf]
    %v2071 = vld [vmem:[#allocation17 + $0x3c] sm:$0xf]
    %v2072 = vld [vmem:[#allocation19] sm:$0x1]
    %v2073 = vpack.c.bf16 %v2017, %v2016
    %v2074 = vpack.c.bf16 %v2019, %v2018
    %v2075 = vpack.c.bf16 %v2021, %v2020
    %v2076 = vpack.c.bf16 %v2023, %v2022
    %v2093 = vunpack.c.l.b16 %v2024
    %v2094 = vunpack.c.l.b16 %v2025
    %v2095 = vunpack.c.l.b16 %v2026
    %v2096 = vunpack.c.l.b16 %v2027
    %v2097 = vunpack.c.l.b16 %v2028
    %v2098 = vunpack.c.l.b16 %v2029
    %v2099 = vunpack.c.l.b16 %v2030
    %v2100 = vunpack.c.l.b16 %v2031
    %v2101 = vunpack.c.l.b16 %v2032
    %v2102 = vunpack.c.l.b16 %v2033
    %v2103 = vunpack.c.l.b16 %v2034
    %v2104 = vunpack.c.l.b16 %v2035
    %v2105 = vunpack.c.l.b16 %v2036
    %v2106 = vunpack.c.l.b16 %v2037
    %v2107 = vunpack.c.l.b16 %v2038
    %v2108 = vunpack.c.l.b16 %v2039
    %v2109 = vpack.c.b16 %v2094, %v2093
    %v2110 = vpack.c.b16 %v2096, %v2095
    %v2111 = vpack.c.b16 %v2098, %v2097
    %v2112 = vpack.c.b16 %v2100, %v2099
    %v2113 = vpack.c.b16 %v2102, %v2101
    %v2114 = vpack.c.b16 %v2104, %v2103
    %v2115 = vpack.c.b16 %v2106, %v2105
    %v2116 = vpack.c.b16 %v2108, %v2107
    %2125 = vmatprep.subr.bf16.mxu0 0
    %2126 = vmatpush1.bf16.msra.mxu0 %v2109
    %2127 = vmatprep.subr.bf16.mxu0 0
    %2128 = vmatpush1.bf16.msra.mxu0 %v2110
    %2129 = vmatprep.subr.bf16.mxu0 0
    %2130 = vmatpush1.bf16.msra.mxu0 %v2111
    %2131 = vmatprep.subr.bf16.mxu0 0
    %2132 = vmatpush1.bf16.msra.mxu0 %v2112
    %2133 = vmatprep.subr.bf16.mxu0 0
    %2134 = vmatpush1.bf16.msra.mxu0 %v2113
    %2135 = vmatprep.subr.bf16.mxu0 0
    %2136 = vmatpush1.bf16.msra.mxu0 %v2114
    %2137 = vmatprep.subr.bf16.mxu0 0
    %2138 = vmatpush1.bf16.msra.mxu0 %v2115
    %2139 = vmatprep.subr.bf16.mxu0 0
    %2140 = vmatpush1.bf16.msra.mxu0 %v2116
    %2141 = vmatprep.subr.bf16.mxu0 0
    %2142 = vmatpush1.bf16.msra.mxu0 0
    %2143 = vmatprep.subr.bf16.mxu0 0
    %2144 = vmatpush1.bf16.msra.mxu0 0
    %2145 = vmatprep.subr.bf16.mxu0 0
    %2146 = vmatpush1.bf16.msra.mxu0 0
    %2147 = vmatprep.subr.bf16.mxu0 0
    %2148 = vmatpush1.bf16.msra.mxu0 0
    %2149 = vmatprep.subr.bf16.mxu0 0
    %2150 = vmatpush1.bf16.msra.mxu0 0
    %2151 = vmatprep.subr.bf16.mxu0 0
    %2152 = vmatpush1.bf16.msra.mxu0 0
    %2153 = vmatprep.subr.bf16.mxu0 0
    %2154 = vmatpush1.bf16.msra.mxu0 0
    %2155 = vmatprep.subr.bf16.mxu0 0
    %2156 = vmatpush1.bf16.msra.mxu0 0
    %2157 = vmatprep.mubr.bf16.mxu0 0
    %2158 = vmatmul.mubr.bf16.gmra.mrb[0].mxu0 %v2073
    %v2159 = vpop.f32.mrb[0].mxu0
    %v2160 = vadd.f32 0.0, %v2159
    %v2161 = vpop.f32.mrb[0].mxu0
    %v2162 = vpop.f32.mrb[0].mxu0
    %v2163 = vadd.f32 0.0, %v2162
    %v2164 = vpop.f32.mrb[0].mxu0
    %2165 = vmatprep.mubr.bf16.mxu0 0
    %2166 = vmatmul.mubr.bf16.gmra.mrb[0].mxu0 %v2074
    %v2167 = vpop.f32.mrb[0].mxu0
    %v2168 = vadd.f32 0.0, %v2167
    %v2169 = vpop.f32.mrb[0].mxu0
    %v2170 = vpop.f32.mrb[0].mxu0
    %v2171 = vadd.f32 0.0, %v2170
    %v2172 = vpop.f32.mrb[0].mxu0
    %2173 = vmatprep.mubr.bf16.mxu0 0
    %2174 = vmatmul.mubr.bf16.gmra.mrb[0].mxu0 %v2075
    %v2175 = vpop.f32.mrb[0].mxu0
    %v2176 = vadd.f32 0.0, %v2175
    %v2177 = vpop.f32.mrb[0].mxu0
    %v2178 = vpop.f32.mrb[0].mxu0
    %v2179 = vadd.f32 0.0, %v2178
    %v2180 = vpop.f32.mrb[0].mxu0
    %2181 = vmatprep.mubr.bf16.mxu0 0
    %2182 = vmatmul.mubr.bf16.gmra.mrb[0].mxu0 %v2076
    %v2183 = vpop.f32.mrb[0].mxu0
    %v2184 = vadd.f32 0.0, %v2183
    %v2185 = vpop.f32.mrb[0].mxu0
    %v2186 = vpop.f32.mrb[0].mxu0
    %v2187 = vadd.f32 0.0, %v2186
    %v2188 = vpop.f32.mrb[0].mxu0
    %2189 = vdwg.mxu0
    %v2190 = vpack.c.bf16 %v2163, %v2160
    %v2191 = vpack.c.bf16 %v2171, %v2168
    %v2192 = vpack.c.bf16 %v2179, %v2176
    %v2193 = vpack.c.bf16 %v2187, %v2184
    %v2210 = vunpack.c.l.b16 %v2040
    %v2211 = vunpack.c.l.b16 %v2041
    %v2212 = vunpack.c.l.b16 %v2042
    %v2213 = vunpack.c.l.b16 %v2043
    %v2214 = vunpack.c.l.b16 %v2044
    %v2215 = vunpack.c.l.b16 %v2045
    %v2216 = vunpack.c.l.b16 %v2046
    %v2217 = vunpack.c.l.b16 %v2047
    %v2218 = vunpack.c.l.b16 %v2048
    %v2219 = vunpack.c.l.b16 %v2049
    %v2220 = vunpack.c.l.b16 %v2050
    %v2221 = vunpack.c.l.b16 %v2051
    %v2222 = vunpack.c.l.b16 %v2052
    %v2223 = vunpack.c.l.b16 %v2053
    %v2224 = vunpack.c.l.b16 %v2054
    %v2225 = vunpack.c.l.b16 %v2055
    %v2226 = vpack.c.b16 %v2211, %v2210
    %v2227 = vpack.c.b16 %v2213, %v2212
    %v2228 = vpack.c.b16 %v2215, %v2214
    %v2229 = vpack.c.b16 %v2217, %v2216
    %v2230 = vpack.c.b16 %v2219, %v2218
    %v2231 = vpack.c.b16 %v2221, %v2220
    %v2232 = vpack.c.b16 %v2223, %v2222
    %v2233 = vpack.c.b16 %v2225, %v2224
    %2242 = vmatprep.subr.bf16.mxu0 0
    %2243 = vmatpush1.bf16.msra.mxu0 %v2226
    %2244 = vmatprep.subr.bf16.mxu0 0
    %2245 = vmatpush1.bf16.msra.mxu0 %v2227
    %2246 = vmatprep.subr.bf16.mxu0 0
    %2247 = vmatpush1.bf16.msra.mxu0 %v2228
    %2248 = vmatprep.subr.bf16.mxu0 0
    %2249 = vmatpush1.bf16.msra.mxu0 %v2229
    %2250 = vmatprep.subr.bf16.mxu0 0
    %2251 = vmatpush1.bf16.msra.mxu0 %v2230
    %2252 = vmatprep.subr.bf16.mxu0 0
    %2253 = vmatpush1.bf16.msra.mxu0 %v2231
    %2254 = vmatprep.subr.bf16.mxu0 0
    %2255 = vmatpush1.bf16.msra.mxu0 %v2232
    %2256 = vmatprep.subr.bf16.mxu0 0
    %2257 = vmatpush1.bf16.msra.mxu0 %v2233
    %2258 = vmatprep.subr.bf16.mxu0 0
    %2259 = vmatpush1.bf16.msra.mxu0 0
    %2260 = vmatprep.subr.bf16.mxu0 0
    %2261 = vmatpush1.bf16.msra.mxu0 0
    %2262 = vmatprep.subr.bf16.mxu0 0
    %2263 = vmatpush1.bf16.msra.mxu0 0
    %2264 = vmatprep.subr.bf16.mxu0 0
    %2265 = vmatpush1.bf16.msra.mxu0 0
    %2266 = vmatprep.subr.bf16.mxu0 0
    %2267 = vmatpush1.bf16.msra.mxu0 0
    %2268 = vmatprep.subr.bf16.mxu0 0
    %2269 = vmatpush1.bf16.msra.mxu0 0
    %2270 = vmatprep.subr.bf16.mxu0 0
    %2271 = vmatpush1.bf16.msra.mxu0 0
    %2272 = vmatprep.subr.bf16.mxu0 0
    %2273 = vmatpush1.bf16.msra.mxu0 0
    %2274 = vmatprep.mubr.bf16.mxu0 0
    %2275 = vmatmul.mubr.bf16.gmra.mrb[0].mxu0 %v2190
    %v2276 = vpop.f32.mrb[0].mxu0
    %v2277 = vadd.f32 0.0, %v2276
    %v2278 = vpop.f32.mrb[0].mxu0
    %v2279 = vpop.f32.mrb[0].mxu0
    %v2280 = vadd.f32 0.0, %v2279
    %v2281 = vpop.f32.mrb[0].mxu0
    %2282 = vmatprep.mubr.bf16.mxu0 0
    %2283 = vmatmul.mubr.bf16.gmra.mrb[0].mxu0 %v2191
    %v2284 = vpop.f32.mrb[0].mxu0
    %v2285 = vadd.f32 0.0, %v2284
    %v2286 = vpop.f32.mrb[0].mxu0
    %v2287 = vpop.f32.mrb[0].mxu0
    %v2288 = vadd.f32 0.0, %v2287
    %v2289 = vpop.f32.mrb[0].mxu0
    %2290 = vmatprep.mubr.bf16.mxu0 0
    %2291 = vmatmul.mubr.bf16.gmra.mrb[0].mxu0 %v2192
    %v2292 = vpop.f32.mrb[0].mxu0
    %v2293 = vadd.f32 0.0, %v2292
    %v2294 = vpop.f32.mrb[0].mxu0
    %v2295 = vpop.f32.mrb[0].mxu0
    %v2296 = vadd.f32 0.0, %v2295
    %v2297 = vpop.f32.mrb[0].mxu0
    %2298 = vmatprep.mubr.bf16.mxu0 0
    %2299 = vmatmul.mubr.bf16.gmra.mrb[0].mxu0 %v2193
    %v2300 = vpop.f32.mrb[0].mxu0
    %v2301 = vadd.f32 0.0, %v2300
    %v2302 = vpop.f32.mrb[0].mxu0
    %v2303 = vpop.f32.mrb[0].mxu0
    %v2304 = vadd.f32 0.0, %v2303
    %v2305 = vpop.f32.mrb[0].mxu0
    %2306 = vdwg.mxu0
    %v2323 = vunpack.c.l.b16 %v2056
    %v2324 = vunpack.c.l.b16 %v2057
    %v2325 = vunpack.c.l.b16 %v2058
    %v2326 = vunpack.c.l.b16 %v2059
    %v2327 = vunpack.c.l.b16 %v2060
    %v2328 = vunpack.c.l.b16 %v2061
    %v2329 = vunpack.c.l.b16 %v2062
    %v2330 = vunpack.c.l.b16 %v2063
    %v2331 = vunpack.c.l.b16 %v2064
    %v2332 = vunpack.c.l.b16 %v2065
    %v2333 = vunpack.c.l.b16 %v2066
    %v2334 = vunpack.c.l.b16 %v2067
    %v2335 = vunpack.c.l.b16 %v2068
    %v2336 = vunpack.c.l.b16 %v2069
    %v2337 = vunpack.c.l.b16 %v2070
    %v2338 = vunpack.c.l.b16 %v2071
    %v2339 = vpack.c.b16 %v2324, %v2323
    %v2340 = vpack.c.b16 %v2326, %v2325
    %v2341 = vpack.c.b16 %v2328, %v2327
    %v2342 = vpack.c.b16 %v2330, %v2329
    %v2343 = vpack.c.b16 %v2332, %v2331
    %v2344 = vpack.c.b16 %v2334, %v2333
    %v2345 = vpack.c.b16 %v2336, %v2335
    %v2346 = vpack.c.b16 %v2338, %v2337
    %2355 = vmatprep.subr.bf16.mxu0 0
    %2356 = vmatpush1.bf16.msra.mxu0 %v2339
    %2357 = vmatprep.subr.bf16.mxu0 0
    %2358 = vmatpush1.bf16.msra.mxu0 %v2340
    %2359 = vmatprep.subr.bf16.mxu0 0
    %2360 = vmatpush1.bf16.msra.mxu0 %v2341
    %2361 = vmatprep.subr.bf16.mxu0 0
    %2362 = vmatpush1.bf16.msra.mxu0 %v2342
    %2363 = vmatprep.subr.bf16.mxu0 0
    %2364 = vmatpush1.bf16.msra.mxu0 %v2343
    %2365 = vmatprep.subr.bf16.mxu0 0
    %2366 = vmatpush1.bf16.msra.mxu0 %v2344
    %2367 = vmatprep.subr.bf16.mxu0 0
    %2368 = vmatpush1.bf16.msra.mxu0 %v2345
    %2369 = vmatprep.subr.bf16.mxu0 0
    %2370 = vmatpush1.bf16.msra.mxu0 %v2346
    %2371 = vmatprep.subr.bf16.mxu0 0
    %2372 = vmatpush1.bf16.msra.mxu0 0
    %2373 = vmatprep.subr.bf16.mxu0 0
    %2374 = vmatpush1.bf16.msra.mxu0 0
    %2375 = vmatprep.subr.bf16.mxu0 0
    %2376 = vmatpush1.bf16.msra.mxu0 0
    %2377 = vmatprep.subr.bf16.mxu0 0
    %2378 = vmatpush1.bf16.msra.mxu0 0
    %2379 = vmatprep.subr.bf16.mxu0 0
    %2380 = vmatpush1.bf16.msra.mxu0 0
    %2381 = vmatprep.subr.bf16.mxu0 0
    %2382 = vmatpush1.bf16.msra.mxu0 0
    %2383 = vmatprep.subr.bf16.mxu0 0
    %2384 = vmatpush1.bf16.msra.mxu0 0
    %2385 = vmatprep.subr.bf16.mxu0 0
    %2386 = vmatpush1.bf16.msra.mxu0 0
    %2387 = vmatprep.mubr.bf16.mxu0 0
    %2388 = vmatmul.mubr.bf16.gmra.mrb[0].mxu0 %v2190
    %v2389 = vpop.f32.mrb[0].mxu0
    %v2390 = vadd.f32 0.0, %v2389
    %v2391 = vpop.f32.mrb[0].mxu0
    %v2392 = vpop.f32.mrb[0].mxu0
    %v2393 = vadd.f32 0.0, %v2392
    %v2394 = vpop.f32.mrb[0].mxu0
    %2395 = vmatprep.mubr.bf16.mxu0 0
    %2396 = vmatmul.mubr.bf16.gmra.mrb[0].mxu0 %v2191
    %v2397 = vpop.f32.mrb[0].mxu0
    %v2398 = vadd.f32 0.0, %v2397
    %v2399 = vpop.f32.mrb[0].mxu0
    %v2400 = vpop.f32.mrb[0].mxu0
    %v2401 = vadd.f32 0.0, %v2400
    %v2402 = vpop.f32.mrb[0].mxu0
    %2403 = vmatprep.mubr.bf16.mxu0 0
    %2404 = vmatmul.mubr.bf16.gmra.mrb[0].mxu0 %v2192
    %v2405 = vpop.f32.mrb[0].mxu0
    %v2406 = vadd.f32 0.0, %v2405
    %v2407 = vpop.f32.mrb[0].mxu0
    %v2408 = vpop.f32.mrb[0].mxu0
    %v2409 = vadd.f32 0.0, %v2408
    %v2410 = vpop.f32.mrb[0].mxu0
    %2411 = vmatprep.mubr.bf16.mxu0 0
    %2412 = vmatmul.mubr.bf16.gmra.mrb[0].mxu0 %v2193
    %v2413 = vpop.f32.mrb[0].mxu0
    %v2414 = vadd.f32 0.0, %v2413
    %v2415 = vpop.f32.mrb[0].mxu0
    %v2416 = vpop.f32.mrb[0].mxu0
    %v2417 = vadd.f32 0.0, %v2416
    %v2418 = vpop.f32.mrb[0].mxu0
    %2419 = vdwg.mxu0
    %2420 = vxpose.xlu0.b32.start [1/16] %v2277, 128
    %2421 = vxpose.xlu0.b32.cont [2/16] %v2280, 128
    %2422 = vxpose.xlu0.b32.cont [3/16] %v2285, 128
    %2423 = vxpose.xlu0.b32.cont [4/16] %v2288, 128
    %2424 = vxpose.xlu0.b32.cont [5/16] %v2293, 128
    %2425 = vxpose.xlu0.b32.cont [6/16] %v2296, 128
    %2426 = vxpose.xlu0.b32.cont [7/16] %v2301, 128
    %2427 = vxpose.xlu0.b32.cont [8/16] %v2304, 128
    %2428 = vxpose.xlu0.b32.cont [9/16] 0.0, 128
    %2429 = vxpose.xlu0.b32.cont [10/16] 0.0, 128
    %2430 = vxpose.xlu0.b32.cont [11/16] 0.0, 128
    %2431 = vxpose.xlu0.b32.cont [12/16] 0.0, 128
    %2432 = vxpose.xlu0.b32.cont [13/16] 0.0, 128
    %2433 = vxpose.xlu0.b32.cont [14/16] 0.0, 128
    %2434 = vxpose.xlu0.b32.cont [15/16] 0.0, 128
    %2435 = vxpose.xlu0.b32.end [16/16] 0.0, 128
    %v2436 = vpop.trf.xlu0
    %v2437 = vpop.trf.xlu0
    %v2438 = vpop.trf.xlu0
    %v2439 = vpop.trf.xlu0
    %v2440 = vpop.trf.xlu0
    %v2441 = vpop.trf.xlu0
    %v2442 = vpop.trf.xlu0
    %v2443 = vpop.trf.xlu0
    %v2444 = vpop.trf.xlu0
    %v2445 = vpop.trf.xlu0
    %v2446 = vpop.trf.xlu0
    %v2447 = vpop.trf.xlu0
    %v2448 = vpop.trf.xlu0
    %v2449 = vpop.trf.xlu0
    %v2450 = vpop.trf.xlu0
    %v2451 = vpop.trf.xlu0
    %2453 = vset.pattern.permute.xlu0 0
    %2454 = vperm.xlu0 %2453, %v2390
    %v2455 = vpop.permute.xlu0 %2454
    %2458 = vset.pattern.permute.xlu0 0
    %2459 = vperm.xlu0 %2458, %v2393
    %v2460 = vpop.permute.xlu0 %2459
    %2463 = vset.pattern.permute.xlu0 0
    %2464 = vperm.xlu0 %2463, %v2398
    %v2465 = vpop.permute.xlu0 %2464
    %2468 = vset.pattern.permute.xlu0 0
    %2469 = vperm.xlu0 %2468, %v2401
    %v2470 = vpop.permute.xlu0 %2469
    %2473 = vset.pattern.permute.xlu0 0
    %2474 = vperm.xlu0 %2473, %v2406
    %v2475 = vpop.permute.xlu0 %2474
    %2478 = vset.pattern.permute.xlu0 0
    %2479 = vperm.xlu0 %2478, %v2409
    %v2480 = vpop.permute.xlu0 %2479
    %2483 = vset.pattern.permute.xlu0 0
    %2484 = vperm.xlu0 %2483, %v2414
    %v2485 = vpop.permute.xlu0 %2484
    %2488 = vset.pattern.permute.xlu0 0
    %2489 = vperm.xlu0 %2488, %v2417
    %v2490 = vpop.permute.xlu0 %2489
    %v2492 = vlaneseq
    %v2493 = vshrl.u32 %v2492, 7
    %v2494 = vsub.s32 0, %v2493
    %v2495 = vrot.slane %v2436, %v2494
    %v2496 = vadd.f32 %v2455, %v2495
    %v2497 = vadd.f32 %v2460, %v2495
    %v2498 = vadd.f32 %v2465, %v2495
    %v2499 = vadd.f32 %v2470, %v2495
    %v2500 = vadd.f32 %v2475, %v2495
    %v2501 = vadd.f32 %v2480, %v2495
    %v2502 = vadd.f32 %v2485, %v2495
    %v2503 = vadd.f32 %v2490, %v2495
    %v2504 = vmul.f32 %v2496, 0.2
    %v2505 = vmul.f32 %v2497, 0.2
    %v2506 = vmul.f32 %v2498, 0.2
    %v2507 = vmul.f32 %v2499, 0.2
    %v2508 = vmul.f32 %v2500, 0.2
    %v2509 = vmul.f32 %v2501, 0.2
    %v2510 = vmul.f32 %v2502, 0.2
    %v2511 = vmul.f32 %v2503, 0.2
    %v2512 = vmax.f32 %v2496, %v2504
    %v2513 = vmax.f32 %v2497, %v2505
    %v2514 = vmax.f32 %v2498, %v2506
    %v2515 = vmax.f32 %v2499, %v2507
    %v2516 = vmax.f32 %v2500, %v2508
    %v2517 = vmax.f32 %v2501, %v2509
    %v2518 = vmax.f32 %v2502, %v2510
    %v2519 = vmax.f32 %v2503, %v2511
    %v2520 = vadd.f32 %v2512, %v185
    %v2521 = vadd.f32 %v2513, %v186
    %v2522 = vadd.f32 %v2514, %v187
    %v2523 = vadd.f32 %v2515, %v188
    %v2524 = vadd.f32 %v2516, %v189
    %v2525 = vadd.f32 %v2517, %v190
    %v2526 = vadd.f32 %v2518, %v191
    %v2527 = vadd.f32 %v2519, %v192
    %v2528 = vsel %vm664, %v2520, -inf
    %2529 = vmax.xlane.f32.xlu0 %v2528
    %v2530 = vpop.xlane.xlu0 %2529
    %v2531 = vsel %vm664, %v2521, -inf
    %2532 = vmax.xlane.f32.xlu0 %v2531
    %v2533 = vpop.xlane.xlu0 %2532
    %v2534 = vsel %vm664, %v2522, -inf
    %2535 = vmax.xlane.f32.xlu0 %v2534
    %v2536 = vpop.xlane.xlu0 %2535
    %v2537 = vsel %vm664, %v2523, -inf
    %2538 = vmax.xlane.f32.xlu0 %v2537
    %v2539 = vpop.xlane.xlu0 %2538
    %v2540 = vsel %vm664, %v2524, -inf
    %2541 = vmax.xlane.f32.xlu0 %v2540
    %v2542 = vpop.xlane.xlu0 %2541
    %v2543 = vsel %vm664, %v2525, -inf
    %2544 = vmax.xlane.f32.xlu0 %v2543
    %v2545 = vpop.xlane.xlu0 %2544
    %v2546 = vsel %vm664, %v2526, -inf
    %2547 = vmax.xlane.f32.xlu0 %v2546
    %v2548 = vpop.xlane.xlu0 %2547
    %v2549 = vsel %vm664, %v2527, -inf
    %2550 = vmax.xlane.f32.xlu0 %v2549
    %v2551 = vpop.xlane.xlu0 %2550
    %v2552 = vsub.f32 %v2520, %v2530
    %v2553 = vsub.f32 %v2521, %v2533
    %v2554 = vsub.f32 %v2522, %v2536
    %v2555 = vsub.f32 %v2523, %v2539
    %v2556 = vsub.f32 %v2524, %v2542
    %v2557 = vsub.f32 %v2525, %v2545
    %v2558 = vsub.f32 %v2526, %v2548
    %v2559 = vsub.f32 %v2527, %v2551
    %v2560 = vmul.f32 %v2552, 1.442695
    %v2561 = vpow.pop %v2560
    %v2562 = vmul.f32 %v2553, 1.442695
    %v2563 = vpow.pop %v2562
    %v2564 = vmul.f32 %v2554, 1.442695
    %v2565 = vpow.pop %v2564
    %v2566 = vmul.f32 %v2555, 1.442695
    %v2567 = vpow.pop %v2566
    %v2568 = vmul.f32 %v2556, 1.442695
    %v2569 = vpow.pop %v2568
    %v2570 = vmul.f32 %v2557, 1.442695
    %v2571 = vpow.pop %v2570
    %v2572 = vmul.f32 %v2558, 1.442695
    %v2573 = vpow.pop %v2572
    %v2574 = vmul.f32 %v2559, 1.442695
    %v2575 = vpow.pop %v2574
    %v2576 = vsel %vm664, %v2561, 0.0
    %2577 = vadd.xlane.f32.xlu0 %v2576
    %v2578 = vpop.xlane.xlu0 %2577
    %v2579 = vsel %vm664, %v2563, 0.0
    %2580 = vadd.xlane.f32.xlu0 %v2579
    %v2581 = vpop.xlane.xlu0 %2580
    %v2582 = vsel %vm664, %v2565, 0.0
    %2583 = vadd.xlane.f32.xlu0 %v2582
    %v2584 = vpop.xlane.xlu0 %2583
    %v2585 = vsel %vm664, %v2567, 0.0
    %2586 = vadd.xlane.f32.xlu0 %v2585
    %v2587 = vpop.xlane.xlu0 %2586
    %v2588 = vsel %vm664, %v2569, 0.0
    %2589 = vadd.xlane.f32.xlu0 %v2588
    %v2590 = vpop.xlane.xlu0 %2589
    %v2591 = vsel %vm664, %v2571, 0.0
    %2592 = vadd.xlane.f32.xlu0 %v2591
    %v2593 = vpop.xlane.xlu0 %2592
    %v2594 = vsel %vm664, %v2573, 0.0
    %2595 = vadd.xlane.f32.xlu0 %v2594
    %v2596 = vpop.xlane.xlu0 %2595
    %v2597 = vsel %vm664, %v2575, 0.0
    %2598 = vadd.xlane.f32.xlu0 %v2597
    %v2599 = vpop.xlane.xlu0 %2598
    %v2600 = vpack.c.bf16 %v2563, %v2561
    %v2601 = vpack.c.bf16 %v2567, %v2565
    %v2602 = vpack.c.bf16 %v2571, %v2569
    %v2603 = vpack.c.bf16 %v2575, %v2573
    %v2605 = vsel %vm664, %v2600, 0
    %v2608 = vsel %vm664, %v2601, 0
    %v2611 = vsel %vm664, %v2602, 0
    %v2614 = vsel %vm664, %v2603, 0
    %2616 = vmatprep.subr.bf16.mxu0 0
    %2617 = vmatpush1.bf16.msra.mxu0 %v2190
    %2618 = vmatprep.subr.bf16.mxu0 0
    %2619 = vmatpush1.bf16.msra.mxu0 %v2191
    %2620 = vmatprep.subr.bf16.mxu0 0
    %2621 = vmatpush1.bf16.msra.mxu0 %v2192
    %2622 = vmatprep.subr.bf16.mxu0 0
    %2623 = vmatpush1.bf16.msra.mxu0 %v2193
    %2624 = vmatprep.subr.bf16.mxu0 0
    %2625 = vmatpush1.bf16.msra.mxu0 0
    %2626 = vmatprep.subr.bf16.mxu0 0
    %2627 = vmatpush1.bf16.msra.mxu0 0
    %2628 = vmatprep.subr.bf16.mxu0 0
    %2629 = vmatpush1.bf16.msra.mxu0 0
    %2630 = vmatprep.subr.bf16.mxu0 0
    %2631 = vmatpush1.bf16.msra.mxu0 0
    %2632 = vmatprep.subr.bf16.mxu0 0
    %2633 = vmatpush1.bf16.msra.mxu0 0
    %2634 = vmatprep.subr.bf16.mxu0 0
    %2635 = vmatpush1.bf16.msra.mxu0 0
    %2636 = vmatprep.subr.bf16.mxu0 0
    %2637 = vmatpush1.bf16.msra.mxu0 0
    %2638 = vmatprep.subr.bf16.mxu0 0
    %2639 = vmatpush1.bf16.msra.mxu0 0
    %2640 = vmatprep.subr.bf16.mxu0 0
    %2641 = vmatpush1.bf16.msra.mxu0 0
    %2642 = vmatprep.subr.bf16.mxu0 0
    %2643 = vmatpush1.bf16.msra.mxu0 0
    %2644 = vmatprep.subr.bf16.mxu0 0
    %2645 = vmatpush1.bf16.msra.mxu0 0
    %2646 = vmatprep.subr.bf16.mxu0 0
    %2647 = vmatpush1.bf16.msra.mxu0 0
    %2648 = vmatprep.mubr.bf16.mxu0 0
    %2649 = vmatmul.mubr.bf16.gmra.mrb[0].mxu0 %v2605
    %v2650 = vpop.f32.mrb[0].mxu0
    %v2651 = vadd.f32 0.0, %v2650
    %v2652 = vpop.f32.mrb[0].mxu0
    %v2653 = vpop.f32.mrb[0].mxu0
    %v2654 = vadd.f32 0.0, %v2653
    %v2655 = vpop.f32.mrb[0].mxu0
    %2656 = vmatprep.mubr.bf16.mxu0 0
    %2657 = vmatmul.mubr.bf16.gmra.mrb[0].mxu0 %v2608
    %v2658 = vpop.f32.mrb[0].mxu0
    %v2659 = vadd.f32 0.0, %v2658
    %v2660 = vpop.f32.mrb[0].mxu0
    %v2661 = vpop.f32.mrb[0].mxu0
    %v2662 = vadd.f32 0.0, %v2661
    %v2663 = vpop.f32.mrb[0].mxu0
    %2664 = vmatprep.mubr.bf16.mxu0 0
    %2665 = vmatmul.mubr.bf16.gmra.mrb[0].mxu0 %v2611
    %v2666 = vpop.f32.mrb[0].mxu0
    %v2667 = vadd.f32 0.0, %v2666
    %v2668 = vpop.f32.mrb[0].mxu0
    %v2669 = vpop.f32.mrb[0].mxu0
    %v2670 = vadd.f32 0.0, %v2669
    %v2671 = vpop.f32.mrb[0].mxu0
    %2672 = vmatprep.mubr.bf16.mxu0 0
    %2673 = vmatmul.mubr.bf16.gmra.mrb[0].mxu0 %v2614
    %v2674 = vpop.f32.mrb[0].mxu0
    %v2675 = vadd.f32 0.0, %v2674
    %v2676 = vpop.f32.mrb[0].mxu0
    %v2677 = vpop.f32.mrb[0].mxu0
    %v2678 = vadd.f32 0.0, %v2677
    %v2679 = vpop.f32.mrb[0].mxu0
    %2680 = vdwg.mxu0
    %v2681 = vrcp.pop %v2578
    %v2682 = vrcp.pop %v2581
    %v2683 = vrcp.pop %v2584
    %v2684 = vrcp.pop %v2587
    %v2685 = vrcp.pop %v2590
    %v2686 = vrcp.pop %v2593
    %v2687 = vrcp.pop %v2596
    %v2688 = vrcp.pop %v2599
    %v2689 = vmul.f32 %v2651, %v2681
    %v2690 = vmul.f32 %v2654, %v2682
    %v2691 = vmul.f32 %v2659, %v2683
    %v2692 = vmul.f32 %v2662, %v2684
    %v2693 = vmul.f32 %v2667, %v2685
    %v2694 = vmul.f32 %v2670, %v2686
    %v2695 = vmul.f32 %v2675, %v2687
    %v2696 = vmul.f32 %v2678, %v2688
    %2705 = vrot.lane.b32.xlu0 %v2277, 127
    %v2706 = vpop.permute.xlu0 %2705
    %2707 = vrot.lane.b32.xlu0 %v2280, 127
    %v2708 = vpop.permute.xlu0 %2707
    %2709 = vrot.lane.b32.xlu0 %v2285, 127
    %v2710 = vpop.permute.xlu0 %2709
    %2711 = vrot.lane.b32.xlu0 %v2288, 127
    %v2712 = vpop.permute.xlu0 %2711
    %2713 = vrot.lane.b32.xlu0 %v2293, 127
    %v2714 = vpop.permute.xlu0 %2713
    %2715 = vrot.lane.b32.xlu0 %v2296, 127
    %v2716 = vpop.permute.xlu0 %2715
    %2717 = vrot.lane.b32.xlu0 %v2301, 127
    %v2718 = vpop.permute.xlu0 %2717
    %2719 = vrot.lane.b32.xlu0 %v2304, 127
    %v2720 = vpop.permute.xlu0 %2719
    %2729 = vxpose.xlu0.b32.start [1/16] %v2706, 128
    %2730 = vxpose.xlu0.b32.cont [2/16] %v2708, 128
    %2731 = vxpose.xlu0.b32.cont [3/16] %v2710, 128
    %2732 = vxpose.xlu0.b32.cont [4/16] %v2712, 128
    %2733 = vxpose.xlu0.b32.cont [5/16] %v2714, 128
    %2734 = vxpose.xlu0.b32.cont [6/16] %v2716, 128
    %2735 = vxpose.xlu0.b32.cont [7/16] %v2718, 128
    %2736 = vxpose.xlu0.b32.cont [8/16] %v2720, 128
    %2737 = vxpose.xlu0.b32.cont [9/16] 0.0, 128
    %2738 = vxpose.xlu0.b32.cont [10/16] 0.0, 128
    %2739 = vxpose.xlu0.b32.cont [11/16] 0.0, 128
    %2740 = vxpose.xlu0.b32.cont [12/16] 0.0, 128
    %2741 = vxpose.xlu0.b32.cont [13/16] 0.0, 128
    %2742 = vxpose.xlu0.b32.cont [14/16] 0.0, 128
    %2743 = vxpose.xlu0.b32.cont [15/16] 0.0, 128
    %2744 = vxpose.xlu0.b32.end [16/16] 0.0, 128
    %v2745 = vpop.trf.xlu0
    %v2746 = vpop.trf.xlu0
    %v2747 = vpop.trf.xlu0
    %v2748 = vpop.trf.xlu0
    %v2749 = vpop.trf.xlu0
    %v2750 = vpop.trf.xlu0
    %v2751 = vpop.trf.xlu0
    %v2752 = vpop.trf.xlu0
    %v2753 = vpop.trf.xlu0
    %v2754 = vpop.trf.xlu0
    %v2755 = vpop.trf.xlu0
    %v2756 = vpop.trf.xlu0
    %v2757 = vpop.trf.xlu0
    %v2758 = vpop.trf.xlu0
    %v2759 = vpop.trf.xlu0
    %v2760 = vpop.trf.xlu0
    %2761 = vset.pattern.permute.xlu0 1
    %2762 = vperm.xlu0 %2761, %v2390
    %v2763 = vpop.permute.xlu0 %2762
    %2765 = vset.pattern.permute.xlu0 1
    %2766 = vperm.xlu0 %2765, %v2393
    %v2767 = vpop.permute.xlu0 %2766
    %2769 = vset.pattern.permute.xlu0 1
    %2770 = vperm.xlu0 %2769, %v2398
    %v2771 = vpop.permute.xlu0 %2770
    %2773 = vset.pattern.permute.xlu0 1
    %2774 = vperm.xlu0 %2773, %v2401
    %v2775 = vpop.permute.xlu0 %2774
    %2777 = vset.pattern.permute.xlu0 1
    %2778 = vperm.xlu0 %2777, %v2406
    %v2779 = vpop.permute.xlu0 %2778
    %2781 = vset.pattern.permute.xlu0 1
    %2782 = vperm.xlu0 %2781, %v2409
    %v2783 = vpop.permute.xlu0 %2782
    %2785 = vset.pattern.permute.xlu0 1
    %2786 = vperm.xlu0 %2785, %v2414
    %v2787 = vpop.permute.xlu0 %2786
    %2789 = vset.pattern.permute.xlu0 1
    %2790 = vperm.xlu0 %2789, %v2417
    %v2791 = vpop.permute.xlu0 %2790
    %v2793 = vlaneseq
    %v2794 = vshrl.u32 %v2793, 7
    %v2795 = vsub.s32 0, %v2794
    %v2796 = vrot.slane %v2745, %v2795
    %v2797 = vadd.f32 %v2763, %v2796
    %v2798 = vadd.f32 %v2767, %v2796
    %v2799 = vadd.f32 %v2771, %v2796
    %v2800 = vadd.f32 %v2775, %v2796
    %v2801 = vadd.f32 %v2779, %v2796
    %v2802 = vadd.f32 %v2783, %v2796
    %v2803 = vadd.f32 %v2787, %v2796
    %v2804 = vadd.f32 %v2791, %v2796
    %v2805 = vmul.f32 %v2797, 0.2
    %v2806 = vmul.f32 %v2798, 0.2
    %v2807 = vmul.f32 %v2799, 0.2
    %v2808 = vmul.f32 %v2800, 0.2
    %v2809 = vmul.f32 %v2801, 0.2
    %v2810 = vmul.f32 %v2802, 0.2
    %v2811 = vmul.f32 %v2803, 0.2
    %v2812 = vmul.f32 %v2804, 0.2
    %v2813 = vmax.f32 %v2797, %v2805
    %v2814 = vmax.f32 %v2798, %v2806
    %v2815 = vmax.f32 %v2799, %v2807
    %v2816 = vmax.f32 %v2800, %v2808
    %v2817 = vmax.f32 %v2801, %v2809
    %v2818 = vmax.f32 %v2802, %v2810
    %v2819 = vmax.f32 %v2803, %v2811
    %v2820 = vmax.f32 %v2804, %v2812
    %v2821 = vadd.f32 %v2813, %v185
    %v2822 = vadd.f32 %v2814, %v186
    %v2823 = vadd.f32 %v2815, %v187
    %v2824 = vadd.f32 %v2816, %v188
    %v2825 = vadd.f32 %v2817, %v189
    %v2826 = vadd.f32 %v2818, %v190
    %v2827 = vadd.f32 %v2819, %v191
    %v2828 = vadd.f32 %v2820, %v192
    %v2829 = vsel %vm664, %v2821, -inf
    %2830 = vmax.xlane.f32.xlu0 %v2829
    %v2831 = vpop.xlane.xlu0 %2830
    %v2832 = vsel %vm664, %v2822, -inf
    %2833 = vmax.xlane.f32.xlu0 %v2832
    %v2834 = vpop.xlane.xlu0 %2833
    %v2835 = vsel %vm664, %v2823, -inf
    %2836 = vmax.xlane.f32.xlu0 %v2835
    %v2837 = vpop.xlane.xlu0 %2836
    %v2838 = vsel %vm664, %v2824, -inf
    %2839 = vmax.xlane.f32.xlu0 %v2838
    %v2840 = vpop.xlane.xlu0 %2839
    %v2841 = vsel %vm664, %v2825, -inf
    %2842 = vmax.xlane.f32.xlu0 %v2841
    %v2843 = vpop.xlane.xlu0 %2842
    %v2844 = vsel %vm664, %v2826, -inf
    %2845 = vmax.xlane.f32.xlu0 %v2844
    %v2846 = vpop.xlane.xlu0 %2845
    %v2847 = vsel %vm664, %v2827, -inf
    %2848 = vmax.xlane.f32.xlu0 %v2847
    %v2849 = vpop.xlane.xlu0 %2848
    %v2850 = vsel %vm664, %v2828, -inf
    %2851 = vmax.xlane.f32.xlu0 %v2850
    %v2852 = vpop.xlane.xlu0 %2851
    %v2853 = vsub.f32 %v2821, %v2831
    %v2854 = vsub.f32 %v2822, %v2834
    %v2855 = vsub.f32 %v2823, %v2837
    %v2856 = vsub.f32 %v2824, %v2840
    %v2857 = vsub.f32 %v2825, %v2843
    %v2858 = vsub.f32 %v2826, %v2846
    %v2859 = vsub.f32 %v2827, %v2849
    %v2860 = vsub.f32 %v2828, %v2852
    %v2861 = vmul.f32 %v2853, 1.442695
    %v2862 = vpow.pop %v2861
    %v2863 = vmul.f32 %v2854, 1.442695
    %v2864 = vpow.pop %v2863
    %v2865 = vmul.f32 %v2855, 1.442695
    %v2866 = vpow.pop %v2865
    %v2867 = vmul.f32 %v2856, 1.442695
    %v2868 = vpow.pop %v2867
    %v2869 = vmul.f32 %v2857, 1.442695
    %v2870 = vpow.pop %v2869
    %v2871 = vmul.f32 %v2858, 1.442695
    %v2872 = vpow.pop %v2871
    %v2873 = vmul.f32 %v2859, 1.442695
    %v2874 = vpow.pop %v2873
    %v2875 = vmul.f32 %v2860, 1.442695
    %v2876 = vpow.pop %v2875
    %v2877 = vsel %vm664, %v2862, 0.0
    %2878 = vadd.xlane.f32.xlu0 %v2877
    %v2879 = vpop.xlane.xlu0 %2878
    %v2880 = vsel %vm664, %v2864, 0.0
    %2881 = vadd.xlane.f32.xlu0 %v2880
    %v2882 = vpop.xlane.xlu0 %2881
    %v2883 = vsel %vm664, %v2866, 0.0
    %2884 = vadd.xlane.f32.xlu0 %v2883
    %v2885 = vpop.xlane.xlu0 %2884
    %v2886 = vsel %vm664, %v2868, 0.0
    %2887 = vadd.xlane.f32.xlu0 %v2886
    %v2888 = vpop.xlane.xlu0 %2887
    %v2889 = vsel %vm664, %v2870, 0.0
    %2890 = vadd.xlane.f32.xlu0 %v2889
    %v2891 = vpop.xlane.xlu0 %2890
    %v2892 = vsel %vm664, %v2872, 0.0
    %2893 = vadd.xlane.f32.xlu0 %v2892
    %v2894 = vpop.xlane.xlu0 %2893
    %v2895 = vsel %vm664, %v2874, 0.0
    %2896 = vadd.xlane.f32.xlu0 %v2895
    %v2897 = vpop.xlane.xlu0 %2896
    %v2898 = vsel %vm664, %v2876, 0.0
    %2899 = vadd.xlane.f32.xlu0 %v2898
    %v2900 = vpop.xlane.xlu0 %2899
    %v2901 = vpack.c.bf16 %v2864, %v2862
    %v2902 = vpack.c.bf16 %v2868, %v2866
    %v2903 = vpack.c.bf16 %v2872, %v2870
    %v2904 = vpack.c.bf16 %v2876, %v2874
    %2909 = vrot.lane.b32.xlu0 %v2190, 96
    %v2910 = vpop.permute.xlu0 %2909
    %2911 = vrot.lane.b32.xlu0 %v2191, 96
    %v2912 = vpop.permute.xlu0 %2911
    %2913 = vrot.lane.b32.xlu0 %v2192, 96
    %v2914 = vpop.permute.xlu0 %2913
    %2915 = vrot.lane.b32.xlu0 %v2193, 96
    %v2916 = vpop.permute.xlu0 %2915
    %v2922 = vsel %vm664, %v2901, 0
    %v2925 = vsel %vm664, %v2902, 0
    %v2928 = vsel %vm664, %v2903, 0
    %v2931 = vsel %vm664, %v2904, 0
    %2933 = vmatprep.subr.bf16.mxu0 0
    %2934 = vmatpush1.bf16.msra.mxu0 %v2910
    %2935 = vmatprep.subr.bf16.mxu0 0
    %2936 = vmatpush1.bf16.msra.mxu0 %v2912
    %2937 = vmatprep.subr.bf16.mxu0 0
    %2938 = vmatpush1.bf16.msra.mxu0 %v2914
    %2939 = vmatprep.subr.bf16.mxu0 0
    %2940 = vmatpush1.bf16.msra.mxu0 %v2916
    %2941 = vmatprep.subr.bf16.mxu0 0
    %2942 = vmatpush1.bf16.msra.mxu0 0
    %2943 = vmatprep.subr.bf16.mxu0 0
    %2944 = vmatpush1.bf16.msra.mxu0 0
    %2945 = vmatprep.subr.bf16.mxu0 0
    %2946 = vmatpush1.bf16.msra.mxu0 0
    %2947 = vmatprep.subr.bf16.mxu0 0
    %2948 = vmatpush1.bf16.msra.mxu0 0
    %2949 = vmatprep.subr.bf16.mxu0 0
    %2950 = vmatpush1.bf16.msra.mxu0 0
    %2951 = vmatprep.subr.bf16.mxu0 0
    %2952 = vmatpush1.bf16.msra.mxu0 0
    %2953 = vmatprep.subr.bf16.mxu0 0
    %2954 = vmatpush1.bf16.msra.mxu0 0
    %2955 = vmatprep.subr.bf16.mxu0 0
    %2956 = vmatpush1.bf16.msra.mxu0 0
    %2957 = vmatprep.subr.bf16.mxu0 0
    %2958 = vmatpush1.bf16.msra.mxu0 0
    %2959 = vmatprep.subr.bf16.mxu0 0
    %2960 = vmatpush1.bf16.msra.mxu0 0
    %2961 = vmatprep.subr.bf16.mxu0 0
    %2962 = vmatpush1.bf16.msra.mxu0 0
    %2963 = vmatprep.subr.bf16.mxu0 0
    %2964 = vmatpush1.bf16.msra.mxu0 0
    %2965 = vmatprep.mubr.bf16.mxu0 0
    %2966 = vmatmul.mubr.bf16.gmra.mrb[0].mxu0 %v2922
    %v2967 = vpop.f32.mrb[0].mxu0
    %v2968 = vadd.f32 0.0, %v2967
    %v2969 = vpop.f32.mrb[0].mxu0
    %v2970 = vpop.f32.mrb[0].mxu0
    %v2971 = vadd.f32 0.0, %v2970
    %v2972 = vpop.f32.mrb[0].mxu0
    %2973 = vmatprep.mubr.bf16.mxu0 0
    %2974 = vmatmul.mubr.bf16.gmra.mrb[0].mxu0 %v2925
    %v2975 = vpop.f32.mrb[0].mxu0
    %v2976 = vadd.f32 0.0, %v2975
    %v2977 = vpop.f32.mrb[0].mxu0
    %v2978 = vpop.f32.mrb[0].mxu0
    %v2979 = vadd.f32 0.0, %v2978
    %v2980 = vpop.f32.mrb[0].mxu0
    %2981 = vmatprep.mubr.bf16.mxu0 0
    %2982 = vmatmul.mubr.bf16.gmra.mrb[0].mxu0 %v2928
    %v2983 = vpop.f32.mrb[0].mxu0
    %v2984 = vadd.f32 0.0, %v2983
    %v2985 = vpop.f32.mrb[0].mxu0
    %v2986 = vpop.f32.mrb[0].mxu0
    %v2987 = vadd.f32 0.0, %v2986
    %v2988 = vpop.f32.mrb[0].mxu0
    %2989 = vmatprep.mubr.bf16.mxu0 0
    %2990 = vmatmul.mubr.bf16.gmra.mrb[0].mxu0 %v2931
    %v2991 = vpop.f32.mrb[0].mxu0
    %v2992 = vadd.f32 0.0, %v2991
    %v2993 = vpop.f32.mrb[0].mxu0
    %v2994 = vpop.f32.mrb[0].mxu0
    %v2995 = vadd.f32 0.0, %v2994
    %v2996 = vpop.f32.mrb[0].mxu0
    %2997 = vdwg.mxu0
    %v2998 = vrcp.pop %v2879
    %v2999 = vrcp.pop %v2882
    %v3000 = vrcp.pop %v2885
    %v3001 = vrcp.pop %v2888
    %v3002 = vrcp.pop %v2891
    %v3003 = vrcp.pop %v2894
    %v3004 = vrcp.pop %v2897
    %v3005 = vrcp.pop %v2900
    %v3006 = vmul.f32 %v2968, %v2998
    %v3007 = vmul.f32 %v2971, %v2999
    %v3008 = vmul.f32 %v2976, %v3000
    %v3009 = vmul.f32 %v2979, %v3001
    %v3010 = vmul.f32 %v2984, %v3002
    %v3011 = vmul.f32 %v2987, %v3003
    %v3012 = vmul.f32 %v2992, %v3004
    %v3013 = vmul.f32 %v2995, %v3005
    %3014 = vrot.lane.b32.xlu0 %v2277, 126
    %v3015 = vpop.permute.xlu0 %3014
    %3016 = vrot.lane.b32.xlu0 %v2280, 126
    %v3017 = vpop.permute.xlu0 %3016
    %3018 = vrot.lane.b32.xlu0 %v2285, 126
    %v3019 = vpop.permute.xlu0 %3018
    %3020 = vrot.lane.b32.xlu0 %v2288, 126
    %v3021 = vpop.permute.xlu0 %3020
    %3022 = vrot.lane.b32.xlu0 %v2293, 126
    %v3023 = vpop.permute.xlu0 %3022
    %3024 = vrot.lane.b32.xlu0 %v2296, 126
    %v3025 = vpop.permute.xlu0 %3024
    %3026 = vrot.lane.b32.xlu0 %v2301, 126
    %v3027 = vpop.permute.xlu0 %3026
    %3028 = vrot.lane.b32.xlu0 %v2304, 126
    %v3029 = vpop.permute.xlu0 %3028
    %3038 = vxpose.xlu0.b32.start [1/16] %v3015, 128
    %3039 = vxpose.xlu0.b32.cont [2/16] %v3017, 128
    %3040 = vxpose.xlu0.b32.cont [3/16] %v3019, 128
    %3041 = vxpose.xlu0.b32.cont [4/16] %v3021, 128
    %3042 = vxpose.xlu0.b32.cont [5/16] %v3023, 128
    %3043 = vxpose.xlu0.b32.cont [6/16] %v3025, 128
    %3044 = vxpose.xlu0.b32.cont [7/16] %v3027, 128
    %3045 = vxpose.xlu0.b32.cont [8/16] %v3029, 128
    %3046 = vxpose.xlu0.b32.cont [9/16] 0.0, 128
    %3047 = vxpose.xlu0.b32.cont [10/16] 0.0, 128
    %3048 = vxpose.xlu0.b32.cont [11/16] 0.0, 128
    %3049 = vxpose.xlu0.b32.cont [12/16] 0.0, 128
    %3050 = vxpose.xlu0.b32.cont [13/16] 0.0, 128
    %3051 = vxpose.xlu0.b32.cont [14/16] 0.0, 128
    %3052 = vxpose.xlu0.b32.cont [15/16] 0.0, 128
    %3053 = vxpose.xlu0.b32.end [16/16] 0.0, 128
    %v3054 = vpop.trf.xlu0
    %v3055 = vpop.trf.xlu0
    %v3056 = vpop.trf.xlu0
    %v3057 = vpop.trf.xlu0
    %v3058 = vpop.trf.xlu0
    %v3059 = vpop.trf.xlu0
    %v3060 = vpop.trf.xlu0
    %v3061 = vpop.trf.xlu0
    %v3062 = vpop.trf.xlu0
    %v3063 = vpop.trf.xlu0
    %v3064 = vpop.trf.xlu0
    %v3065 = vpop.trf.xlu0
    %v3066 = vpop.trf.xlu0
    %v3067 = vpop.trf.xlu0
    %v3068 = vpop.trf.xlu0
    %v3069 = vpop.trf.xlu0
    %3070 = vset.pattern.permute.xlu0 2
    %3071 = vperm.xlu0 %3070, %v2390
    %v3072 = vpop.permute.xlu0 %3071
    %3074 = vset.pattern.permute.xlu0 2
    %3075 = vperm.xlu0 %3074, %v2393
    %v3076 = vpop.permute.xlu0 %3075
    %3078 = vset.pattern.permute.xlu0 2
    %3079 = vperm.xlu0 %3078, %v2398
    %v3080 = vpop.permute.xlu0 %3079
    %3082 = vset.pattern.permute.xlu0 2
    %3083 = vperm.xlu0 %3082, %v2401
    %v3084 = vpop.permute.xlu0 %3083
    %3086 = vset.pattern.permute.xlu0 2
    %3087 = vperm.xlu0 %3086, %v2406
    %v3088 = vpop.permute.xlu0 %3087
    %3090 = vset.pattern.permute.xlu0 2
    %3091 = vperm.xlu0 %3090, %v2409
    %v3092 = vpop.permute.xlu0 %3091
    %3094 = vset.pattern.permute.xlu0 2
    %3095 = vperm.xlu0 %3094, %v2414
    %v3096 = vpop.permute.xlu0 %3095
    %3098 = vset.pattern.permute.xlu0 2
    %3099 = vperm.xlu0 %3098, %v2417
    %v3100 = vpop.permute.xlu0 %3099
    %v3102 = vlaneseq
    %v3103 = vshrl.u32 %v3102, 7
    %v3104 = vsub.s32 0, %v3103
    %v3105 = vrot.slane %v3054, %v3104
    %v3106 = vadd.f32 %v3072, %v3105
    %v3107 = vadd.f32 %v3076, %v3105
    %v3108 = vadd.f32 %v3080, %v3105
    %v3109 = vadd.f32 %v3084, %v3105
    %v3110 = vadd.f32 %v3088, %v3105
    %v3111 = vadd.f32 %v3092, %v3105
    %v3112 = vadd.f32 %v3096, %v3105
    %v3113 = vadd.f32 %v3100, %v3105
    %v3114 = vmul.f32 %v3106, 0.2
    %v3115 = vmul.f32 %v3107, 0.2
    %v3116 = vmul.f32 %v3108, 0.2
    %v3117 = vmul.f32 %v3109, 0.2
    %v3118 = vmul.f32 %v3110, 0.2
    %v3119 = vmul.f32 %v3111, 0.2
    %v3120 = vmul.f32 %v3112, 0.2
    %v3121 = vmul.f32 %v3113, 0.2
    %v3122 = vmax.f32 %v3106, %v3114
    %v3123 = vmax.f32 %v3107, %v3115
    %v3124 = vmax.f32 %v3108, %v3116
    %v3125 = vmax.f32 %v3109, %v3117
    %v3126 = vmax.f32 %v3110, %v3118
    %v3127 = vmax.f32 %v3111, %v3119
    %v3128 = vmax.f32 %v3112, %v3120
    %v3129 = vmax.f32 %v3113, %v3121
    %v3130 = vadd.f32 %v3122, %v185
    %v3131 = vadd.f32 %v3123, %v186
    %v3132 = vadd.f32 %v3124, %v187
    %v3133 = vadd.f32 %v3125, %v188
    %v3134 = vadd.f32 %v3126, %v189
    %v3135 = vadd.f32 %v3127, %v190
    %v3136 = vadd.f32 %v3128, %v191
    %v3137 = vadd.f32 %v3129, %v192
    %v3138 = vsel %vm664, %v3130, -inf
    %3139 = vmax.xlane.f32.xlu0 %v3138
    %v3140 = vpop.xlane.xlu0 %3139
    %v3141 = vsel %vm664, %v3131, -inf
    %3142 = vmax.xlane.f32.xlu0 %v3141
    %v3143 = vpop.xlane.xlu0 %3142
    %v3144 = vsel %vm664, %v3132, -inf
    %3145 = vmax.xlane.f32.xlu0 %v3144
    %v3146 = vpop.xlane.xlu0 %3145
    %v3147 = vsel %vm664, %v3133, -inf
    %3148 = vmax.xlane.f32.xlu0 %v3147
    %v3149 = vpop.xlane.xlu0 %3148
    %v3150 = vsel %vm664, %v3134, -inf
    %3151 = vmax.xlane.f32.xlu0 %v3150
    %v3152 = vpop.xlane.xlu0 %3151
    %v3153 = vsel %vm664, %v3135, -inf
    %3154 = vmax.xlane.f32.xlu0 %v3153
    %v3155 = vpop.xlane.xlu0 %3154
    %v3156 = vsel %vm664, %v3136, -inf
    %3157 = vmax.xlane.f32.xlu0 %v3156
    %v3158 = vpop.xlane.xlu0 %3157
    %v3159 = vsel %vm664, %v3137, -inf
    %3160 = vmax.xlane.f32.xlu0 %v3159
    %v3161 = vpop.xlane.xlu0 %3160
    %v3162 = vsub.f32 %v3130, %v3140
    %v3163 = vsub.f32 %v3131, %v3143
    %v3164 = vsub.f32 %v3132, %v3146
    %v3165 = vsub.f32 %v3133, %v3149
    %v3166 = vsub.f32 %v3134, %v3152
    %v3167 = vsub.f32 %v3135, %v3155
    %v3168 = vsub.f32 %v3136, %v3158
    %v3169 = vsub.f32 %v3137, %v3161
    %v3170 = vmul.f32 %v3162, 1.442695
    %v3171 = vpow.pop %v3170
    %v3172 = vmul.f32 %v3163, 1.442695
    %v3173 = vpow.pop %v3172
    %v3174 = vmul.f32 %v3164, 1.442695
    %v3175 = vpow.pop %v3174
    %v3176 = vmul.f32 %v3165, 1.442695
    %v3177 = vpow.pop %v3176
    %v3178 = vmul.f32 %v3166, 1.442695
    %v3179 = vpow.pop %v3178
    %v3180 = vmul.f32 %v3167, 1.442695
    %v3181 = vpow.pop %v3180
    %v3182 = vmul.f32 %v3168, 1.442695
    %v3183 = vpow.pop %v3182
    %v3184 = vmul.f32 %v3169, 1.442695
    %v3185 = vpow.pop %v3184
    %v3186 = vsel %vm664, %v3171, 0.0
    %3187 = vadd.xlane.f32.xlu0 %v3186
    %v3188 = vpop.xlane.xlu0 %3187
    %v3189 = vsel %vm664, %v3173, 0.0
    %3190 = vadd.xlane.f32.xlu0 %v3189
    %v3191 = vpop.xlane.xlu0 %3190
    %v3192 = vsel %vm664, %v3175, 0.0
    %3193 = vadd.xlane.f32.xlu0 %v3192
    %v3194 = vpop.xlane.xlu0 %3193
    %v3195 = vsel %vm664, %v3177, 0.0
    %3196 = vadd.xlane.f32.xlu0 %v3195
    %v3197 = vpop.xlane.xlu0 %3196
    %v3198 = vsel %vm664, %v3179, 0.0
    %3199 = vadd.xlane.f32.xlu0 %v3198
    %v3200 = vpop.xlane.xlu0 %3199
    %v3201 = vsel %vm664, %v3181, 0.0
    %3202 = vadd.xlane.f32.xlu0 %v3201
    %v3203 = vpop.xlane.xlu0 %3202
    %v3204 = vsel %vm664, %v3183, 0.0
    %3205 = vadd.xlane.f32.xlu0 %v3204
    %v3206 = vpop.xlane.xlu0 %3205
    %v3207 = vsel %vm664, %v3185, 0.0
    %3208 = vadd.xlane.f32.xlu0 %v3207
    %v3209 = vpop.xlane.xlu0 %3208
    %v3210 = vpack.c.bf16 %v3173, %v3171
    %v3211 = vpack.c.bf16 %v3177, %v3175
    %v3212 = vpack.c.bf16 %v3181, %v3179
    %v3213 = vpack.c.bf16 %v3185, %v3183
    %3214 = vrot.lane.b32.xlu0 %v2190, 64
    %v3215 = vpop.permute.xlu0 %3214
    %3216 = vrot.lane.b32.xlu0 %v2191, 64
    %v3217 = vpop.permute.xlu0 %3216
    %3218 = vrot.lane.b32.xlu0 %v2192, 64
    %v3219 = vpop.permute.xlu0 %3218
    %3220 = vrot.lane.b32.xlu0 %v2193, 64
    %v3221 = vpop.permute.xlu0 %3220
    %v3227 = vsel %vm664, %v3210, 0
    %v3230 = vsel %vm664, %v3211, 0
    %v3233 = vsel %vm664, %v3212, 0
    %v3236 = vsel %vm664, %v3213, 0
    %3238 = vmatprep.subr.bf16.mxu0 0
    %3239 = vmatpush1.bf16.msra.mxu0 %v3215
    %3240 = vmatprep.subr.bf16.mxu0 0
    %3241 = vmatpush1.bf16.msra.mxu0 %v3217
    %3242 = vmatprep.subr.bf16.mxu0 0
    %3243 = vmatpush1.bf16.msra.mxu0 %v3219
    %3244 = vmatprep.subr.bf16.mxu0 0
    %3245 = vmatpush1.bf16.msra.mxu0 %v3221
    %3246 = vmatprep.subr.bf16.mxu0 0
    %3247 = vmatpush1.bf16.msra.mxu0 0
    %3248 = vmatprep.subr.bf16.mxu0 0
    %3249 = vmatpush1.bf16.msra.mxu0 0
    %3250 = vmatprep.subr.bf16.mxu0 0
    %3251 = vmatpush1.bf16.msra.mxu0 0
    %3252 = vmatprep.subr.bf16.mxu0 0
    %3253 = vmatpush1.bf16.msra.mxu0 0
    %3254 = vmatprep.subr.bf16.mxu0 0
    %3255 = vmatpush1.bf16.msra.mxu0 0
    %3256 = vmatprep.subr.bf16.mxu0 0
    %3257 = vmatpush1.bf16.msra.mxu0 0
    %3258 = vmatprep.subr.bf16.mxu0 0
    %3259 = vmatpush1.bf16.msra.mxu0 0
    %3260 = vmatprep.subr.bf16.mxu0 0
    %3261 = vmatpush1.bf16.msra.mxu0 0
    %3262 = vmatprep.subr.bf16.mxu0 0
    %3263 = vmatpush1.bf16.msra.mxu0 0
    %3264 = vmatprep.subr.bf16.mxu0 0
    %3265 = vmatpush1.bf16.msra.mxu0 0
    %3266 = vmatprep.subr.bf16.mxu0 0
    %3267 = vmatpush1.bf16.msra.mxu0 0
    %3268 = vmatprep.subr.bf16.mxu0 0
    %3269 = vmatpush1.bf16.msra.mxu0 0
    %3270 = vmatprep.mubr.bf16.mxu0 0
    %3271 = vmatmul.mubr.bf16.gmra.mrb[0].mxu0 %v3227
    %v3272 = vpop.f32.mrb[0].mxu0
    %v3273 = vadd.f32 0.0, %v3272
    %v3274 = vpop.f32.mrb[0].mxu0
    %v3275 = vpop.f32.mrb[0].mxu0
    %v3276 = vadd.f32 0.0, %v3275
    %v3277 = vpop.f32.mrb[0].mxu0
    %3278 = vmatprep.mubr.bf16.mxu0 0
    %3279 = vmatmul.mubr.bf16.gmra.mrb[0].mxu0 %v3230
    %v3280 = vpop.f32.mrb[0].mxu0
    %v3281 = vadd.f32 0.0, %v3280
    %v3282 = vpop.f32.mrb[0].mxu0
    %v3283 = vpop.f32.mrb[0].mxu0
    %v3284 = vadd.f32 0.0, %v3283
    %v3285 = vpop.f32.mrb[0].mxu0
    %3286 = vmatprep.mubr.bf16.mxu0 0
    %3287 = vmatmul.mubr.bf16.gmra.mrb[0].mxu0 %v3233
    %v3288 = vpop.f32.mrb[0].mxu0
    %v3289 = vadd.f32 0.0, %v3288
    %v3290 = vpop.f32.mrb[0].mxu0
    %v3291 = vpop.f32.mrb[0].mxu0
    %v3292 = vadd.f32 0.0, %v3291
    %v3293 = vpop.f32.mrb[0].mxu0
    %3294 = vmatprep.mubr.bf16.mxu0 0
    %3295 = vmatmul.mubr.bf16.gmra.mrb[0].mxu0 %v3236
    %v3296 = vpop.f32.mrb[0].mxu0
    %v3297 = vadd.f32 0.0, %v3296
    %v3298 = vpop.f32.mrb[0].mxu0
    %v3299 = vpop.f32.mrb[0].mxu0
    %v3300 = vadd.f32 0.0, %v3299
    %v3301 = vpop.f32.mrb[0].mxu0
    %3302 = vdwg.mxu0
    %v3303 = vrcp.pop %v3188
    %v3304 = vrcp.pop %v3191
    %v3305 = vrcp.pop %v3194
    %v3306 = vrcp.pop %v3197
    %v3307 = vrcp.pop %v3200
    %v3308 = vrcp.pop %v3203
    %v3309 = vrcp.pop %v3206
    %v3310 = vrcp.pop %v3209
    %v3311 = vmul.f32 %v3273, %v3303
    %v3312 = vmul.f32 %v3276, %v3304
    %v3313 = vmul.f32 %v3281, %v3305
    %v3314 = vmul.f32 %v3284, %v3306
    %v3315 = vmul.f32 %v3289, %v3307
    %v3316 = vmul.f32 %v3292, %v3308
    %v3317 = vmul.f32 %v3297, %v3309
    %v3318 = vmul.f32 %v3300, %v3310
    %3319 = vrot.lane.b32.xlu0 %v2277, 125
    %v3320 = vpop.permute.xlu0 %3319
    %3321 = vrot.lane.b32.xlu0 %v2280, 125
    %v3322 = vpop.permute.xlu0 %3321
    %3323 = vrot.lane.b32.xlu0 %v2285, 125
    %v3324 = vpop.permute.xlu0 %3323
    %3325 = vrot.lane.b32.xlu0 %v2288, 125
    %v3326 = vpop.permute.xlu0 %3325
    %3327 = vrot.lane.b32.xlu0 %v2293, 125
    %v3328 = vpop.permute.xlu0 %3327
    %3329 = vrot.lane.b32.xlu0 %v2296, 125
    %v3330 = vpop.permute.xlu0 %3329
    %3331 = vrot.lane.b32.xlu0 %v2301, 125
    %v3332 = vpop.permute.xlu0 %3331
    %3333 = vrot.lane.b32.xlu0 %v2304, 125
    %v3334 = vpop.permute.xlu0 %3333
    %3343 = vxpose.xlu0.b32.start [1/16] %v3320, 128
    %3344 = vxpose.xlu0.b32.cont [2/16] %v3322, 128
    %3345 = vxpose.xlu0.b32.cont [3/16] %v3324, 128
    %3346 = vxpose.xlu0.b32.cont [4/16] %v3326, 128
    %3347 = vxpose.xlu0.b32.cont [5/16] %v3328, 128
    %3348 = vxpose.xlu0.b32.cont [6/16] %v3330, 128
    %3349 = vxpose.xlu0.b32.cont [7/16] %v3332, 128
    %3350 = vxpose.xlu0.b32.cont [8/16] %v3334, 128
    %3351 = vxpose.xlu0.b32.cont [9/16] 0.0, 128
    %3352 = vxpose.xlu0.b32.cont [10/16] 0.0, 128
    %3353 = vxpose.xlu0.b32.cont [11/16] 0.0, 128
    %3354 = vxpose.xlu0.b32.cont [12/16] 0.0, 128
    %3355 = vxpose.xlu0.b32.cont [13/16] 0.0, 128
    %3356 = vxpose.xlu0.b32.cont [14/16] 0.0, 128
    %3357 = vxpose.xlu0.b32.cont [15/16] 0.0, 128
    %3358 = vxpose.xlu0.b32.end [16/16] 0.0, 128
    %v3359 = vpop.trf.xlu0
    %v3360 = vpop.trf.xlu0
    %v3361 = vpop.trf.xlu0
    %v3362 = vpop.trf.xlu0
    %v3363 = vpop.trf.xlu0
    %v3364 = vpop.trf.xlu0
    %v3365 = vpop.trf.xlu0
    %v3366 = vpop.trf.xlu0
    %v3367 = vpop.trf.xlu0
    %v3368 = vpop.trf.xlu0
    %v3369 = vpop.trf.xlu0
    %v3370 = vpop.trf.xlu0
    %v3371 = vpop.trf.xlu0
    %v3372 = vpop.trf.xlu0
    %v3373 = vpop.trf.xlu0
    %v3374 = vpop.trf.xlu0
    %3375 = vset.pattern.permute.xlu0 3
    %3376 = vperm.xlu0 %3375, %v2390
    %v3377 = vpop.permute.xlu0 %3376
    %3379 = vset.pattern.permute.xlu0 3
    %3380 = vperm.xlu0 %3379, %v2393
    %v3381 = vpop.permute.xlu0 %3380
    %3383 = vset.pattern.permute.xlu0 3
    %3384 = vperm.xlu0 %3383, %v2398
    %v3385 = vpop.permute.xlu0 %3384
    %3387 = vset.pattern.permute.xlu0 3
    %3388 = vperm.xlu0 %3387, %v2401
    %v3389 = vpop.permute.xlu0 %3388
    %3391 = vset.pattern.permute.xlu0 3
    %3392 = vperm.xlu0 %3391, %v2406
    %v3393 = vpop.permute.xlu0 %3392
    %3395 = vset.pattern.permute.xlu0 3
    %3396 = vperm.xlu0 %3395, %v2409
    %v3397 = vpop.permute.xlu0 %3396
    %3399 = vset.pattern.permute.xlu0 3
    %3400 = vperm.xlu0 %3399, %v2414
    %v3401 = vpop.permute.xlu0 %3400
    %3403 = vset.pattern.permute.xlu0 3
    %3404 = vperm.xlu0 %3403, %v2417
    %v3405 = vpop.permute.xlu0 %3404
    %v3407 = vlaneseq
    %v3408 = vshrl.u32 %v3407, 7
    %v3409 = vsub.s32 0, %v3408
    %v3410 = vrot.slane %v3359, %v3409
    %v3411 = vadd.f32 %v3377, %v3410
    %v3412 = vadd.f32 %v3381, %v3410
    %v3413 = vadd.f32 %v3385, %v3410
    %v3414 = vadd.f32 %v3389, %v3410
    %v3415 = vadd.f32 %v3393, %v3410
    %v3416 = vadd.f32 %v3397, %v3410
    %v3417 = vadd.f32 %v3401, %v3410
    %v3418 = vadd.f32 %v3405, %v3410
    %v3419 = vmul.f32 %v3411, 0.2
    %v3420 = vmul.f32 %v3412, 0.2
    %v3421 = vmul.f32 %v3413, 0.2
    %v3422 = vmul.f32 %v3414, 0.2
    %v3423 = vmul.f32 %v3415, 0.2
    %v3424 = vmul.f32 %v3416, 0.2
    %v3425 = vmul.f32 %v3417, 0.2
    %v3426 = vmul.f32 %v3418, 0.2
    %v3427 = vmax.f32 %v3411, %v3419
    %v3428 = vmax.f32 %v3412, %v3420
    %v3429 = vmax.f32 %v3413, %v3421
    %v3430 = vmax.f32 %v3414, %v3422
    %v3431 = vmax.f32 %v3415, %v3423
    %v3432 = vmax.f32 %v3416, %v3424
    %v3433 = vmax.f32 %v3417, %v3425
    %v3434 = vmax.f32 %v3418, %v3426
    %v3435 = vadd.f32 %v3427, %v185
    %v3436 = vadd.f32 %v3428, %v186
    %v3437 = vadd.f32 %v3429, %v187
    %v3438 = vadd.f32 %v3430, %v188
    %v3439 = vadd.f32 %v3431, %v189
    %v3440 = vadd.f32 %v3432, %v190
    %v3441 = vadd.f32 %v3433, %v191
    %v3442 = vadd.f32 %v3434, %v192
    %v3443 = vsel %vm664, %v3435, -inf
    %3444 = vmax.xlane.f32.xlu0 %v3443
    %v3445 = vpop.xlane.xlu0 %3444
    %v3446 = vsel %vm664, %v3436, -inf
    %3447 = vmax.xlane.f32.xlu0 %v3446
    %v3448 = vpop.xlane.xlu0 %3447
    %v3449 = vsel %vm664, %v3437, -inf
    %3450 = vmax.xlane.f32.xlu0 %v3449
    %v3451 = vpop.xlane.xlu0 %3450
    %v3452 = vsel %vm664, %v3438, -inf
    %3453 = vmax.xlane.f32.xlu0 %v3452
    %v3454 = vpop.xlane.xlu0 %3453
    %v3455 = vsel %vm664, %v3439, -inf
    %3456 = vmax.xlane.f32.xlu0 %v3455
    %v3457 = vpop.xlane.xlu0 %3456
    %v3458 = vsel %vm664, %v3440, -inf
    %3459 = vmax.xlane.f32.xlu0 %v3458
    %v3460 = vpop.xlane.xlu0 %3459
    %v3461 = vsel %vm664, %v3441, -inf
    %3462 = vmax.xlane.f32.xlu0 %v3461
    %v3463 = vpop.xlane.xlu0 %3462
    %v3464 = vsel %vm664, %v3442, -inf
    %3465 = vmax.xlane.f32.xlu0 %v3464
    %v3466 = vpop.xlane.xlu0 %3465
    %v3467 = vsub.f32 %v3435, %v3445
    %v3468 = vsub.f32 %v3436, %v3448
    %v3469 = vsub.f32 %v3437, %v3451
    %v3470 = vsub.f32 %v3438, %v3454
    %v3471 = vsub.f32 %v3439, %v3457
    %v3472 = vsub.f32 %v3440, %v3460
    %v3473 = vsub.f32 %v3441, %v3463
    %v3474 = vsub.f32 %v3442, %v3466
    %v3475 = vmul.f32 %v3467, 1.442695
    %v3476 = vpow.pop %v3475
    %v3477 = vmul.f32 %v3468, 1.442695
    %v3478 = vpow.pop %v3477
    %v3479 = vmul.f32 %v3469, 1.442695
    %v3480 = vpow.pop %v3479
    %v3481 = vmul.f32 %v3470, 1.442695
    %v3482 = vpow.pop %v3481
    %v3483 = vmul.f32 %v3471, 1.442695
    %v3484 = vpow.pop %v3483
    %v3485 = vmul.f32 %v3472, 1.442695
    %v3486 = vpow.pop %v3485
    %v3487 = vmul.f32 %v3473, 1.442695
    %v3488 = vpow.pop %v3487
    %v3489 = vmul.f32 %v3474, 1.442695
    %v3490 = vpow.pop %v3489
    %v3491 = vsel %vm664, %v3476, 0.0
    %3492 = vadd.xlane.f32.xlu0 %v3491
    %v3493 = vpop.xlane.xlu0 %3492
    %v3494 = vsel %vm664, %v3478, 0.0
    %3495 = vadd.xlane.f32.xlu0 %v3494
    %v3496 = vpop.xlane.xlu0 %3495
    %v3497 = vsel %vm664, %v3480, 0.0
    %3498 = vadd.xlane.f32.xlu0 %v3497
    %v3499 = vpop.xlane.xlu0 %3498
    %v3500 = vsel %vm664, %v3482, 0.0
    %3501 = vadd.xlane.f32.xlu0 %v3500
    %v3502 = vpop.xlane.xlu0 %3501
    %v3503 = vsel %vm664, %v3484, 0.0
    %3504 = vadd.xlane.f32.xlu0 %v3503
    %v3505 = vpop.xlane.xlu0 %3504
    %v3506 = vsel %vm664, %v3486, 0.0
    %3507 = vadd.xlane.f32.xlu0 %v3506
    %v3508 = vpop.xlane.xlu0 %3507
    %v3509 = vsel %vm664, %v3488, 0.0
    %3510 = vadd.xlane.f32.xlu0 %v3509
    %v3511 = vpop.xlane.xlu0 %3510
    %v3512 = vsel %vm664, %v3490, 0.0
    %3513 = vadd.xlane.f32.xlu0 %v3512
    %v3514 = vpop.xlane.xlu0 %3513
    %v3515 = vpack.c.bf16 %v3478, %v3476
    %v3516 = vpack.c.bf16 %v3482, %v3480
    %v3517 = vpack.c.bf16 %v3486, %v3484
    %v3518 = vpack.c.bf16 %v3490, %v3488
    %3519 = vrot.lane.b32.xlu0 %v2190, 32
    %v3520 = vpop.permute.xlu0 %3519
    %3521 = vrot.lane.b32.xlu0 %v2191, 32
    %v3522 = vpop.permute.xlu0 %3521
    %3523 = vrot.lane.b32.xlu0 %v2192, 32
    %v3524 = vpop.permute.xlu0 %3523
    %3525 = vrot.lane.b32.xlu0 %v2193, 32
    %v3526 = vpop.permute.xlu0 %3525
    %v3532 = vsel %vm664, %v3515, 0
    %v3535 = vsel %vm664, %v3516, 0
    %v3538 = vsel %vm664, %v3517, 0
    %v3541 = vsel %vm664, %v3518, 0
    %3543 = vmatprep.subr.bf16.mxu0 0
    %3544 = vmatpush1.bf16.msra.mxu0 %v3520
    %3545 = vmatprep.subr.bf16.mxu0 0
    %3546 = vmatpush1.bf16.msra.mxu0 %v3522
    %3547 = vmatprep.subr.bf16.mxu0 0
    %3548 = vmatpush1.bf16.msra.mxu0 %v3524
    %3549 = vmatprep.subr.bf16.mxu0 0
    %3550 = vmatpush1.bf16.msra.mxu0 %v3526
    %3551 = vmatprep.subr.bf16.mxu0 0
    %3552 = vmatpush1.bf16.msra.mxu0 0
    %3553 = vmatprep.subr.bf16.mxu0 0
    %3554 = vmatpush1.bf16.msra.mxu0 0
    %3555 = vmatprep.subr.bf16.mxu0 0
    %3556 = vmatpush1.bf16.msra.mxu0 0
    %3557 = vmatprep.subr.bf16.mxu0 0
    %3558 = vmatpush1.bf16.msra.mxu0 0
    %3559 = vmatprep.subr.bf16.mxu0 0
    %3560 = vmatpush1.bf16.msra.mxu0 0
    %3561 = vmatprep.subr.bf16.mxu0 0
    %3562 = vmatpush1.bf16.msra.mxu0 0
    %3563 = vmatprep.subr.bf16.mxu0 0
    %3564 = vmatpush1.bf16.msra.mxu0 0
    %3565 = vmatprep.subr.bf16.mxu0 0
    %3566 = vmatpush1.bf16.msra.mxu0 0
    %3567 = vmatprep.subr.bf16.mxu0 0
    %3568 = vmatpush1.bf16.msra.mxu0 0
    %3569 = vmatprep.subr.bf16.mxu0 0
    %3570 = vmatpush1.bf16.msra.mxu0 0
    %3571 = vmatprep.subr.bf16.mxu0 0
    %3572 = vmatpush1.bf16.msra.mxu0 0
    %3573 = vmatprep.subr.bf16.mxu0 0
    %3574 = vmatpush1.bf16.msra.mxu0 0
    %3575 = vmatprep.mubr.bf16.mxu0 0
    %3576 = vmatmul.mubr.bf16.gmra.mrb[0].mxu0 %v3532
    %v3577 = vpop.f32.mrb[0].mxu0
    %v3578 = vadd.f32 0.0, %v3577
    %v3579 = vpop.f32.mrb[0].mxu0
    %v3580 = vpop.f32.mrb[0].mxu0
    %v3581 = vadd.f32 0.0, %v3580
    %v3582 = vpop.f32.mrb[0].mxu0
    %3583 = vmatprep.mubr.bf16.mxu0 0
    %3584 = vmatmul.mubr.bf16.gmra.mrb[0].mxu0 %v3535
    %v3585 = vpop.f32.mrb[0].mxu0
    %v3586 = vadd.f32 0.0, %v3585
    %v3587 = vpop.f32.mrb[0].mxu0
    %v3588 = vpop.f32.mrb[0].mxu0
    %v3589 = vadd.f32 0.0, %v3588
    %v3590 = vpop.f32.mrb[0].mxu0
    %3591 = vmatprep.mubr.bf16.mxu0 0
    %3592 = vmatmul.mubr.bf16.gmra.mrb[0].mxu0 %v3538
    %v3593 = vpop.f32.mrb[0].mxu0
    %v3594 = vadd.f32 0.0, %v3593
    %v3595 = vpop.f32.mrb[0].mxu0
    %v3596 = vpop.f32.mrb[0].mxu0
    %v3597 = vadd.f32 0.0, %v3596
    %v3598 = vpop.f32.mrb[0].mxu0
    %3599 = vmatprep.mubr.bf16.mxu0 0
    %3600 = vmatmul.mubr.bf16.gmra.mrb[0].mxu0 %v3541
    %v3601 = vpop.f32.mrb[0].mxu0
    %v3602 = vadd.f32 0.0, %v3601
    %v3603 = vpop.f32.mrb[0].mxu0
    %v3604 = vpop.f32.mrb[0].mxu0
    %v3605 = vadd.f32 0.0, %v3604
    %v3606 = vpop.f32.mrb[0].mxu0
    %3607 = vdwg.mxu0
    %v3608 = vrcp.pop %v3493
    %v3609 = vrcp.pop %v3496
    %v3610 = vrcp.pop %v3499
    %v3611 = vrcp.pop %v3502
    %v3612 = vrcp.pop %v3505
    %v3613 = vrcp.pop %v3508
    %v3614 = vrcp.pop %v3511
    %v3615 = vrcp.pop %v3514
    %v3616 = vmul.f32 %v3578, %v3608
    %v3617 = vmul.f32 %v3581, %v3609
    %v3618 = vmul.f32 %v3586, %v3610
    %v3619 = vmul.f32 %v3589, %v3611
    %v3620 = vmul.f32 %v3594, %v3612
    %v3621 = vmul.f32 %v3597, %v3613
    %v3622 = vmul.f32 %v3602, %v3614
    %v3623 = vmul.f32 %v3605, %v3615
    %3632 = vrot.lane.b32.xlu0 %v3006, 32
    %v3633 = vpop.permute.xlu0 %3632
    %3634 = vrot.lane.b32.xlu0 %v3007, 32
    %v3635 = vpop.permute.xlu0 %3634
    %3636 = vrot.lane.b32.xlu0 %v3008, 32
    %v3637 = vpop.permute.xlu0 %3636
    %3638 = vrot.lane.b32.xlu0 %v3009, 32
    %v3639 = vpop.permute.xlu0 %3638
    %3640 = vrot.lane.b32.xlu0 %v3010, 32
    %v3641 = vpop.permute.xlu0 %3640
    %3642 = vrot.lane.b32.xlu0 %v3011, 32
    %v3643 = vpop.permute.xlu0 %3642
    %3644 = vrot.lane.b32.xlu0 %v3012, 32
    %v3645 = vpop.permute.xlu0 %3644
    %3646 = vrot.lane.b32.xlu0 %v3013, 32
    %v3647 = vpop.permute.xlu0 %3646
    %3664 = vrot.lane.b32.xlu0 %v3311, 64
    %v3665 = vpop.permute.xlu0 %3664
    %3666 = vrot.lane.b32.xlu0 %v3312, 64
    %v3667 = vpop.permute.xlu0 %3666
    %3668 = vrot.lane.b32.xlu0 %v3313, 64
    %v3669 = vpop.permute.xlu0 %3668
    %3670 = vrot.lane.b32.xlu0 %v3314, 64
    %v3671 = vpop.permute.xlu0 %3670
    %3672 = vrot.lane.b32.xlu0 %v3315, 64
    %v3673 = vpop.permute.xlu0 %3672
    %3674 = vrot.lane.b32.xlu0 %v3316, 64
    %v3675 = vpop.permute.xlu0 %3674
    %3676 = vrot.lane.b32.xlu0 %v3317, 64
    %v3677 = vpop.permute.xlu0 %3676
    %3678 = vrot.lane.b32.xlu0 %v3318, 64
    %v3679 = vpop.permute.xlu0 %3678
    %3696 = vrot.lane.b32.xlu0 %v3616, 96
    %v3697 = vpop.permute.xlu0 %3696
    %3698 = vrot.lane.b32.xlu0 %v3617, 96
    %v3699 = vpop.permute.xlu0 %3698
    %3700 = vrot.lane.b32.xlu0 %v3618, 96
    %v3701 = vpop.permute.xlu0 %3700
    %3702 = vrot.lane.b32.xlu0 %v3619, 96
    %v3703 = vpop.permute.xlu0 %3702
    %3704 = vrot.lane.b32.xlu0 %v3620, 96
    %v3705 = vpop.permute.xlu0 %3704
    %3706 = vrot.lane.b32.xlu0 %v3621, 96
    %v3707 = vpop.permute.xlu0 %3706
    %3708 = vrot.lane.b32.xlu0 %v3622, 96
    %v3709 = vpop.permute.xlu0 %3708
    %3710 = vrot.lane.b32.xlu0 %v3623, 96
    %v3711 = vpop.permute.xlu0 %3710
    %v3720 = vsel %vm1857, %v2689, %v3633
    %v3721 = vsel %vm1857, %v2690, %v3635
    %v3722 = vsel %vm1857, %v2691, %v3637
    %v3723 = vsel %vm1857, %v2692, %v3639
    %v3724 = vsel %vm1857, %v2693, %v3641
    %v3725 = vsel %vm1857, %v2694, %v3643
    %v3726 = vsel %vm1857, %v2695, %v3645
    %v3727 = vsel %vm1857, %v2696, %v3647
    %v3728 = vsel %vm664, %v3720, %v3665
    %v3729 = vsel %vm664, %v3721, %v3667
    %v3730 = vsel %vm664, %v3722, %v3669
    %v3731 = vsel %vm664, %v3723, %v3671
    %v3732 = vsel %vm664, %v3724, %v3673
    %v3733 = vsel %vm664, %v3725, %v3675
    %v3734 = vsel %vm664, %v3726, %v3677
    %v3735 = vsel %vm664, %v3727, %v3679
    %v3736 = vsel %vm1874, %v3728, %v3697
    %v3737 = vsel %vm1874, %v3729, %v3699
    %v3738 = vsel %vm1874, %v3730, %v3701
    %v3739 = vsel %vm1874, %v3731, %v3703
    %v3740 = vsel %vm1874, %v3732, %v3705
    %v3741 = vsel %vm1874, %v3733, %v3707
    %v3742 = vsel %vm1874, %v3734, %v3709
    %v3743 = vsel %vm1874, %v3735, %v3711
    %v3744 = vadd.f32 %v3736, %v2016
    %v3745 = vadd.f32 %v3737, %v2017
    %v3746 = vadd.f32 %v3738, %v2018
    %v3747 = vadd.f32 %v3739, %v2019
    %v3748 = vadd.f32 %v3740, %v2020
    %v3749 = vadd.f32 %v3741, %v2021
    %v3750 = vadd.f32 %v3742, %v2022
    %v3751 = vadd.f32 %v3743, %v2023
    %v3753 = vlaneseq
    %v3754 = vshrl.u32 %v3753, 7
    %v3755 = vsub.s32 0, %v3754
    %v3756 = vrot.slane %v2072, %v3755
    %v3758 = vadd.f32 %v3744, %v3756
    %v3759 = vadd.f32 %v3745, %v3756
    %v3760 = vadd.f32 %v3746, %v3756
    %v3761 = vadd.f32 %v3747, %v3756
    %v3762 = vadd.f32 %v3748, %v3756
    %v3763 = vadd.f32 %v3749, %v3756
    %v3764 = vadd.f32 %v3750, %v3756
    %v3765 = vadd.f32 %v3751, %v3756
    %3774 = vrot.lane.b32.xlu0 %v3758, 96
    %v3775 = vpop.permute.xlu0 %3774
    %3776 = vrot.lane.b32.xlu0 %v3759, 96
    %v3777 = vpop.permute.xlu0 %3776
    %3778 = vrot.lane.b32.xlu0 %v3760, 96
    %v3779 = vpop.permute.xlu0 %3778
    %3780 = vrot.lane.b32.xlu0 %v3761, 96
    %v3781 = vpop.permute.xlu0 %3780
    %3782 = vrot.lane.b32.xlu0 %v3762, 96
    %v3783 = vpop.permute.xlu0 %3782
    %3784 = vrot.lane.b32.xlu0 %v3763, 96
    %v3785 = vpop.permute.xlu0 %3784
    %3786 = vrot.lane.b32.xlu0 %v3764, 96
    %v3787 = vpop.permute.xlu0 %3786
    %3788 = vrot.lane.b32.xlu0 %v3765, 96
    %v3789 = vpop.permute.xlu0 %3788
    %v3798 = vadd.f32 %v3758, %v3775
    %v3799 = vadd.f32 %v3759, %v3777
    %v3800 = vadd.f32 %v3760, %v3779
    %v3801 = vadd.f32 %v3761, %v3781
    %v3802 = vadd.f32 %v3762, %v3783
    %v3803 = vadd.f32 %v3763, %v3785
    %v3804 = vadd.f32 %v3764, %v3787
    %v3805 = vadd.f32 %v3765, %v3789
    %3806 = vrot.lane.b32.xlu0 %v3758, 64
    %v3807 = vpop.permute.xlu0 %3806
    %3808 = vrot.lane.b32.xlu0 %v3759, 64
    %v3809 = vpop.permute.xlu0 %3808
    %3810 = vrot.lane.b32.xlu0 %v3760, 64
    %v3811 = vpop.permute.xlu0 %3810
    %3812 = vrot.lane.b32.xlu0 %v3761, 64
    %v3813 = vpop.permute.xlu0 %3812
    %3814 = vrot.lane.b32.xlu0 %v3762, 64
    %v3815 = vpop.permute.xlu0 %3814
    %3816 = vrot.lane.b32.xlu0 %v3763, 64
    %v3817 = vpop.permute.xlu0 %3816
    %3818 = vrot.lane.b32.xlu0 %v3764, 64
    %v3819 = vpop.permute.xlu0 %3818
    %3820 = vrot.lane.b32.xlu0 %v3765, 64
    %v3821 = vpop.permute.xlu0 %3820
    %v3830 = vadd.f32 %v3798, %v3807
    %v3831 = vadd.f32 %v3799, %v3809
    %v3832 = vadd.f32 %v3800, %v3811
    %v3833 = vadd.f32 %v3801, %v3813
    %v3834 = vadd.f32 %v3802, %v3815
    %v3835 = vadd.f32 %v3803, %v3817
    %v3836 = vadd.f32 %v3804, %v3819
    %v3837 = vadd.f32 %v3805, %v3821
    %3838 = vrot.lane.b32.xlu0 %v3758, 32
    %v3839 = vpop.permute.xlu0 %3838
    %3840 = vrot.lane.b32.xlu0 %v3759, 32
    %v3841 = vpop.permute.xlu0 %3840
    %3842 = vrot.lane.b32.xlu0 %v3760, 32
    %v3843 = vpop.permute.xlu0 %3842
    %3844 = vrot.lane.b32.xlu0 %v3761, 32
    %v3845 = vpop.permute.xlu0 %3844
    %3846 = vrot.lane.b32.xlu0 %v3762, 32
    %v3847 = vpop.permute.xlu0 %3846
    %3848 = vrot.lane.b32.xlu0 %v3763, 32
    %v3849 = vpop.permute.xlu0 %3848
    %3850 = vrot.lane.b32.xlu0 %v3764, 32
    %v3851 = vpop.permute.xlu0 %3850
    %3852 = vrot.lane.b32.xlu0 %v3765, 32
    %v3853 = vpop.permute.xlu0 %3852
    %v3862 = vadd.f32 %v3830, %v3839
    %v3863 = vadd.f32 %v3831, %v3841
    %v3864 = vadd.f32 %v3832, %v3843
    %v3865 = vadd.f32 %v3833, %v3845
    %v3866 = vadd.f32 %v3834, %v3847
    %v3867 = vadd.f32 %v3835, %v3849
    %v3868 = vadd.f32 %v3836, %v3851
    %v3869 = vadd.f32 %v3837, %v3853
    %v3870 = vmul.f32 %v3862, 0.25
    %v3871 = vmul.f32 %v3863, 0.25
    %v3872 = vmul.f32 %v3864, 0.25
    %v3873 = vmul.f32 %v3865, 0.25
    %v3874 = vmul.f32 %v3866, 0.25
    %v3875 = vmul.f32 %v3867, 0.25
    %v3876 = vmul.f32 %v3868, 0.25
    %v3877 = vmul.f32 %v3869, 0.25
    %3878 = vst.msk [vmem:[#allocation20] sm:$0xff] %vm1857, %v3870
    %3879 = vst.msk [vmem:[#allocation20 + $0x8] sm:$0xff] %vm1857, %v3871
    %3880 = vst.msk [vmem:[#allocation20 + $0x10] sm:$0xff] %vm1857, %v3872
    %3881 = vst.msk [vmem:[#allocation20 + $0x18] sm:$0xff] %vm1857, %v3873
    %3882 = vst.msk [vmem:[#allocation20 + $0x20] sm:$0xff] %vm1857, %v3874
    %3883 = vst.msk [vmem:[#allocation20 + $0x28] sm:$0xff] %vm1857, %v3875
    %3884 = vst.msk [vmem:[#allocation20 + $0x30] sm:$0xff] %vm1857, %v3876
    %3885 = vst.msk [vmem:[#allocation20 + $0x38] sm:$0xff] %vm1857, %v3877
    // Predicated region
    $region90: #{tpu_custom_call.1} parent=1 // pred_check
      _
    $region91: #{tpu_custom_call.1} parent=1 // pred_check_branch
      %3887 = sbr.rel (0) target = $region93
    $region92: #{tpu_custom_call.1} parent=1 // pred_region
      %s3889 = ssub.s32 1024, 1024
      %3890 = vsyncadd [#allocation4], %s3889
      %s3891 = sshll.u32 [#allocation20], 4
      %s3892 = int_to_ptr.vmem [resolvable:$true] %s3891
      %3897 = dma.vmem_to_hbm [thread:$0]  %s3892, 1024, %s11, [#allocation4], 128, 128, 8
    $region93: #{tpu_custom_call.1} parent=1 // pred_fallthru
      _
    // Predicated region
    $region94: #{tpu_custom_call.1} parent=1 // pred_check
      _
    $region95: #{tpu_custom_call.1} parent=1 // pred_check_branch
      %3899 = sbr.rel (0) target = $region97
    $region96: #{tpu_custom_call.1} parent=1 // pred_region
      %3900 = dma.done [#allocation4], 1024
    $region97: #{tpu_custom_call.1} parent=1 // pred_fallthru
      _
    %3901 = vsyncpa [#allocation3], 1
    %3902 = vsyncpa [#allocation6], 1
    %3903 = vsyncpa [#allocation9], 1
    %3904 = vsyncpa [#allocation12], 1
    %3905 = vsyncpa [#allocation15], 1
    %3906 = vsyncpa [#allocation18], 1
    %3907 = vsyncpa [#allocation4], 1

</llo_original>
